<compile_context>
chip_gen: v6e
topology: v6e:2x2x1
jax: 0.10.0
libtpu: 0.0.40
codegen_flags: <defaults>
</compile_context>

<pallas_src>
import jax
import jax.numpy as jnp
import numpy as np
from jax import lax
from jax.experimental import pallas as pl
from jax.experimental.pallas import tpu as pltpu


# ---------------------------------------------------------------------------
# helpers
# ---------------------------------------------------------------------------

def _pick_row_tile(h, cap, even=False):
    """Largest divisor of h that is <= cap (and even if required)."""
    cap = max(1, min(cap, h))
    for d in range(cap, 0, -1):
        if h % d == 0 and (not even or d % 2 == 0):
            return d
    return h


# ---------------------------------------------------------------------------
# conv_1_1: normalization folded into an im2col patch build (wrapper-side,
# one fused XLA pass over the 3-channel input), then a single K=27 MXU matmul
# per row tile inside Pallas.
# ---------------------------------------------------------------------------

def _patch_conv_kernel(p_ref, w_ref, b_ref, o_ref):
    _, th, wd, kk = p_ref.shape
    cout = w_ref.shape[-1]
    patches = p_ref[0].reshape(th * wd, kk)                    # bf16
    acc = jnp.dot(patches, w_ref[...],
                  preferred_element_type=jnp.float32)          # MXU, K = 27
    o_ref[0] = jnp.maximum(acc + b_ref[...], 0.0).reshape(th, wd, cout)


def conv1_1_im2col_relu(x_nhwc, mean, std, w, b, *, row_tile):
    """x: (N,H,W,3) in [-1,1]; w: (3,3,3,64); b: (64,) -> (N,H,W,64) f32."""
    n, h, wd, cin = x_nhwc.shape
    cout = w.shape[-1]

    # norm_im folded here:  ((x+1)/2 - mean)/std  ==  x*scale + shift
    scale = (0.5 / std).reshape(1, 1, 1, cin)
    shift = ((0.5 - mean) / std).reshape(1, 1, 1, cin)
    y = (x_nhwc.astype(jnp.float32) * scale + shift).astype(jnp.bfloat16)
    yp = jnp.pad(y, ((0, 0), (1, 1), (1, 1), (0, 0)))          # tiny 3-ch tensor
    patches = jnp.concatenate(
        [yp[:, dy:dy + h, dx:dx + wd, :] for dy in range(3) for dx in range(3)],
        axis=-1)                                               # (N,H,W,27) bf16

    wk = w.reshape(9 * cin, cout).astype(jnp.bfloat16)         # (27, 64)
    b2 = b.reshape(1, cout).astype(jnp.float32)

    th = row_tile
    t = h // th
    return pl.pallas_call(
        _patch_conv_kernel,
        out_shape=jax.ShapeDtypeStruct((n, h, wd, cout), jnp.float32),
        grid=(n, t),
        in_specs=[
            pl.BlockSpec((1, th, wd, 9 * cin), lambda i, j: (i, j, 0, 0)),
            pl.BlockSpec((9 * cin, cout), lambda i, j: (0, 0)),
            pl.BlockSpec((1, cout), lambda i, j: (0, 0)),
        ],
        out_specs=pl.BlockSpec((1, th, wd, cout), lambda i, j: (i, j, 0, 0)),
        compiler_params=pltpu.CompilerParams(
            dimension_semantics=("parallel", "parallel")),
    )(patches, wk, b2)


# ---------------------------------------------------------------------------
# 3x3 conv + ReLU (Cin=64 layers), row-tiled with an in-kernel halo'd
# zero-padded VMEM tile, dx-tap fusion (K = 3*Cin) and optional fused 2x2 pool.
# ---------------------------------------------------------------------------

def _make_conv3x3_kernel(with_pool):
    def kernel(top_ref, body_ref, bot_ref, w_ref, b_ref, *refs):
        if with_pool:
            feat_ref, pool_ref, xpad_ref, patch_ref, yrow_ref = refs
        else:
            feat_ref, xpad_ref, patch_ref = refs

        t = pl.program_id(1)
        nt = pl.num_programs(1)
        _, th, wd, cin = body_ref.shape
        cout = w_ref.shape[-1]
        kf = 3 * cin

        # ---- assemble zero-padded input tile (halo rows included) in VMEM ----
        xpad_ref[...] = jnp.zeros_like(xpad_ref)
        xpad_ref[1:th + 1, 1:wd + 1, :] = body_ref[0].astype(jnp.float32)
        top = jnp.where(t > 0, top_ref[0, 0], 0.0).astype(jnp.float32)
        bot = jnp.where(t < nt - 1, bot_ref[0, 0], 0.0).astype(jnp.float32)
        xpad_ref[0, 1:wd + 1, :] = top
        xpad_ref[th + 1, 1:wd + 1, :] = bot

        # ---- 3x3 conv: 3 MXU matmuls, dx taps fused along K (= 3*Cin) ----
        acc = jnp.zeros((th * wd, cout), jnp.float32)
        for dy in range(3):
            for dx in range(3):
                patch_ref[:, :, dx * cin:(dx + 1) * cin] = (
                    xpad_ref[dy:dy + th, dx:dx + wd, :].astype(jnp.bfloat16))
            acc = acc + jnp.dot(patch_ref[...].reshape(th * wd, kf), w_ref[dy],
                                preferred_element_type=jnp.float32)

        out3 = jnp.maximum(acc + b_ref[...], 0.0).reshape(th, wd, cout)
        feat_ref[0] = out3

        if with_pool:
            # fused 2x2/stride-2 maxpool epilogue (strided ref reads only)
            thh, wh = th // 2, wd // 2
            fv = feat_ref.at[0]                              # (th, wd, cout) view
            r0 = fv[pl.ds(0, thh, 2), :, :]
            r1 = fv[pl.ds(1, thh, 2), :, :]
            yrow_ref[...] = jnp.maximum(r0, r1)              # (thh, wd, cout)
            c0 = yrow_ref[:, pl.ds(0, wh, 2), :]
            c1 = yrow_ref[:, pl.ds(1, wh, 2), :]
            pool_ref[0] = jnp.maximum(c0, c1).astype(jnp.bfloat16)

    return kernel


def conv3x3_relu(x, w, b, *, row_tile, fuse_pool=False):
    """Same-padded 3x3 conv + bias + ReLU (and optional fused 2x2 maxpool).

    x: (N, H, W, Cin) f32 or bf16;  w: (3, 3, Cin, Cout);  b: (Cout,)
    returns feat (N,H,W,Cout) f32  [, pooled (N,H/2,W/2,Cout) bf16]
    """
    n, h, wd, cin = x.shape
    cout = w.shape[-1]
    th = row_tile
    assert h % th == 0
    if fuse_pool:
        assert th % 2 == 0 and wd % 2 == 0
    t = h // th

    wf = w.reshape(3, 3 * cin, cout).astype(jnp.bfloat16)   # dx taps fused on K
    b2 = b.reshape(1, cout).astype(jnp.float32)

    body_spec = pl.BlockSpec((1, th, wd, cin), lambda i, j: (i, j, 0, 0))
    # 1-row halo blocks; index is a row (block size 1 on H), clamped in range.
    top_spec = pl.BlockSpec((1, 1, wd, cin),
                            lambda i, j: (i, jnp.maximum(j * th - 1, 0), 0, 0))
    bot_spec = pl.BlockSpec((1, 1, wd, cin),
                            lambda i, j: (i, jnp.minimum(j * th + th, h - 1), 0, 0))
    w_spec = pl.BlockSpec((3, 3 * cin, cout), lambda i, j: (0, 0, 0))
    b_spec = pl.BlockSpec((1, cout), lambda i, j: (0, 0))
    feat_spec = pl.BlockSpec((1, th, wd, cout), lambda i, j: (i, j, 0, 0))

    scratch = [pltpu.VMEM((th + 2, wd + 2, cin), jnp.float32),   # padded tile
               pltpu.VMEM((th, wd, 3 * cin), jnp.bfloat16)]      # fused patches
    if fuse_pool:
        out_shape = (jax.ShapeDtypeStruct((n, h, wd, cout), jnp.float32),
                     jax.ShapeDtypeStruct((n, h // 2, wd // 2, cout), jnp.bfloat16))
        out_specs = (feat_spec,
                     pl.BlockSpec((1, th // 2, wd // 2, cout),
                                  lambda i, j: (i, j, 0, 0)))
        scratch = scratch + [pltpu.VMEM((th // 2, wd, cout), jnp.float32)]
    else:
        out_shape = jax.ShapeDtypeStruct((n, h, wd, cout), jnp.float32)
        out_specs = feat_spec

    return pl.pallas_call(
        _make_conv3x3_kernel(fuse_pool),
        out_shape=out_shape,
        grid=(n, t),
        in_specs=[top_spec, body_spec, bot_spec, w_spec, b_spec],
        out_specs=out_specs,
        scratch_shapes=scratch,
        compiler_params=pltpu.CompilerParams(
            dimension_semantics=("parallel", "parallel")),
    )(x, x, x, wf, b2)


# ---------------------------------------------------------------------------
# VGG wrapper (truncated VGG19.features, listen_list = conv_1_1/1_2/2_1)
# ---------------------------------------------------------------------------

class VGGPallas:
    LISTEN_LIST = ("conv_1_1", "conv_1_2", "conv_2_1")

    def __init__(self, key, row_tile_cap=64):
        # VGG19 channel plan for the truncated prefix:
        #   conv_1_1: 3->64, conv_1_2: 64->64, pool_1, conv_2_1: 64->128
        ks = jax.random.split(key, 6)

        def init_conv(kw, kb, cin, cout):
            w = 0.05 * jax.random.normal(kw, (3, 3, cin, cout), jnp.float32)
            b = 0.05 * jax.random.normal(kb, (cout,), jnp.float32)
            return w, b

        self.params = {
            "conv_1_1": init_conv(ks[0], ks[1], 3, 64),
            "conv_1_2": init_conv(ks[2], ks[3], 64, 64),
            "conv_2_1": init_conv(ks[4], ks[5], 64, 128),
        }
        self.mean = jnp.array([0.485, 0.456, 0.406], jnp.float32)
        self.std = jnp.array([0.229, 0.224, 0.225], jnp.float32)
        # row_tile_cap ~64 keeps halo'd tiles small enough for v7x's 64 MiB
        # VMEM at real VGG resolutions (224-wide, 64/128 channels).
        self.row_tile_cap = row_tile_cap

    def __call__(self, x_nchw):
        # x_nchw: (N, 3, H, W), values in [-1, 1] (PyTorch convention)
        x = jnp.transpose(x_nchw, (0, 2, 3, 1)).astype(jnp.float32)  # -> NHWC
        n, h, wd, _ = x.shape
        assert h % 2 == 0 and wd % 2 == 0

        th1 = _pick_row_tile(h, self.row_tile_cap)
        th1e = _pick_row_tile(h, self.row_tile_cap, even=True)
        th2 = _pick_row_tile(h // 2, self.row_tile_cap)

        w1, b1 = self.params["conv_1_1"]
        w2, b2 = self.params["conv_1_2"]
        w3, b3 = self.params["conv_2_1"]

        feats = {}
        # layer 0 + ReLU(1): normalization folded into the im2col patches
        f11 = conv1_1_im2col_relu(x, self.mean, self.std, w1, b1, row_tile=th1)
        feats["conv_1_1"] = f11
        # layer 2 + ReLU(3), with pool_1 (layer 4) fused into the epilogue
        f12, pooled = conv3x3_relu(f11, w2, b2, row_tile=th1e, fuse_pool=True)
        feats["conv_1_2"] = f12
        # layer 5 + ReLU(6)
        f21 = conv3x3_relu(pooled, w3, b3, row_tile=th2, fuse_pool=False)
        feats["conv_2_1"] = f21

        # Return features in NCHW to match the PyTorch module exactly.
        return {k: jnp.transpose(v, (0, 3, 1, 2)) for k, v in feats.items()}


# ---------------------------------------------------------------------------
# pure-JAX reference (same bf16 matmul precision) for correctness checking
# ---------------------------------------------------------------------------

def _reference_forward(x_nchw, model):
    x = jnp.transpose(x_nchw, (0, 2, 3, 1)).astype(jnp.float32)
    scale = (0.5 / model.std).reshape(1, 1, 1, 3)
    shift = ((0.5 - model.mean) / model.std).reshape(1, 1, 1, 3)
    y = x * scale + shift

    def conv(z, w, b):
        out = lax.conv_general_dilated(
            z.astype(jnp.bfloat16), w.astype(jnp.bfloat16),
            window_strides=(1, 1), padding="SAME",
            dimension_numbers=("NHWC", "HWIO", "NHWC"),
            preferred_element_type=jnp.float32)
        return jnp.maximum(out + b.reshape(1, 1, 1, -1), 0.0)

    w1, b1 = model.params["conv_1_1"]
    w2, b2 = model.params["conv_1_2"]
    w3, b3 = model.params["conv_2_1"]

    f11 = conv(y, w1, b1)
    f12 = conv(f11, w2, b2)
    n, h, wd, c = f12.shape
    pooled = f12.reshape(n, h // 2, 2, wd // 2, 2, c).max(axis=(2, 4))
    pooled = pooled.astype(jnp.bfloat16).astype(jnp.float32)
    f21 = conv(pooled, w3, b3)

    to_nchw = lambda v: jnp.transpose(v, (0, 3, 1, 2))
    return {"conv_1_1": to_nchw(f11), "conv_1_2": to_nchw(f12),
            "conv_2_1": to_nchw(f21)}


if __name__ == "__main__":
    key = jax.random.PRNGKey(0)
    k_model, k_input = jax.random.split(key)

    # row_tile_cap=8 so the 16x16 test exercises the multi-tile halo path.
    model = VGGPallas(k_model, row_tile_cap=8)

    N, C, H, W = 2, 3, 16, 16
    x = jax.random.uniform(k_input, (N, C, H, W), jnp.float32,
                           minval=-1.0, maxval=1.0)

    fwd = jax.jit(model.__call__)
    feats = jax.block_until_ready(fwd(x))

    # Shapes of the listened features.
    assert feats["conv_1_1"].shape == (N, 64, H, W)
    assert feats["conv_1_2"].shape == (N, 64, H, W)
    assert feats["conv_2_1"].shape == (N, 128, H // 2, W // 2)

    # Numerical check against a pure-JAX reference at matching precision.
    ref = jax.block_until_ready(_reference_forward(x, model))
    for name in ("conv_1_1", "conv_1_2", "conv_2_1"):
        np.testing.assert_allclose(np.asarray(feats[name]),
                                   np.asarray(ref[name]),
                                   rtol=1e-2, atol=1e-3)

    print("KERNEL_OK")
</pallas_src>

<mosaic_0001>
module attributes {stable_mosaic.version = 11 : i64} {
  func.func @_patch_conv_kernel(%arg0: i32, %arg1: i32, %arg2: memref<1x8x16x27xbf16, #tpu.memory_space<vmem>>, %arg3: memref<27x64xbf16, #tpu.memory_space<vmem>>, %arg4: memref<1x64xf32, #tpu.memory_space<vmem>>, %arg5: memref<1x8x16x64xf32, #tpu.memory_space<vmem>>) attributes {dimension_semantics = [#tpu.dimension_semantics<parallel>, #tpu.dimension_semantics<parallel>], iteration_bounds = array<i64: 2, 2>, scalar_prefetch = 0 : i64, scratch_operands = 0 : i64, tpu.core_type = #tpu.core_type<tc>, window_params = [{transform_indices = @transform_0, window_bounds = array<i64: 1, 8, 16, 27>}, {pipeline_mode = #tpu.pipeline_mode<synchronous>, transform_indices = @transform_1, window_bounds = array<i64: 27, 64>}, {pipeline_mode = #tpu.pipeline_mode<synchronous>, transform_indices = @transform_2, window_bounds = array<i64: 1, 64>}, {transform_indices = @transform_3, window_bounds = array<i64: 1, 8, 16, 64>}]} {
    %c0 = arith.constant 0 : index
    %c0_0 = arith.constant 0 : index
    %c0_1 = arith.constant 0 : index
    %c0_2 = arith.constant 0 : index
    %0 = vector.load %arg2[%c0, %c0_0, %c0_1, %c0_2] : memref<1x8x16x27xbf16, #tpu.memory_space<vmem>>, vector<1x8x16x27xbf16>
    %1 = vector.shape_cast %0 : vector<1x8x16x27xbf16> to vector<8x16x27xbf16>
    %2 = vector.shape_cast %1 : vector<8x16x27xbf16> to vector<128x27xbf16>
    %c0_3 = arith.constant 0 : index
    %c0_4 = arith.constant 0 : index
    %3 = vector.load %arg3[%c0_3, %c0_4] : memref<27x64xbf16, #tpu.memory_space<vmem>>, vector<27x64xbf16>
    %cst = arith.constant dense<0.000000e+00> : vector<128x64xf32>
    %4 = tpu.matmul %2, %3, %cst {dimension_numbers = #tpu.dot_dimension_numbers<[1], [0], [0], [1], [0, 0, 1, 1], [], []>} : vector<128x27xbf16>, vector<27x64xbf16>, vector<128x64xf32> -> vector<128x64xf32>
    %c0_5 = arith.constant 0 : index
    %c0_6 = arith.constant 0 : index
    %5 = vector.load %arg4[%c0_5, %c0_6] : memref<1x64xf32, #tpu.memory_space<vmem>>, vector<1x64xf32>
    %6 = vector.broadcast %5 : vector<1x64xf32> to vector<128x64xf32>
    %7 = arith.addf %4, %6 : vector<128x64xf32>
    %cst_7 = arith.constant 0.000000e+00 : f32
    %8 = vector.broadcast %cst_7 : f32 to vector<128x64xf32>
    %9 = arith.maximumf %7, %8 : vector<128x64xf32>
    %10 = vector.shape_cast %9 : vector<128x64xf32> to vector<8x16x64xf32>
    %c0_8 = arith.constant 0 : index
    %c0_9 = arith.constant 0 : index
    %c0_10 = arith.constant 0 : index
    %c0_11 = arith.constant 0 : index
    %11 = vector.load %arg5[%c0_8, %c0_9, %c0_10, %c0_11] : memref<1x8x16x64xf32, #tpu.memory_space<vmem>>, vector<1x8x16x64xf32>
    %12 = vector.shape_cast %11 : vector<1x8x16x64xf32> to vector<8x16x64xf32>
    %13 = vector.shape_cast %10 : vector<8x16x64xf32> to vector<1x8x16x64xf32>
    tpu.vector_store %arg5[%c0_8, %c0_9, %c0_10, %c0_11], %13 {strides = array<i32>} : memref<1x8x16x64xf32, #tpu.memory_space<vmem>>, vector<1x8x16x64xf32>,
    return
  }
  func.func @transform_0(%arg0: i32, %arg1: i32) -> (i32, i32, i32, i32) {
    %c0_i32 = arith.constant 0 : i32
    %c0_i32_0 = arith.constant 0 : i32
    %c0_i32_1 = arith.constant 0 : i32
    return %arg0, %arg1, %c0_i32, %c0_i32_0 : i32, i32, i32, i32
  }
  func.func @transform_1(%arg0: i32, %arg1: i32) -> (i32, i32) {
    %c0_i32 = arith.constant 0 : i32
    %c0_i32_0 = arith.constant 0 : i32
    %c0_i32_1 = arith.constant 0 : i32
    return %c0_i32, %c0_i32_0 : i32, i32
  }
  func.func @transform_2(%arg0: i32, %arg1: i32) -> (i32, i32) {
    %c0_i32 = arith.constant 0 : i32
    %c0_i32_0 = arith.constant 0 : i32
    %c0_i32_1 = arith.constant 0 : i32
    return %c0_i32, %c0_i32_0 : i32, i32
  }
  func.func @transform_3(%arg0: i32, %arg1: i32) -> (i32, i32, i32, i32) {
    %c0_i32 = arith.constant 0 : i32
    %c0_i32_0 = arith.constant 0 : i32
    %c0_i32_1 = arith.constant 0 : i32
    return %arg0, %arg1, %c0_i32, %c0_i32_0 : i32, i32, i32, i32
  }
}

module attributes {stable_mosaic.version = 11 : i64} {
  func.func @kernel(%arg0: i32, %arg1: i32, %arg2: memref<1x1x16x64xf32, #tpu.memory_space<vmem>>, %arg3: memref<1x8x16x64xf32, #tpu.memory_space<vmem>>, %arg4: memref<1x1x16x64xf32, #tpu.memory_space<vmem>>, %arg5: memref<3x192x64xbf16, #tpu.memory_space<vmem>>, %arg6: memref<1x64xf32, #tpu.memory_space<vmem>>, %arg7: memref<1x8x16x64xf32, #tpu.memory_space<vmem>>, %arg8: memref<1x4x8x64xbf16, #tpu.memory_space<vmem>>, %arg9: memref<10x18x64xf32, #tpu.memory_space<vmem>>, %arg10: memref<8x16x192xbf16, #tpu.memory_space<vmem>>, %arg11: memref<4x16x64xf32, #tpu.memory_space<vmem>>) attributes {dimension_semantics = [#tpu.dimension_semantics<parallel>, #tpu.dimension_semantics<parallel>], iteration_bounds = array<i64: 2, 2>, scalar_prefetch = 0 : i64, scratch_operands = 3 : i64, tpu.core_type = #tpu.core_type<tc>, window_params = [{transform_indices = @transform_0, window_bounds = array<i64: 1, 1, 16, 64>}, {transform_indices = @transform_1, window_bounds = array<i64: 1, 8, 16, 64>}, {transform_indices = @transform_2, window_bounds = array<i64: 1, 1, 16, 64>}, {pipeline_mode = #tpu.pipeline_mode<synchronous>, transform_indices = @transform_3, window_bounds = array<i64: 3, 192, 64>}, {pipeline_mode = #tpu.pipeline_mode<synchronous>, transform_indices = @transform_4, window_bounds = array<i64: 1, 64>}, {transform_indices = @transform_5, window_bounds = array<i64: 1, 8, 16, 64>}, {transform_indices = @transform_6, window_bounds = array<i64: 1, 4, 8, 64>}]} {
    %cst = arith.constant 0.000000e+00 : f32
    %0 = vector.broadcast %cst : f32 to vector<10x18x64xf32>
    %c0 = arith.constant 0 : index
    %c0_0 = arith.constant 0 : index
    %c0_1 = arith.constant 0 : index
    %1 = vector.load %arg9[%c0, %c0_0, %c0_1] : memref<10x18x64xf32, #tpu.memory_space<vmem>>, vector<10x18x64xf32>
    tpu.vector_store %arg9[%c0, %c0_0, %c0_1], %0 {strides = array<i32>} : memref<10x18x64xf32, #tpu.memory_space<vmem>>, vector<10x18x64xf32>,
    %c0_2 = arith.constant 0 : index
    %c0_3 = arith.constant 0 : index
    %c0_4 = arith.constant 0 : index
    %c0_5 = arith.constant 0 : index
    %2 = vector.load %arg3[%c0_2, %c0_3, %c0_4, %c0_5] : memref<1x8x16x64xf32, #tpu.memory_space<vmem>>, vector<1x8x16x64xf32>
    %3 = vector.shape_cast %2 : vector<1x8x16x64xf32> to vector<8x16x64xf32>
    %c1 = arith.constant 1 : index
    %c1_6 = arith.constant 1 : index
    %c0_7 = arith.constant 0 : index
    %4 = vector.load %arg9[%c1, %c1_6, %c0_7] : memref<10x18x64xf32, #tpu.memory_space<vmem>>, vector<8x16x64xf32>
    tpu.vector_store %arg9[%c1, %c1_6, %c0_7], %3 {strides = array<i32>} : memref<10x18x64xf32, #tpu.memory_space<vmem>>, vector<8x16x64xf32>,
    %c0_i32 = arith.constant 0 : i32
    %5 = arith.cmpi sgt, %arg1, %c0_i32 : i32
    %c0_8 = arith.constant 0 : index
    %c0_9 = arith.constant 0 : index
    %c0_10 = arith.constant 0 : index
    %c0_11 = arith.constant 0 : index
    %6 = vector.load %arg2[%c0_8, %c0_9, %c0_10, %c0_11] : memref<1x1x16x64xf32, #tpu.memory_space<vmem>>, vector<1x1x16x64xf32>
    %7 = vector.shape_cast %6 : vector<1x1x16x64xf32> to vector<16x64xf32>
    %cst_12 = arith.constant 0.000000e+00 : f32
    %8 = vector.broadcast %cst_12 : f32 to vector<16x64xf32>
    %9 = arith.select %5, %7, %8 : vector<16x64xf32>
    %c1_i32 = arith.constant 1 : i32
    %10 = arith.cmpi slt, %arg1, %c1_i32 : i32
    %c0_13 = arith.constant 0 : index
    %c0_14 = arith.constant 0 : index
    %c0_15 = arith.constant 0 : index
    %c0_16 = arith.constant 0 : index
    %11 = vector.load %arg4[%c0_13, %c0_14, %c0_15, %c0_16] : memref<1x1x16x64xf32, #tpu.memory_space<vmem>>, vector<1x1x16x64xf32>
    %12 = vector.shape_cast %11 : vector<1x1x16x64xf32> to vector<16x64xf32>
    %cst_17 = arith.constant 0.000000e+00 : f32
    %13 = vector.broadcast %cst_17 : f32 to vector<16x64xf32>
    %14 = arith.select %10, %12, %13 : vector<16x64xf32>
    %c0_18 = arith.constant 0 : index
    %c1_19 = arith.constant 1 : index
    %c0_20 = arith.constant 0 : index
    %15 = vector.load %arg9[%c0_18, %c1_19, %c0_20] : memref<10x18x64xf32, #tpu.memory_space<vmem>>, vector<1x16x64xf32>
    %16 = vector.shape_cast %15 : vector<1x16x64xf32> to vector<16x64xf32>
    %17 = vector.shape_cast %9 : vector<16x64xf32> to vector<1x16x64xf32>
    tpu.vector_store %arg9[%c0_18, %c1_19, %c0_20], %17 {strides = array<i32>} : memref<10x18x64xf32, #tpu.memory_space<vmem>>, vector<1x16x64xf32>,
    %c9 = arith.constant 9 : index
    %c1_21 = arith.constant 1 : index
    %c0_22 = arith.constant 0 : index
    %18 = vector.load %arg9[%c9, %c1_21, %c0_22] : memref<10x18x64xf32, #tpu.memory_space<vmem>>, vector<1x16x64xf32>
    %19 = vector.shape_cast %18 : vector<1x16x64xf32> to vector<16x64xf32>
    %20 = vector.shape_cast %14 : vector<16x64xf32> to vector<1x16x64xf32>
    tpu.vector_store %arg9[%c9, %c1_21, %c0_22], %20 {strides = array<i32>} : memref<10x18x64xf32, #tpu.memory_space<vmem>>, vector<1x16x64xf32>,
    %cst_23 = arith.constant 0.000000e+00 : f32
    %21 = vector.broadcast %cst_23 : f32 to vector<128x64xf32>
    %c0_24 = arith.constant 0 : index
    %c0_25 = arith.constant 0 : index
    %c0_26 = arith.constant 0 : index
    %22 = vector.load %arg9[%c0_24, %c0_25, %c0_26] : memref<10x18x64xf32, #tpu.memory_space<vmem>>, vector<8x16x64xf32>
    %23 = arith.truncf %22 : vector<8x16x64xf32> to vector<8x16x64xbf16>
    %c0_27 = arith.constant 0 : index
    %c0_28 = arith.constant 0 : index
    %c0_29 = arith.constant 0 : index
    %24 = vector.load %arg10[%c0_27, %c0_28, %c0_29] : memref<8x16x192xbf16, #tpu.memory_space<vmem>>, vector<8x16x64xbf16>
    tpu.vector_store %arg10[%c0_27, %c0_28, %c0_29], %23 {strides = array<i32>} : memref<8x16x192xbf16, #tpu.memory_space<vmem>>, vector<8x16x64xbf16>,
    %c0_30 = arith.constant 0 : index
    %c1_31 = arith.constant 1 : index
    %c0_32 = arith.constant 0 : index
    %25 = vector.load %arg9[%c0_30, %c1_31, %c0_32] : memref<10x18x64xf32, #tpu.memory_space<vmem>>, vector<8x16x64xf32>
    %26 = arith.truncf %25 : vector<8x16x64xf32> to vector<8x16x64xbf16>
    %c0_33 = arith.constant 0 : index
    %c0_34 = arith.constant 0 : index
    %c64 = arith.constant 64 : index
    %27 = vector.load %arg10[%c0_33, %c0_34, %c64] : memref<8x16x192xbf16, #tpu.memory_space<vmem>>, vector<8x16x64xbf16>
    tpu.vector_store %arg10[%c0_33, %c0_34, %c64], %26 {strides = array<i32>} : memref<8x16x192xbf16, #tpu.memory_space<vmem>>, vector<8x16x64xbf16>,
    %c0_35 = arith.constant 0 : index
    %c2 = arith.constant 2 : index
    %c0_36 = arith.constant 0 : index
    %28 = vector.load %arg9[%c0_35, %c2, %c0_36] : memref<10x18x64xf32, #tpu.memory_space<vmem>>, vector<8x16x64xf32>
    %29 = arith.truncf %28 : vector<8x16x64xf32> to vector<8x16x64xbf16>
    %c0_37 = arith.constant 0 : index
    %c0_38 = arith.constant 0 : index
    %c128 = arith.constant 128 : index
    %30 = vector.load %arg10[%c0_37, %c0_38, %c128] : memref<8x16x192xbf16, #tpu.memory_space<vmem>>, vector<8x16x64xbf16>
    tpu.vector_store %arg10[%c0_37, %c0_38, %c128], %29 {strides = array<i32>} : memref<8x16x192xbf16, #tpu.memory_space<vmem>>, vector<8x16x64xbf16>,
    %c0_39 = arith.constant 0 : index
    %c0_40 = arith.constant 0 : index
    %c0_41 = arith.constant 0 : index
    %31 = vector.load %arg10[%c0_39, %c0_40, %c0_41] : memref<8x16x192xbf16, #tpu.memory_space<vmem>>, vector<8x16x192xbf16>
    %32 = vector.shape_cast %31 : vector<8x16x192xbf16> to vector<128x192xbf16>
    %c0_42 = arith.constant 0 : index
    %c0_43 = arith.constant 0 : index
    %c0_44 = arith.constant 0 : index
    %33 = vector.load %arg5[%c0_42, %c0_43, %c0_44] : memref<3x192x64xbf16, #tpu.memory_space<vmem>>, vector<1x192x64xbf16>
    %34 = vector.shape_cast %33 : vector<1x192x64xbf16> to vector<192x64xbf16>
    %cst_45 = arith.constant dense<0.000000e+00> : vector<128x64xf32>
    %35 = tpu.matmul %32, %34, %cst_45 {dimension_numbers = #tpu.dot_dimension_numbers<[1], [0], [0], [1], [0, 0, 1, 1], [], []>} : vector<128x192xbf16>, vector<192x64xbf16>, vector<128x64xf32> -> vector<128x64xf32>
    %36 = arith.addf %21, %35 : vector<128x64xf32>
    %c1_46 = arith.constant 1 : index
    %c0_47 = arith.constant 0 : index
    %c0_48 = arith.constant 0 : index
    %37 = vector.load %arg9[%c1_46, %c0_47, %c0_48] : memref<10x18x64xf32, #tpu.memory_space<vmem>>, vector<8x16x64xf32>
    %38 = arith.truncf %37 : vector<8x16x64xf32> to vector<8x16x64xbf16>
    %c0_49 = arith.constant 0 : index
    %c0_50 = arith.constant 0 : index
    %c0_51 = arith.constant 0 : index
    %39 = vector.load %arg10[%c0_49, %c0_50, %c0_51] : memref<8x16x192xbf16, #tpu.memory_space<vmem>>, vector<8x16x64xbf16>
    tpu.vector_store %arg10[%c0_49, %c0_50, %c0_51], %38 {strides = array<i32>} : memref<8x16x192xbf16, #tpu.memory_space<vmem>>, vector<8x16x64xbf16>,
    %c1_52 = arith.constant 1 : index
    %c1_53 = arith.constant 1 : index
    %c0_54 = arith.constant 0 : index
    %40 = vector.load %arg9[%c1_52, %c1_53, %c0_54] : memref<10x18x64xf32, #tpu.memory_space<vmem>>, vector<8x16x64xf32>
    %41 = arith.truncf %40 : vector<8x16x64xf32> to vector<8x16x64xbf16>
    %c0_55 = arith.constant 0 : index
    %c0_56 = arith.constant 0 : index
    %c64_57 = arith.constant 64 : index
    %42 = vector.load %arg10[%c0_55, %c0_56, %c64_57] : memref<8x16x192xbf16, #tpu.memory_space<vmem>>, vector<8x16x64xbf16>
    tpu.vector_store %arg10[%c0_55, %c0_56, %c64_57], %41 {strides = array<i32>} : memref<8x16x192xbf16, #tpu.memory_space<vmem>>, vector<8x16x64xbf16>,
    %c1_58 = arith.constant 1 : index
    %c2_59 = arith.constant 2 : index
    %c0_60 = arith.constant 0 : index
    %43 = vector.load %arg9[%c1_58, %c2_59, %c0_60] : memref<10x18x64xf32, #tpu.memory_space<vmem>>, vector<8x16x64xf32>
    %44 = arith.truncf %43 : vector<8x16x64xf32> to vector<8x16x64xbf16>
    %c0_61 = arith.constant 0 : index
    %c0_62 = arith.constant 0 : index
    %c128_63 = arith.constant 128 : index
    %45 = vector.load %arg10[%c0_61, %c0_62, %c128_63] : memref<8x16x192xbf16, #tpu.memory_space<vmem>>, vector<8x16x64xbf16>
    tpu.vector_store %arg10[%c0_61, %c0_62, %c128_63], %44 {strides = array<i32>} : memref<8x16x192xbf16, #tpu.memory_space<vmem>>, vector<8x16x64xbf16>,
    %c0_64 = arith.constant 0 : index
    %c0_65 = arith.constant 0 : index
    %c0_66 = arith.constant 0 : index
    %46 = vector.load %arg10[%c0_64, %c0_65, %c0_66] : memref<8x16x192xbf16, #tpu.memory_space<vmem>>, vector<8x16x192xbf16>
    %47 = vector.shape_cast %46 : vector<8x16x192xbf16> to vector<128x192xbf16>
    %c1_67 = arith.constant 1 : index
    %c0_68 = arith.constant 0 : index
    %c0_69 = arith.constant 0 : index
    %48 = vector.load %arg5[%c1_67, %c0_68, %c0_69] : memref<3x192x64xbf16, #tpu.memory_space<vmem>>, vector<1x192x64xbf16>
    %49 = vector.shape_cast %48 : vector<1x192x64xbf16> to vector<192x64xbf16>
    %cst_70 = arith.constant dense<0.000000e+00> : vector<128x64xf32>
    %50 = tpu.matmul %47, %49, %cst_70 {dimension_numbers = #tpu.dot_dimension_numbers<[1], [0], [0], [1], [0, 0, 1, 1], [], []>} : vector<128x192xbf16>, vector<192x64xbf16>, vector<128x64xf32> -> vector<128x64xf32>
    %51 = arith.addf %36, %50 : vector<128x64xf32>
    %c2_71 = arith.constant 2 : index
    %c0_72 = arith.constant 0 : index
    %c0_73 = arith.constant 0 : index
    %52 = vector.load %arg9[%c2_71, %c0_72, %c0_73] : memref<10x18x64xf32, #tpu.memory_space<vmem>>, vector<8x16x64xf32>
    %53 = arith.truncf %52 : vector<8x16x64xf32> to vector<8x16x64xbf16>
    %c0_74 = arith.constant 0 : index
    %c0_75 = arith.constant 0 : index
    %c0_76 = arith.constant 0 : index
    %54 = vector.load %arg10[%c0_74, %c0_75, %c0_76] : memref<8x16x192xbf16, #tpu.memory_space<vmem>>, vector<8x16x64xbf16>
    tpu.vector_store %arg10[%c0_74, %c0_75, %c0_76], %53 {strides = array<i32>} : memref<8x16x192xbf16, #tpu.memory_space<vmem>>, vector<8x16x64xbf16>,
    %c2_77 = arith.constant 2 : index
    %c1_78 = arith.constant 1 : index
    %c0_79 = arith.constant 0 : index
    %55 = vector.load %arg9[%c2_77, %c1_78, %c0_79] : memref<10x18x64xf32, #tpu.memory_space<vmem>>, vector<8x16x64xf32>
    %56 = arith.truncf %55 : vector<8x16x64xf32> to vector<8x16x64xbf16>
    %c0_80 = arith.constant 0 : index
    %c0_81 = arith.constant 0 : index
    %c64_82 = arith.constant 64 : index
    %57 = vector.load %arg10[%c0_80, %c0_81, %c64_82] : memref<8x16x192xbf16, #tpu.memory_space<vmem>>, vector<8x16x64xbf16>
    tpu.vector_store %arg10[%c0_80, %c0_81, %c64_82], %56 {strides = array<i32>} : memref<8x16x192xbf16, #tpu.memory_space<vmem>>, vector<8x16x64xbf16>,
    %c2_83 = arith.constant 2 : index
    %c2_84 = arith.constant 2 : index
    %c0_85 = arith.constant 0 : index
    %58 = vector.load %arg9[%c2_83, %c2_84, %c0_85] : memref<10x18x64xf32, #tpu.memory_space<vmem>>, vector<8x16x64xf32>
    %59 = arith.truncf %58 : vector<8x16x64xf32> to vector<8x16x64xbf16>
    %c0_86 = arith.constant 0 : index
    %c0_87 = arith.constant 0 : index
    %c128_88 = arith.constant 128 : index
    %60 = vector.load %arg10[%c0_86, %c0_87, %c128_88] : memref<8x16x192xbf16, #tpu.memory_space<vmem>>, vector<8x16x64xbf16>
    tpu.vector_store %arg10[%c0_86, %c0_87, %c128_88], %59 {strides = array<i32>} : memref<8x16x192xbf16, #tpu.memory_space<vmem>>, vector<8x16x64xbf16>,
    %c0_89 = arith.constant 0 : index
    %c0_90 = arith.constant 0 : index
    %c0_91 = arith.constant 0 : index
    %61 = vector.load %arg10[%c0_89, %c0_90, %c0_91] : memref<8x16x192xbf16, #tpu.memory_space<vmem>>, vector<8x16x192xbf16>
    %62 = vector.shape_cast %61 : vector<8x16x192xbf16> to vector<128x192xbf16>
    %c2_92 = arith.constant 2 : index
    %c0_93 = arith.constant 0 : index
    %c0_94 = arith.constant 0 : index
    %63 = vector.load %arg5[%c2_92, %c0_93, %c0_94] : memref<3x192x64xbf16, #tpu.memory_space<vmem>>, vector<1x192x64xbf16>
    %64 = vector.shape_cast %63 : vector<1x192x64xbf16> to vector<192x64xbf16>
    %cst_95 = arith.constant dense<0.000000e+00> : vector<128x64xf32>
    %65 = tpu.matmul %62, %64, %cst_95 {dimension_numbers = #tpu.dot_dimension_numbers<[1], [0], [0], [1], [0, 0, 1, 1], [], []>} : vector<128x192xbf16>, vector<192x64xbf16>, vector<128x64xf32> -> vector<128x64xf32>
    %66 = arith.addf %51, %65 : vector<128x64xf32>
    %c0_96 = arith.constant 0 : index
    %c0_97 = arith.constant 0 : index
    %67 = vector.load %arg6[%c0_96, %c0_97] : memref<1x64xf32, #tpu.memory_space<vmem>>, vector<1x64xf32>
    %68 = vector.broadcast %67 : vector<1x64xf32> to vector<128x64xf32>
    %69 = arith.addf %66, %68 : vector<128x64xf32>
    %cst_98 = arith.constant 0.000000e+00 : f32
    %70 = vector.broadcast %cst_98 : f32 to vector<128x64xf32>
    %71 = arith.maximumf %69, %70 : vector<128x64xf32>
    %72 = vector.shape_cast %71 : vector<128x64xf32> to vector<8x16x64xf32>
    %c0_99 = arith.constant 0 : index
    %c0_100 = arith.constant 0 : index
    %c0_101 = arith.constant 0 : index
    %c0_102 = arith.constant 0 : index
    %73 = vector.load %arg7[%c0_99, %c0_100, %c0_101, %c0_102] : memref<1x8x16x64xf32, #tpu.memory_space<vmem>>, vector<1x8x16x64xf32>
    %74 = vector.shape_cast %73 : vector<1x8x16x64xf32> to vector<8x16x64xf32>
    %75 = vector.shape_cast %72 : vector<8x16x64xf32> to vector<1x8x16x64xf32>
    tpu.vector_store %arg7[%c0_99, %c0_100, %c0_101, %c0_102], %75 {strides = array<i32>} : memref<1x8x16x64xf32, #tpu.memory_space<vmem>>, vector<1x8x16x64xf32>,
    %c0_i32_103 = arith.constant 0 : i32
    %c0_i32_104 = arith.constant 0 : i32
    %c0_i32_105 = arith.constant 0 : i32
    %c0_i32_106 = arith.constant 0 : i32
    %76 = tpu.memref_slice %arg7[%c0_i32_103, %c0_i32_104, %c0_i32_105, %c0_i32_106] : memref<1x8x16x64xf32, #tpu.memory_space<vmem>> -> memref<1x8x16x64xf32, #tpu.memory_space<vmem>>
    %77 = tpu.memref_squeeze %76 : memref<1x8x16x64xf32, #tpu.memory_space<vmem>> -> memref<8x16x64xf32, #tpu.memory_space<vmem>>
    %c0_107 = arith.constant 0 : index
    %c0_108 = arith.constant 0 : index
    %c0_109 = arith.constant 0 : index
    %78 = tpu.strided_load %77[%c0_107, %c0_108, %c0_109] {strides = array<i32: 2, 1, 1>} : memref<8x16x64xf32, #tpu.memory_space<vmem>>, vector<4x16x64xf32>
    %c0_i32_110 = arith.constant 0 : i32
    %c0_i32_111 = arith.constant 0 : i32
    %c0_i32_112 = arith.constant 0 : i32
    %c0_i32_113 = arith.constant 0 : i32
    %79 = tpu.memref_slice %arg7[%c0_i32_110, %c0_i32_111, %c0_i32_112, %c0_i32_113] : memref<1x8x16x64xf32, #tpu.memory_space<vmem>> -> memref<1x8x16x64xf32, #tpu.memory_space<vmem>>
    %80 = tpu.memref_squeeze %79 : memref<1x8x16x64xf32, #tpu.memory_space<vmem>> -> memref<8x16x64xf32, #tpu.memory_space<vmem>>
    %c1_114 = arith.constant 1 : index
    %c0_115 = arith.constant 0 : index
    %c0_116 = arith.constant 0 : index
    %81 = tpu.strided_load %80[%c1_114, %c0_115, %c0_116] {strides = array<i32: 2, 1, 1>} : memref<8x16x64xf32, #tpu.memory_space<vmem>>, vector<4x16x64xf32>
    %82 = arith.maximumf %78, %81 : vector<4x16x64xf32>
    %c0_117 = arith.constant 0 : index
    %c0_118 = arith.constant 0 : index
    %c0_119 = arith.constant 0 : index
    %83 = vector.load %arg11[%c0_117, %c0_118, %c0_119] : memref<4x16x64xf32, #tpu.memory_space<vmem>>, vector<4x16x64xf32>
    tpu.vector_store %arg11[%c0_117, %c0_118, %c0_119], %82 {strides = array<i32>} : memref<4x16x64xf32, #tpu.memory_space<vmem>>, vector<4x16x64xf32>,
    %c0_120 = arith.constant 0 : index
    %c0_121 = arith.constant 0 : index
    %c0_122 = arith.constant 0 : index
    %84 = tpu.strided_load %arg11[%c0_120, %c0_121, %c0_122] {strides = array<i32: 1, 2, 1>} : memref<4x16x64xf32, #tpu.memory_space<vmem>>, vector<4x8x64xf32>
    %c0_123 = arith.constant 0 : index
    %c1_124 = arith.constant 1 : index
    %c0_125 = arith.constant 0 : index
    %85 = tpu.strided_load %arg11[%c0_123, %c1_124, %c0_125] {strides = array<i32: 1, 2, 1>} : memref<4x16x64xf32, #tpu.memory_space<vmem>>, vector<4x8x64xf32>
    %86 = arith.maximumf %84, %85 : vector<4x8x64xf32>
    %87 = arith.truncf %86 : vector<4x8x64xf32> to vector<4x8x64xbf16>
    %c0_126 = arith.constant 0 : index
    %c0_127 = arith.constant 0 : index
    %c0_128 = arith.constant 0 : index
    %c0_129 = arith.constant 0 : index
    %88 = vector.load %arg8[%c0_126, %c0_127, %c0_128, %c0_129] : memref<1x4x8x64xbf16, #tpu.memory_space<vmem>>, vector<1x4x8x64xbf16>
    %89 = vector.shape_cast %88 : vector<1x4x8x64xbf16> to vector<4x8x64xbf16>
    %90 = vector.shape_cast %87 : vector<4x8x64xbf16> to vector<1x4x8x64xbf16>
    tpu.vector_store %arg8[%c0_126, %c0_127, %c0_128, %c0_129], %90 {strides = array<i32>} : memref<1x4x8x64xbf16, #tpu.memory_space<vmem>>, vector<1x4x8x64xbf16>,
    return
  }
  func.func @transform_0(%arg0: i32, %arg1: i32) -> (i32, i32, i32, i32) {
    %c8_i32 = arith.constant 8 : i32
    %0 = arith.muli %arg1, %c8_i32 : i32
    %c1_i32 = arith.constant 1 : i32
    %1 = arith.subi %0, %c1_i32 : i32
    %c0_i32 = arith.constant 0 : i32
    %2 = arith.maxsi %1, %c0_i32 : i32
    %c0_i32_0 = arith.constant 0 : i32
    %c0_i32_1 = arith.constant 0 : i32
    %c0_i32_2 = arith.constant 0 : i32
    return %arg0, %2, %c0_i32_0, %c0_i32_1 : i32, i32, i32, i32
  }
  func.func @transform_1(%arg0: i32, %arg1: i32) -> (i32, i32, i32, i32) {
    %c0_i32 = arith.constant 0 : i32
    %c0_i32_0 = arith.constant 0 : i32
    %c0_i32_1 = arith.constant 0 : i32
    return %arg0, %arg1, %c0_i32, %c0_i32_0 : i32, i32, i32, i32
  }
  func.func @transform_2(%arg0: i32, %arg1: i32) -> (i32, i32, i32, i32) {
    %c8_i32 = arith.constant 8 : i32
    %0 = arith.muli %arg1, %c8_i32 : i32
    %c8_i32_0 = arith.constant 8 : i32
    %1 = arith.addi %0, %c8_i32_0 : i32
    %c15_i32 = arith.constant 15 : i32
    %2 = arith.minsi %1, %c15_i32 : i32
    %c0_i32 = arith.constant 0 : i32
    %c0_i32_1 = arith.constant 0 : i32
    %c0_i32_2 = arith.constant 0 : i32
    return %arg0, %2, %c0_i32, %c0_i32_1 : i32, i32, i32, i32
  }
  func.func @transform_3(%arg0: i32, %arg1: i32) -> (i32, i32, i32) {
    %c0_i32 = arith.constant 0 : i32
    %c0_i32_0 = arith.constant 0 : i32
    %c0_i32_1 = arith.constant 0 : i32
    %c0_i32_2 = arith.constant 0 : i32
    return %c0_i32, %c0_i32_0, %c0_i32_1 : i32, i32, i32
  }
  func.func @transform_4(%arg0: i32, %arg1: i32) -> (i32, i32) {
    %c0_i32 = arith.constant 0 : i32
    %c0_i32_0 = arith.constant 0 : i32
    %c0_i32_1 = arith.constant 0 : i32
    return %c0_i32, %c0_i32_0 : i32, i32
  }
  func.func @transform_5(%arg0: i32, %arg1: i32) -> (i32, i32, i32, i32) {
    %c0_i32 = arith.constant 0 : i32
    %c0_i32_0 = arith.constant 0 : i32
    %c0_i32_1 = arith.constant 0 : i32
    return %arg0, %arg1, %c0_i32, %c0_i32_0 : i32, i32, i32, i32
  }
  func.func @transform_6(%arg0: i32, %arg1: i32) -> (i32, i32, i32, i32) {
    %c0_i32 = arith.constant 0 : i32
    %c0_i32_0 = arith.constant 0 : i32
    %c0_i32_1 = arith.constant 0 : i32
    return %arg0, %arg1, %c0_i32, %c0_i32_0 : i32, i32, i32, i32
  }
}

module attributes {stable_mosaic.version = 11 : i64} {
  func.func @kernel(%arg0: i32, %arg1: i32, %arg2: memref<1x1x8x64xbf16, #tpu.memory_space<vmem>>, %arg3: memref<1x8x8x64xbf16, #tpu.memory_space<vmem>>, %arg4: memref<1x1x8x64xbf16, #tpu.memory_space<vmem>>, %arg5: memref<3x192x128xbf16, #tpu.memory_space<vmem>>, %arg6: memref<1x128xf32, #tpu.memory_space<vmem>>, %arg7: memref<1x8x8x128xf32, #tpu.memory_space<vmem>>, %arg8: memref<10x10x64xf32, #tpu.memory_space<vmem>>, %arg9: memref<8x8x192xbf16, #tpu.memory_space<vmem>>) attributes {dimension_semantics = [#tpu.dimension_semantics<parallel>, #tpu.dimension_semantics<parallel>], iteration_bounds = array<i64: 2, 1>, scalar_prefetch = 0 : i64, scratch_operands = 2 : i64, tpu.core_type = #tpu.core_type<tc>, window_params = [{transform_indices = @transform_0, window_bounds = array<i64: 1, 1, 8, 64>}, {transform_indices = @transform_1, window_bounds = array<i64: 1, 8, 8, 64>}, {transform_indices = @transform_2, window_bounds = array<i64: 1, 1, 8, 64>}, {pipeline_mode = #tpu.pipeline_mode<synchronous>, transform_indices = @transform_3, window_bounds = array<i64: 3, 192, 128>}, {pipeline_mode = #tpu.pipeline_mode<synchronous>, transform_indices = @transform_4, window_bounds = array<i64: 1, 128>}, {transform_indices = @transform_5, window_bounds = array<i64: 1, 8, 8, 128>}]} {
    %cst = arith.constant 0.000000e+00 : f32
    %0 = vector.broadcast %cst : f32 to vector<10x10x64xf32>
    %c0 = arith.constant 0 : index
    %c0_0 = arith.constant 0 : index
    %c0_1 = arith.constant 0 : index
    %1 = vector.load %arg8[%c0, %c0_0, %c0_1] : memref<10x10x64xf32, #tpu.memory_space<vmem>>, vector<10x10x64xf32>
    tpu.vector_store %arg8[%c0, %c0_0, %c0_1], %0 {strides = array<i32>} : memref<10x10x64xf32, #tpu.memory_space<vmem>>, vector<10x10x64xf32>,
    %c0_2 = arith.constant 0 : index
    %c0_3 = arith.constant 0 : index
    %c0_4 = arith.constant 0 : index
    %c0_5 = arith.constant 0 : index
    %2 = vector.load %arg3[%c0_2, %c0_3, %c0_4, %c0_5] : memref<1x8x8x64xbf16, #tpu.memory_space<vmem>>, vector<1x8x8x64xbf16>
    %3 = vector.shape_cast %2 : vector<1x8x8x64xbf16> to vector<8x8x64xbf16>
    %4 = arith.extf %3 : vector<8x8x64xbf16> to vector<8x8x64xf32>
    %c1 = arith.constant 1 : index
    %c1_6 = arith.constant 1 : index
    %c0_7 = arith.constant 0 : index
    %5 = vector.load %arg8[%c1, %c1_6, %c0_7] : memref<10x10x64xf32, #tpu.memory_space<vmem>>, vector<8x8x64xf32>
    tpu.vector_store %arg8[%c1, %c1_6, %c0_7], %4 {strides = array<i32>} : memref<10x10x64xf32, #tpu.memory_space<vmem>>, vector<8x8x64xf32>,
    %c0_i32 = arith.constant 0 : i32
    %6 = arith.cmpi sgt, %arg1, %c0_i32 : i32
    %c0_8 = arith.constant 0 : index
    %c0_9 = arith.constant 0 : index
    %c0_10 = arith.constant 0 : index
    %c0_11 = arith.constant 0 : index
    %7 = vector.load %arg2[%c0_8, %c0_9, %c0_10, %c0_11] : memref<1x1x8x64xbf16, #tpu.memory_space<vmem>>, vector<1x1x8x64xbf16>
    %8 = vector.shape_cast %7 : vector<1x1x8x64xbf16> to vector<8x64xbf16>
    %cst_12 = arith.constant 0.000000e+00 : f32
    %9 = arith.truncf %cst_12 : f32 to bf16
    %10 = vector.broadcast %9 : bf16 to vector<8x64xbf16>
    %11 = arith.select %6, %8, %10 : vector<8x64xbf16>
    %12 = arith.extf %11 : vector<8x64xbf16> to vector<8x64xf32>
    %c0_i32_13 = arith.constant 0 : i32
    %13 = arith.cmpi slt, %arg1, %c0_i32_13 : i32
    %c0_14 = arith.constant 0 : index
    %c0_15 = arith.constant 0 : index
    %c0_16 = arith.constant 0 : index
    %c0_17 = arith.constant 0 : index
    %14 = vector.load %arg4[%c0_14, %c0_15, %c0_16, %c0_17] : memref<1x1x8x64xbf16, #tpu.memory_space<vmem>>, vector<1x1x8x64xbf16>
    %15 = vector.shape_cast %14 : vector<1x1x8x64xbf16> to vector<8x64xbf16>
    %cst_18 = arith.constant 0.000000e+00 : f32
    %16 = arith.truncf %cst_18 : f32 to bf16
    %17 = vector.broadcast %16 : bf16 to vector<8x64xbf16>
    %18 = arith.select %13, %15, %17 : vector<8x64xbf16>
    %19 = arith.extf %18 : vector<8x64xbf16> to vector<8x64xf32>
    %c0_19 = arith.constant 0 : index
    %c1_20 = arith.constant 1 : index
    %c0_21 = arith.constant 0 : index
    %20 = vector.load %arg8[%c0_19, %c1_20, %c0_21] : memref<10x10x64xf32, #tpu.memory_space<vmem>>, vector<1x8x64xf32>
    %21 = vector.shape_cast %20 : vector<1x8x64xf32> to vector<8x64xf32>
    %22 = vector.shape_cast %12 : vector<8x64xf32> to vector<1x8x64xf32>
    tpu.vector_store %arg8[%c0_19, %c1_20, %c0_21], %22 {strides = array<i32>} : memref<10x10x64xf32, #tpu.memory_space<vmem>>, vector<1x8x64xf32>,
    %c9 = arith.constant 9 : index
    %c1_22 = arith.constant 1 : index
    %c0_23 = arith.constant 0 : index
    %23 = vector.load %arg8[%c9, %c1_22, %c0_23] : memref<10x10x64xf32, #tpu.memory_space<vmem>>, vector<1x8x64xf32>
    %24 = vector.shape_cast %23 : vector<1x8x64xf32> to vector<8x64xf32>
    %25 = vector.shape_cast %19 : vector<8x64xf32> to vector<1x8x64xf32>
    tpu.vector_store %arg8[%c9, %c1_22, %c0_23], %25 {strides = array<i32>} : memref<10x10x64xf32, #tpu.memory_space<vmem>>, vector<1x8x64xf32>,
    %cst_24 = arith.constant 0.000000e+00 : f32
    %26 = vector.broadcast %cst_24 : f32 to vector<64x128xf32>
    %c0_25 = arith.constant 0 : index
    %c0_26 = arith.constant 0 : index
    %c0_27 = arith.constant 0 : index
    %27 = vector.load %arg8[%c0_25, %c0_26, %c0_27] : memref<10x10x64xf32, #tpu.memory_space<vmem>>, vector<8x8x64xf32>
    %28 = arith.truncf %27 : vector<8x8x64xf32> to vector<8x8x64xbf16>
    %c0_28 = arith.constant 0 : index
    %c0_29 = arith.constant 0 : index
    %c0_30 = arith.constant 0 : index
    %29 = vector.load %arg9[%c0_28, %c0_29, %c0_30] : memref<8x8x192xbf16, #tpu.memory_space<vmem>>, vector<8x8x64xbf16>
    tpu.vector_store %arg9[%c0_28, %c0_29, %c0_30], %28 {strides = array<i32>} : memref<8x8x192xbf16, #tpu.memory_space<vmem>>, vector<8x8x64xbf16>,
    %c0_31 = arith.constant 0 : index
    %c1_32 = arith.constant 1 : index
    %c0_33 = arith.constant 0 : index
    %30 = vector.load %arg8[%c0_31, %c1_32, %c0_33] : memref<10x10x64xf32, #tpu.memory_space<vmem>>, vector<8x8x64xf32>
    %31 = arith.truncf %30 : vector<8x8x64xf32> to vector<8x8x64xbf16>
    %c0_34 = arith.constant 0 : index
    %c0_35 = arith.constant 0 : index
    %c64 = arith.constant 64 : index
    %32 = vector.load %arg9[%c0_34, %c0_35, %c64] : memref<8x8x192xbf16, #tpu.memory_space<vmem>>, vector<8x8x64xbf16>
    tpu.vector_store %arg9[%c0_34, %c0_35, %c64], %31 {strides = array<i32>} : memref<8x8x192xbf16, #tpu.memory_space<vmem>>, vector<8x8x64xbf16>,
    %c0_36 = arith.constant 0 : index
    %c2 = arith.constant 2 : index
    %c0_37 = arith.constant 0 : index
    %33 = vector.load %arg8[%c0_36, %c2, %c0_37] : memref<10x10x64xf32, #tpu.memory_space<vmem>>, vector<8x8x64xf32>
    %34 = arith.truncf %33 : vector<8x8x64xf32> to vector<8x8x64xbf16>
    %c0_38 = arith.constant 0 : index
    %c0_39 = arith.constant 0 : index
    %c128 = arith.constant 128 : index
    %35 = vector.load %arg9[%c0_38, %c0_39, %c128] : memref<8x8x192xbf16, #tpu.memory_space<vmem>>, vector<8x8x64xbf16>
    tpu.vector_store %arg9[%c0_38, %c0_39, %c128], %34 {strides = array<i32>} : memref<8x8x192xbf16, #tpu.memory_space<vmem>>, vector<8x8x64xbf16>,
    %c0_40 = arith.constant 0 : index
    %c0_41 = arith.constant 0 : index
    %c0_42 = arith.constant 0 : index
    %36 = vector.load %arg9[%c0_40, %c0_41, %c0_42] : memref<8x8x192xbf16, #tpu.memory_space<vmem>>, vector<8x8x192xbf16>
    %37 = vector.shape_cast %36 : vector<8x8x192xbf16> to vector<64x192xbf16>
    %c0_43 = arith.constant 0 : index
    %c0_44 = arith.constant 0 : index
    %c0_45 = arith.constant 0 : index
    %38 = vector.load %arg5[%c0_43, %c0_44, %c0_45] : memref<3x192x128xbf16, #tpu.memory_space<vmem>>, vector<1x192x128xbf16>
    %39 = vector.shape_cast %38 : vector<1x192x128xbf16> to vector<192x128xbf16>
    %cst_46 = arith.constant dense<0.000000e+00> : vector<64x128xf32>
    %40 = tpu.matmul %37, %39, %cst_46 {dimension_numbers = #tpu.dot_dimension_numbers<[1], [0], [0], [1], [0, 0, 1, 1], [], []>} : vector<64x192xbf16>, vector<192x128xbf16>, vector<64x128xf32> -> vector<64x128xf32>
    %41 = arith.addf %26, %40 : vector<64x128xf32>
    %c1_47 = arith.constant 1 : index
    %c0_48 = arith.constant 0 : index
    %c0_49 = arith.constant 0 : index
    %42 = vector.load %arg8[%c1_47, %c0_48, %c0_49] : memref<10x10x64xf32, #tpu.memory_space<vmem>>, vector<8x8x64xf32>
    %43 = arith.truncf %42 : vector<8x8x64xf32> to vector<8x8x64xbf16>
    %c0_50 = arith.constant 0 : index
    %c0_51 = arith.constant 0 : index
    %c0_52 = arith.constant 0 : index
    %44 = vector.load %arg9[%c0_50, %c0_51, %c0_52] : memref<8x8x192xbf16, #tpu.memory_space<vmem>>, vector<8x8x64xbf16>
    tpu.vector_store %arg9[%c0_50, %c0_51, %c0_52], %43 {strides = array<i32>} : memref<8x8x192xbf16, #tpu.memory_space<vmem>>, vector<8x8x64xbf16>,
    %c1_53 = arith.constant 1 : index
    %c1_54 = arith.constant 1 : index
    %c0_55 = arith.constant 0 : index
    %45 = vector.load %arg8[%c1_53, %c1_54, %c0_55] : memref<10x10x64xf32, #tpu.memory_space<vmem>>, vector<8x8x64xf32>
    %46 = arith.truncf %45 : vector<8x8x64xf32> to vector<8x8x64xbf16>
    %c0_56 = arith.constant 0 : index
    %c0_57 = arith.constant 0 : index
    %c64_58 = arith.constant 64 : index
    %47 = vector.load %arg9[%c0_56, %c0_57, %c64_58] : memref<8x8x192xbf16, #tpu.memory_space<vmem>>, vector<8x8x64xbf16>
    tpu.vector_store %arg9[%c0_56, %c0_57, %c64_58], %46 {strides = array<i32>} : memref<8x8x192xbf16, #tpu.memory_space<vmem>>, vector<8x8x64xbf16>,
    %c1_59 = arith.constant 1 : index
    %c2_60 = arith.constant 2 : index
    %c0_61 = arith.constant 0 : index
    %48 = vector.load %arg8[%c1_59, %c2_60, %c0_61] : memref<10x10x64xf32, #tpu.memory_space<vmem>>, vector<8x8x64xf32>
    %49 = arith.truncf %48 : vector<8x8x64xf32> to vector<8x8x64xbf16>
    %c0_62 = arith.constant 0 : index
    %c0_63 = arith.constant 0 : index
    %c128_64 = arith.constant 128 : index
    %50 = vector.load %arg9[%c0_62, %c0_63, %c128_64] : memref<8x8x192xbf16, #tpu.memory_space<vmem>>, vector<8x8x64xbf16>
    tpu.vector_store %arg9[%c0_62, %c0_63, %c128_64], %49 {strides = array<i32>} : memref<8x8x192xbf16, #tpu.memory_space<vmem>>, vector<8x8x64xbf16>,
    %c0_65 = arith.constant 0 : index
    %c0_66 = arith.constant 0 : index
    %c0_67 = arith.constant 0 : index
    %51 = vector.load %arg9[%c0_65, %c0_66, %c0_67] : memref<8x8x192xbf16, #tpu.memory_space<vmem>>, vector<8x8x192xbf16>
    %52 = vector.shape_cast %51 : vector<8x8x192xbf16> to vector<64x192xbf16>
    %c1_68 = arith.constant 1 : index
    %c0_69 = arith.constant 0 : index
    %c0_70 = arith.constant 0 : index
    %53 = vector.load %arg5[%c1_68, %c0_69, %c0_70] : memref<3x192x128xbf16, #tpu.memory_space<vmem>>, vector<1x192x128xbf16>
    %54 = vector.shape_cast %53 : vector<1x192x128xbf16> to vector<192x128xbf16>
    %cst_71 = arith.constant dense<0.000000e+00> : vector<64x128xf32>
    %55 = tpu.matmul %52, %54, %cst_71 {dimension_numbers = #tpu.dot_dimension_numbers<[1], [0], [0], [1], [0, 0, 1, 1], [], []>} : vector<64x192xbf16>, vector<192x128xbf16>, vector<64x128xf32> -> vector<64x128xf32>
    %56 = arith.addf %41, %55 : vector<64x128xf32>
    %c2_72 = arith.constant 2 : index
    %c0_73 = arith.constant 0 : index
    %c0_74 = arith.constant 0 : index
    %57 = vector.load %arg8[%c2_72, %c0_73, %c0_74] : memref<10x10x64xf32, #tpu.memory_space<vmem>>, vector<8x8x64xf32>
    %58 = arith.truncf %57 : vector<8x8x64xf32> to vector<8x8x64xbf16>
    %c0_75 = arith.constant 0 : index
    %c0_76 = arith.constant 0 : index
    %c0_77 = arith.constant 0 : index
    %59 = vector.load %arg9[%c0_75, %c0_76, %c0_77] : memref<8x8x192xbf16, #tpu.memory_space<vmem>>, vector<8x8x64xbf16>
    tpu.vector_store %arg9[%c0_75, %c0_76, %c0_77], %58 {strides = array<i32>} : memref<8x8x192xbf16, #tpu.memory_space<vmem>>, vector<8x8x64xbf16>,
    %c2_78 = arith.constant 2 : index
    %c1_79 = arith.constant 1 : index
    %c0_80 = arith.constant 0 : index
    %60 = vector.load %arg8[%c2_78, %c1_79, %c0_80] : memref<10x10x64xf32, #tpu.memory_space<vmem>>, vector<8x8x64xf32>
    %61 = arith.truncf %60 : vector<8x8x64xf32> to vector<8x8x64xbf16>
    %c0_81 = arith.constant 0 : index
    %c0_82 = arith.constant 0 : index
    %c64_83 = arith.constant 64 : index
    %62 = vector.load %arg9[%c0_81, %c0_82, %c64_83] : memref<8x8x192xbf16, #tpu.memory_space<vmem>>, vector<8x8x64xbf16>
    tpu.vector_store %arg9[%c0_81, %c0_82, %c64_83], %61 {strides = array<i32>} : memref<8x8x192xbf16, #tpu.memory_space<vmem>>, vector<8x8x64xbf16>,
    %c2_84 = arith.constant 2 : index
    %c2_85 = arith.constant 2 : index
    %c0_86 = arith.constant 0 : index
    %63 = vector.load %arg8[%c2_84, %c2_85, %c0_86] : memref<10x10x64xf32, #tpu.memory_space<vmem>>, vector<8x8x64xf32>
    %64 = arith.truncf %63 : vector<8x8x64xf32> to vector<8x8x64xbf16>
    %c0_87 = arith.constant 0 : index
    %c0_88 = arith.constant 0 : index
    %c128_89 = arith.constant 128 : index
    %65 = vector.load %arg9[%c0_87, %c0_88, %c128_89] : memref<8x8x192xbf16, #tpu.memory_space<vmem>>, vector<8x8x64xbf16>
    tpu.vector_store %arg9[%c0_87, %c0_88, %c128_89], %64 {strides = array<i32>} : memref<8x8x192xbf16, #tpu.memory_space<vmem>>, vector<8x8x64xbf16>,
    %c0_90 = arith.constant 0 : index
    %c0_91 = arith.constant 0 : index
    %c0_92 = arith.constant 0 : index
    %66 = vector.load %arg9[%c0_90, %c0_91, %c0_92] : memref<8x8x192xbf16, #tpu.memory_space<vmem>>, vector<8x8x192xbf16>
    %67 = vector.shape_cast %66 : vector<8x8x192xbf16> to vector<64x192xbf16>
    %c2_93 = arith.constant 2 : index
    %c0_94 = arith.constant 0 : index
    %c0_95 = arith.constant 0 : index
    %68 = vector.load %arg5[%c2_93, %c0_94, %c0_95] : memref<3x192x128xbf16, #tpu.memory_space<vmem>>, vector<1x192x128xbf16>
    %69 = vector.shape_cast %68 : vector<1x192x128xbf16> to vector<192x128xbf16>
    %cst_96 = arith.constant dense<0.000000e+00> : vector<64x128xf32>
    %70 = tpu.matmul %67, %69, %cst_96 {dimension_numbers = #tpu.dot_dimension_numbers<[1], [0], [0], [1], [0, 0, 1, 1], [], []>} : vector<64x192xbf16>, vector<192x128xbf16>, vector<64x128xf32> -> vector<64x128xf32>
    %71 = arith.addf %56, %70 : vector<64x128xf32>
    %c0_97 = arith.constant 0 : index
    %c0_98 = arith.constant 0 : index
    %72 = vector.load %arg6[%c0_97, %c0_98] : memref<1x128xf32, #tpu.memory_space<vmem>>, vector<1x128xf32>
    %73 = vector.broadcast %72 : vector<1x128xf32> to vector<64x128xf32>
    %74 = arith.addf %71, %73 : vector<64x128xf32>
    %cst_99 = arith.constant 0.000000e+00 : f32
    %75 = vector.broadcast %cst_99 : f32 to vector<64x128xf32>
    %76 = arith.maximumf %74, %75 : vector<64x128xf32>
    %77 = vector.shape_cast %76 : vector<64x128xf32> to vector<8x8x128xf32>
    %c0_100 = arith.constant 0 : index
    %c0_101 = arith.constant 0 : index
    %c0_102 = arith.constant 0 : index
    %c0_103 = arith.constant 0 : index
    %78 = vector.load %arg7[%c0_100, %c0_101, %c0_102, %c0_103] : memref<1x8x8x128xf32, #tpu.memory_space<vmem>>, vector<1x8x8x128xf32>
    %79 = vector.shape_cast %78 : vector<1x8x8x128xf32> to vector<8x8x128xf32>
    %80 = vector.shape_cast %77 : vector<8x8x128xf32> to vector<1x8x8x128xf32>
    tpu.vector_store %arg7[%c0_100, %c0_101, %c0_102, %c0_103], %80 {strides = array<i32>} : memref<1x8x8x128xf32, #tpu.memory_space<vmem>>, vector<1x8x8x128xf32>,
    return
  }
  func.func @transform_0(%arg0: i32, %arg1: i32) -> (i32, i32, i32, i32) {
    %c8_i32 = arith.constant 8 : i32
    %0 = arith.muli %arg1, %c8_i32 : i32
    %c1_i32 = arith.constant 1 : i32
    %1 = arith.subi %0, %c1_i32 : i32
    %c0_i32 = arith.constant 0 : i32
    %2 = arith.maxsi %1, %c0_i32 : i32
    %c0_i32_0 = arith.constant 0 : i32
    %c0_i32_1 = arith.constant 0 : i32
    %c0_i32_2 = arith.constant 0 : i32
    return %arg0, %2, %c0_i32_0, %c0_i32_1 : i32, i32, i32, i32
  }
  func.func @transform_1(%arg0: i32, %arg1: i32) -> (i32, i32, i32, i32) {
    %c0_i32 = arith.constant 0 : i32
    %c0_i32_0 = arith.constant 0 : i32
    %c0_i32_1 = arith.constant 0 : i32
    return %arg0, %arg1, %c0_i32, %c0_i32_0 : i32, i32, i32, i32
  }
  func.func @transform_2(%arg0: i32, %arg1: i32) -> (i32, i32, i32, i32) {
    %c8_i32 = arith.constant 8 : i32
    %0 = arith.muli %arg1, %c8_i32 : i32
    %c8_i32_0 = arith.constant 8 : i32
    %1 = arith.addi %0, %c8_i32_0 : i32
    %c7_i32 = arith.constant 7 : i32
    %2 = arith.minsi %1, %c7_i32 : i32
    %c0_i32 = arith.constant 0 : i32
    %c0_i32_1 = arith.constant 0 : i32
    %c0_i32_2 = arith.constant 0 : i32
    return %arg0, %2, %c0_i32, %c0_i32_1 : i32, i32, i32, i32
  }
  func.func @transform_3(%arg0: i32, %arg1: i32) -> (i32, i32, i32) {
    %c0_i32 = arith.constant 0 : i32
    %c0_i32_0 = arith.constant 0 : i32
    %c0_i32_1 = arith.constant 0 : i32
    %c0_i32_2 = arith.constant 0 : i32
    return %c0_i32, %c0_i32_0, %c0_i32_1 : i32, i32, i32
  }
  func.func @transform_4(%arg0: i32, %arg1: i32) -> (i32, i32) {
    %c0_i32 = arith.constant 0 : i32
    %c0_i32_0 = arith.constant 0 : i32
    %c0_i32_1 = arith.constant 0 : i32
    return %c0_i32, %c0_i32_0 : i32, i32
  }
  func.func @transform_5(%arg0: i32, %arg1: i32) -> (i32, i32, i32, i32) {
    %c0_i32 = arith.constant 0 : i32
    %c0_i32_0 = arith.constant 0 : i32
    %c0_i32_1 = arith.constant 0 : i32
    return %arg0, %arg1, %c0_i32, %c0_i32_0 : i32, i32, i32, i32
  }
}

</mosaic_0001>

<llo_original>
// kernel: a_call__.3
$region0: #{a_call__.3}
  #allocation0 [shape = 'u32[]', space=smem, size = 0x4, offset = 0x4, fixed_abs, tag = 'smem constant byte address 0x4 - core index']
  #allocation1 [shape = 'u32[144,128]{1,0:T(1,128)}', space=vmem, size = 0x12000, scoped, tag = 'internal scratch']
  %s0 = inlined_call_operand.vmem [shape: bf16[2,16,16,27], index: 0, kind: input, shape index: {}]
  %s1 = inlined_call_operand.vmem [shape: bf16[27,64], index: 1, kind: input, shape index: {}]
  %s2 = inlined_call_operand.vmem [shape: f32[1,64], index: 2, kind: input, shape index: {}]
  %s3 = inlined_call_operand.vmem [shape: f32[2,16,16,64], index: 3, kind: output, shape index: {}]
  %s4 = sld [smem:[#allocation0]]
  $region45: #{a_call__.3} parent=0
    _
  %s6 = ssub.s32 1, %s4
  %s7 = scalar_select 0, %s6, %s4
  loop: start=0, step=1, limit=6
  $region2: #{a_call__.3} parent=0 // loop_pre_header
    _
  $region3: #{a_call__.3} parent=0 // loop_header
    %s9 = sphi 0, %s13
    %p10 = scmp.ge.s32.totalorder %s9, 6
    %s16 = sphi 0, %s28
    %s17 = sphi 0, %s24
    %s18 = sphi 0, %s16
    %s19 = sphi 0, %s17
    %s20 = sphi 0, %s18
    %s21 = sphi 0, %s19
    %s33 = sphi 0, %s35
    %s36 = sphi 0, %s33
    %s37 = sphi 0, %s36
    %s53 = sphi 0, %s37
    %s57 = sphi 0, %s57
    %s59 = sphi 0, %s57
    %s60 = sphi 0, %s59
    %s74 = sphi 0, %s60
    %s78 = sphi 0, %s78
    %s80 = sphi 0, %s78
    %s81 = sphi 0, %s80
    %s95 = sphi 0, %s81
    %s103 = sphi 0, %s105
    %s106 = sphi 0, %s103
    %s107 = sphi 0, %s106
    %s123 = sphi 0, %s107
  $region4: #{a_call__.3} parent=0 // loop_header_branch
    %12 = sbr.rel (%p10) target = $region8
  $region5: #{a_call__.3} parent=0 // loop_body
    %s14 = ssub.s32 %s9, 1
    %s15 = ssub.s32 %s9, 2
    %s22 = sadd.s32 1, %s17
    %p23 = scmp.ge.s32.totalorder %s22, 2
    %s24 = scalar_select %p23, 0, %s22
    %s25 = sadd.s32 1, %s16
    %s26 = scalar_select %p23, %s25, %s16
    %p27 = scmp.ge.s32.totalorder %s26, 2
    %s28 = scalar_select %p27, 0, %s26
    %s29 = ssub.s32 %s16, %s28
    %s30 = ssub.s32 %s17, %s24
    %s31 = sor.u32 %s29, %s30
    %p32 = scmp.eq.s32.totalorder %s31, 0
    %s34 = sadd.s32 %s33, 1
    %s35 = scalar_select %p32, %s33, %s34
    %p38 = pneg %p32
    %p39 = scmp.eq.s32.totalorder %s9, 3
    %p40 = por %p38, %p39
    %p41 = scmp.ne.s32.totalorder %s33, %s36
    %p42 = scmp.eq.s32.totalorder %s9, 0
    %p43 = por %p41, %p42
    %p44 = scmp.ne.s32.totalorder %s33, %s36
    %p45 = scmp.eq.s32.totalorder %s14, 3
    %p46 = por %p44, %p45
    %p47 = scmp.ne.s32.totalorder %s36, %s37
    %p48 = scmp.eq.s32.totalorder %s14, 0
    %p49 = por %p47, %p48
    %p50 = scmp.ne.s32.totalorder %s36, %s37
    %p51 = scmp.eq.s32.totalorder %s15, 3
    %p52 = por %p50, %p51
    %p54 = scmp.ne.s32.totalorder %s37, %s53
    %p55 = scmp.eq.s32.totalorder %s15, 0
    %p56 = por %p54, %p55
    %s58 = sadd.s32 %s57, 1
    %p61 = scmp.eq.s32.totalorder %s9, 3
    %p62 = scmp.ne.s32.totalorder %s57, %s59
    %p63 = scmp.eq.s32.totalorder %s9, 0
    %p64 = por %p62, %p63
    %p65 = scmp.ne.s32.totalorder %s57, %s59
    %p66 = scmp.eq.s32.totalorder %s14, 3
    %p67 = por %p65, %p66
    %p68 = scmp.ne.s32.totalorder %s59, %s60
    %p69 = scmp.eq.s32.totalorder %s14, 0
    %p70 = por %p68, %p69
    %p71 = scmp.ne.s32.totalorder %s59, %s60
    %p72 = scmp.eq.s32.totalorder %s15, 3
    %p73 = por %p71, %p72
    %p75 = scmp.ne.s32.totalorder %s60, %s74
    %p76 = scmp.eq.s32.totalorder %s15, 0
    %p77 = por %p75, %p76
    %s79 = sadd.s32 %s78, 1
    %p82 = scmp.eq.s32.totalorder %s9, 3
    %p83 = scmp.ne.s32.totalorder %s78, %s80
    %p84 = scmp.eq.s32.totalorder %s9, 0
    %p85 = por %p83, %p84
    %p86 = scmp.ne.s32.totalorder %s78, %s80
    %p87 = scmp.eq.s32.totalorder %s14, 3
    %p88 = por %p86, %p87
    %p89 = scmp.ne.s32.totalorder %s80, %s81
    %p90 = scmp.eq.s32.totalorder %s14, 0
    %p91 = por %p89, %p90
    %p92 = scmp.ne.s32.totalorder %s80, %s81
    %p93 = scmp.eq.s32.totalorder %s15, 3
    %p94 = por %p92, %p93
    %p96 = scmp.ne.s32.totalorder %s81, %s95
    %p97 = scmp.eq.s32.totalorder %s15, 0
    %p98 = por %p96, %p97
    %s99 = ssub.s32 %s16, %s28
    %s100 = ssub.s32 %s17, %s24
    %s101 = sor.u32 %s99, %s100
    %p102 = scmp.eq.s32.totalorder %s101, 0
    %s104 = sadd.s32 %s103, 1
    %s105 = scalar_select %p102, %s103, %s104
    %p108 = pneg %p102
    %p109 = scmp.eq.s32.totalorder %s9, 3
    %p110 = por %p108, %p109
    %p111 = scmp.ne.s32.totalorder %s103, %s106
    %p112 = scmp.eq.s32.totalorder %s9, 0
    %p113 = por %p111, %p112
    %p114 = scmp.ne.s32.totalorder %s103, %s106
    %p115 = scmp.eq.s32.totalorder %s14, 3
    %p116 = por %p114, %p115
    %p117 = scmp.ne.s32.totalorder %s106, %s107
    %p118 = scmp.eq.s32.totalorder %s14, 0
    %p119 = por %p117, %p118
    %p120 = scmp.ne.s32.totalorder %s106, %s107
    %p121 = scmp.eq.s32.totalorder %s15, 3
    %p122 = por %p120, %p121
    %p124 = scmp.ne.s32.totalorder %s107, %s123
    %p125 = scmp.eq.s32.totalorder %s15, 0
    %p126 = por %p124, %p125
    %p127 = scmp.le.s32.totalorder 1, %s9
    %p128 = scmp.lt.s32.totalorder %s9, 5
    %p129 = pnand %p127, %p128
    %p130 = pneg %p129
    // Predicated region
    $region9: #{a_call__.3} parent=5 // pred_check
      _
    $region10: #{a_call__.3} parent=5 // pred_check_branch
      %132 = sbr.rel (%p129) target = $region12
    $region11: #{a_call__.3} parent=5 // pred_region
      %s133 = ssub.s32 %s9, 1
      // Predicated region
      $region13: #{a_call__.3} parent=11 // pred_check
        %p134 = pneg %p70
      $region14: #{a_call__.3} parent=11 // pred_check_branch
        %136 = sbr.rel (%p134) target = $region16
      $region15: #{a_call__.3} parent=11 // pred_region
        _
      $region16: #{a_call__.3} parent=11 // pred_fallthru
        _
      // Predicated region
      $region17: #{a_call__.3} parent=11 // pred_check
        %p137 = pneg %p91
      $region18: #{a_call__.3} parent=11 // pred_check_branch
        %139 = sbr.rel (%p137) target = $region20
      $region19: #{a_call__.3} parent=11 // pred_region
        _
      $region20: #{a_call__.3} parent=11 // pred_fallthru
        _
    $region12: #{a_call__.3} parent=5 // pred_fallthru
      _
    %p140 = scmp.lt.s32.totalorder %s9, 4
    // Predicated region
    $region21: #{a_call__.3} parent=5 // pred_check
      %p141 = pneg %p140
    $region22: #{a_call__.3} parent=5 // pred_check_branch
      %143 = sbr.rel (%p141) target = $region24
    $region23: #{a_call__.3} parent=5 // pred_region
      // Predicated region
      $region25: #{a_call__.3} parent=23 // pred_check
        %p144 = pneg %p43
      $region26: #{a_call__.3} parent=23 // pred_check_branch
        %146 = sbr.rel (%p144) target = $region28
      $region27: #{a_call__.3} parent=23 // pred_region
        %s147 = smul.u32 8, %s17
        %p148 = scmp.lt.s32.totalorder %s16, 1
        %s149 = scalar_select %p148, %s16, 1
        %p150 = scmp.lt.s32.totalorder %s147, 15
        %s151 = scalar_select %p150, %s147, 15
        %s152 = smul.addr %s151, 2
        %s153 = smul.addr %s149, 32
        %s154 = sadd.s32 %s152, %s153
        %s155 = smul.addr %s154, 4
        %s156 = scalar_lea.vmem %s0, %s155
        %s157 = smul.u32 8, %s17
      $region28: #{a_call__.3} parent=23 // pred_fallthru
        _
    $region24: #{a_call__.3} parent=5 // pred_fallthru
      _
    %p158 = scmp.le.s32.totalorder 1, %s9
    %p159 = scmp.lt.s32.totalorder %s9, 5
    %p160 = pnand %p158, %p159
    %p161 = pneg %p160
    // Predicated region
    $region29: #{a_call__.3} parent=5 // pred_check
      _
    $region30: #{a_call__.3} parent=5 // pred_check_branch
      %163 = sbr.rel (%p160) target = $region32
    $region31: #{a_call__.3} parent=5 // pred_region
      %s164 = ssub.s32 %s9, 1
      %s165 = smul.u32 8, %s19
      %p166 = scmp.lt.s32.totalorder %s18, 1
      %s167 = scalar_select %p166, %s18, 1
      %p168 = scmp.lt.s32.totalorder %s165, 15
      %s169 = scalar_select %p168, %s165, 15
      %s170 = smul.addr %s169, 2
      %s171 = smul.addr %s167, 32
      %s172 = sadd.s32 %s170, %s171
      %s173 = smul.addr %s172, 4
      %s174 = scalar_lea.vmem %s0, %s173
      %p175 = pneg %p49
      %p176 = pneg %p46
      %p177 = pneg %p70
      %p178 = pneg %p67
      %p179 = pneg %p91
      %p180 = pneg %p88
      %p181 = pneg %p119
      %p182 = pneg %p116
      %s183 = smul.u32 8, %s19
      %p184 = scmp.lt.s32.totalorder %s18, 1
      %s185 = scalar_select %p184, %s18, 1
      %p186 = scmp.lt.s32.totalorder %s183, 15
      %s187 = scalar_select %p186, %s183, 15
      %s188 = smul.addr %s187, 2
      %s189 = smul.addr %s185, 32
      %s190 = sadd.s32 %s188, %s189
      %s191 = smul.addr %s190, 8
      %s192 = scalar_lea.vmem %s3, %s191
      %s193 = smul.u32 8, %s19
      %p194 = scmp.lt.s32.totalorder %s18, 1
      %s195 = scalar_select %p194, %s18, 1
      %p196 = scmp.lt.s32.totalorder %s193, 15
      %s197 = scalar_select %p196, %s193, 15
      %s198 = smul.addr %s197, 2
      %s199 = smul.addr %s195, 32
      %s200 = sadd.s32 %s198, %s199
      %s201 = smul.addr %s200, 4
      %s202 = scalar_lea.vmem %s0, %s201
      %s203 = smul.u32 8, %s19
      %s204 = smul.u32 8, %s19
      %p205 = scmp.lt.s32.totalorder %s18, 1
      %s206 = scalar_select %p205, %s18, 1
      %p207 = scmp.lt.s32.totalorder %s204, 15
      %s208 = scalar_select %p207, %s204, 15
      %s209 = smul.addr %s208, 2
      %s210 = smul.addr %s206, 32
      %s211 = sadd.s32 %s209, %s210
      %s212 = smul.addr %s211, 8
      %s213 = scalar_lea.vmem %s3, %s212
      %s214 = smul.u32 8, %s19
      %v216 = vld [vmem:[%s202] sm:$0xf]
      %v217 = vld [vmem:[%s202 + $0x4] sm:$0xf]
      %v218 = vld [vmem:[%s202 + $0x8] sm:$0xf]
      %v219 = vld [vmem:[%s202 + $0xc] sm:$0xf]
      %v220 = vld [vmem:[%s202 + $0x10] sm:$0xf]
      %v221 = vld [vmem:[%s202 + $0x14] sm:$0xf]
      %v222 = vld [vmem:[%s202 + $0x18] sm:$0xf]
      %v223 = vld [vmem:[%s202 + $0x1c] sm:$0xf]
      %v224 = vld [vmem:[%s202 + $0x20] sm:$0xf]
      %v225 = vld [vmem:[%s202 + $0x24] sm:$0xf]
      %v226 = vld [vmem:[%s202 + $0x28] sm:$0xf]
      %v227 = vld [vmem:[%s202 + $0x2c] sm:$0xf]
      %v228 = vld [vmem:[%s202 + $0x30] sm:$0xf]
      %v229 = vld [vmem:[%s202 + $0x34] sm:$0xf]
      %v230 = vld [vmem:[%s202 + $0x38] sm:$0xf]
      %v231 = vld [vmem:[%s202 + $0x3c] sm:$0xf]
      %v232 = vld [vmem:[%s1] sm:$0xf]
      %v233 = vld [vmem:[%s1 + $0x4] sm:$0xf]
      %v234 = vld [vmem:[%s1 + $0x8] sm:$0xf]
      %v235 = vld [vmem:[%s1 + $0xc] sm:$0x3]
      %v236 = vld [vmem:[%s2] sm:$0x1]
      %v238 = vlaneseq
      %v239 = vshrl.u32 %v238, 7
      %v240 = vsub.s32 0, %v239
      %v241 = vrot.slane %v236, %v240
      %v259 = vunpack.c.l.b16 %v216
      %v260 = vunpack.c.l.b16 %v217
      %v261 = vunpack.c.l.b16 %v218
      %v262 = vunpack.c.l.b16 %v219
      %v263 = vunpack.c.l.b16 %v220
      %v264 = vunpack.c.l.b16 %v221
      %v265 = vunpack.c.l.b16 %v222
      %v266 = vunpack.c.l.b16 %v223
      %v267 = vunpack.c.l.b16 %v224
      %v268 = vunpack.c.l.b16 %v225
      %v269 = vunpack.c.l.b16 %v226
      %v270 = vunpack.c.l.b16 %v227
      %v271 = vunpack.c.l.b16 %v228
      %v272 = vunpack.c.l.b16 %v229
      %v273 = vunpack.c.l.b16 %v230
      %v274 = vunpack.c.l.b16 %v231
      %v275 = vpack.c.b16 %v260, %v259
      %v276 = vpack.c.b16 %v262, %v261
      %v277 = vpack.c.b16 %v264, %v263
      %v278 = vpack.c.b16 %v266, %v265
      %v279 = vpack.c.b16 %v268, %v267
      %v280 = vpack.c.b16 %v270, %v269
      %v281 = vpack.c.b16 %v272, %v271
      %v282 = vpack.c.b16 %v274, %v273
      %v287 = vunpack.c.l.b16 %v232
      %v288 = vunpack.c.l.b16 %v233
      %v289 = vunpack.c.l.b16 %v234
      %v290 = vunpack.c.l.b16 %v235
      %v291 = vpack.c.b16 %v288, %v287
      %v292 = vpack.c.b16 %v290, %v289
      %vm294 = vcmask 220160
      %v296 = vsel %vm294, %v275, 0
      %v299 = vsel %vm294, %v276, 0
      %v302 = vsel %vm294, %v277, 0
      %v305 = vsel %vm294, %v278, 0
      %v308 = vsel %vm294, %v279, 0
      %v311 = vsel %vm294, %v280, 0
      %v314 = vsel %vm294, %v281, 0
      %v317 = vsel %vm294, %v282, 0
      %vm319 = vcmask 1044480
      %vm320 = vcmask 1045504
      %v321 = vsel %vm319, 4294967295, 65535
      %v322 = vsel %vm320, %v321, 0
      %v324 = vand.u32 %v292, %v322
      %326 = vmatprep.subr.bf16.mxu0 0
      %327 = vmatpush1.bf16.msra.mxu0 0
      %328 = vmatprep.subr.bf16.mxu0 0
      %329 = vmatpush1.bf16.msra.mxu0 0
      %330 = vmatprep.subr.bf16.mxu0 0
      %331 = vmatpush1.bf16.msra.mxu0 0
      %332 = vmatprep.subr.bf16.mxu0 0
      %333 = vmatpush1.bf16.msra.mxu0 0
      %334 = vmatprep.subr.bf16.mxu0 0
      %335 = vmatpush1.bf16.msra.mxu0 0
      %336 = vmatprep.subr.bf16.mxu0 0
      %337 = vmatpush1.bf16.msra.mxu0 0
      %338 = vmatprep.subr.bf16.mxu0 0
      %339 = vmatpush1.bf16.msra.mxu0 %v324
      %340 = vmatprep.subr.bf16.mxu0 0
      %341 = vmatpush1.bf16.msra.mxu0 %v291
      %342 = vmatprep.subr.bf16.mxu0 0
      %343 = vmatpush2.bf16.msra.mxu0 0
      %344 = vmatprep.subr.bf16.mxu0 0
      %345 = vmatpush2.bf16.msra.mxu0 0
      %346 = vmatprep.subr.bf16.mxu0 0
      %347 = vmatpush2.bf16.msra.mxu0 0
      %348 = vmatprep.subr.bf16.mxu0 0
      %349 = vmatpush2.bf16.msra.mxu0 0
      %350 = vmatprep.subr.bf16.mxu0 0
      %351 = vmatpush2.bf16.msra.mxu0 0
      %352 = vmatprep.subr.bf16.mxu0 0
      %353 = vmatpush2.bf16.msra.mxu0 0
      %354 = vmatprep.subr.bf16.mxu0 0
      %355 = vmatpush2.bf16.msra.mxu0 0
      %356 = vmatprep.subr.bf16.mxu0 0
      %357 = vmatpush2.bf16.msra.mxu0 0
      %358 = vmatprep.mubr.bf16.mxu0 0
      %359 = vmatmul.mubr.bf16.gmra.mxu0 %v296
      %v360 = vpop.f32.mrf.mxu0
      %v361 = vadd.f32 %v241, %v360
      %v362 = vpop.f32.mrf.mxu0
      %v363 = vpop.f32.mrf.mxu0
      %v364 = vadd.f32 %v241, %v363
      %v365 = vpop.f32.mrf.mxu0
      %366 = vmatprep.mubr.bf16.mxu0 0
      %367 = vmatmul.mubr.bf16.gmra.mxu0 %v299
      %v368 = vpop.f32.mrf.mxu0
      %v369 = vadd.f32 %v241, %v368
      %v370 = vpop.f32.mrf.mxu0
      %v371 = vpop.f32.mrf.mxu0
      %v372 = vadd.f32 %v241, %v371
      %v373 = vpop.f32.mrf.mxu0
      %374 = vmatprep.mubr.bf16.mxu0 0
      %375 = vmatmul.mubr.bf16.gmra.mxu0 %v302
      %v376 = vpop.f32.mrf.mxu0
      %v377 = vadd.f32 %v241, %v376
      %v378 = vpop.f32.mrf.mxu0
      %v379 = vpop.f32.mrf.mxu0
      %v380 = vadd.f32 %v241, %v379
      %v381 = vpop.f32.mrf.mxu0
      %382 = vmatprep.mubr.bf16.mxu0 0
      %383 = vmatmul.mubr.bf16.gmra.mxu0 %v305
      %v384 = vpop.f32.mrf.mxu0
      %v385 = vadd.f32 %v241, %v384
      %v386 = vpop.f32.mrf.mxu0
      %v387 = vpop.f32.mrf.mxu0
      %v388 = vadd.f32 %v241, %v387
      %v389 = vpop.f32.mrf.mxu0
      %390 = vmatprep.mubr.bf16.mxu0 0
      %391 = vmatmul.mubr.bf16.gmra.mxu0 %v308
      %v392 = vpop.f32.mrf.mxu0
      %v393 = vadd.f32 %v241, %v392
      %v394 = vpop.f32.mrf.mxu0
      %v395 = vpop.f32.mrf.mxu0
      %v396 = vadd.f32 %v241, %v395
      %v397 = vpop.f32.mrf.mxu0
      %398 = vmatprep.mubr.bf16.mxu0 0
      %399 = vmatmul.mubr.bf16.gmra.mxu0 %v311
      %v400 = vpop.f32.mrf.mxu0
      %v401 = vadd.f32 %v241, %v400
      %v402 = vpop.f32.mrf.mxu0
      %v403 = vpop.f32.mrf.mxu0
      %v404 = vadd.f32 %v241, %v403
      %v405 = vpop.f32.mrf.mxu0
      %406 = vmatprep.mubr.bf16.mxu0 0
      %407 = vmatmul.mubr.bf16.gmra.mxu0 %v314
      %v408 = vpop.f32.mrf.mxu0
      %v409 = vadd.f32 %v241, %v408
      %v410 = vpop.f32.mrf.mxu0
      %v411 = vpop.f32.mrf.mxu0
      %v412 = vadd.f32 %v241, %v411
      %v413 = vpop.f32.mrf.mxu0
      %414 = vmatprep.mubr.bf16.mxu0 0
      %415 = vmatmul.mubr.bf16.gmra.mxu0 %v317
      %v416 = vpop.f32.mrf.mxu0
      %v417 = vadd.f32 %v241, %v416
      %v418 = vpop.f32.mrf.mxu0
      %v419 = vpop.f32.mrf.mxu0
      %v420 = vadd.f32 %v241, %v419
      %v421 = vpop.f32.mrf.mxu0
      %422 = vdwg.mxu0
      %v423 = vmax.f32 %v361, 0.0
      %v424 = vmax.f32 %v364, 0.0
      %v425 = vmax.f32 %v369, 0.0
      %v426 = vmax.f32 %v372, 0.0
      %v427 = vmax.f32 %v377, 0.0
      %v428 = vmax.f32 %v380, 0.0
      %v429 = vmax.f32 %v385, 0.0
      %v430 = vmax.f32 %v388, 0.0
      %v431 = vmax.f32 %v393, 0.0
      %v432 = vmax.f32 %v396, 0.0
      %v433 = vmax.f32 %v401, 0.0
      %v434 = vmax.f32 %v404, 0.0
      %v435 = vmax.f32 %v409, 0.0
      %v436 = vmax.f32 %v412, 0.0
      %v437 = vmax.f32 %v417, 0.0
      %v438 = vmax.f32 %v420, 0.0
      %vm439 = vcmask 523264
      %440 = vst.msk [vmem:[%s213] sm:$0xff] %vm439, %v423
      %441 = vst.msk [vmem:[%s213 + $0x8] sm:$0xff] %vm439, %v424
      %442 = vst.msk [vmem:[%s213 + $0x10] sm:$0xff] %vm439, %v425
      %443 = vst.msk [vmem:[%s213 + $0x18] sm:$0xff] %vm439, %v426
      %444 = vst.msk [vmem:[%s213 + $0x20] sm:$0xff] %vm439, %v427
      %445 = vst.msk [vmem:[%s213 + $0x28] sm:$0xff] %vm439, %v428
      %446 = vst.msk [vmem:[%s213 + $0x30] sm:$0xff] %vm439, %v429
      %447 = vst.msk [vmem:[%s213 + $0x38] sm:$0xff] %vm439, %v430
      %448 = vst.msk [vmem:[%s213 + $0x40] sm:$0xff] %vm439, %v431
      %449 = vst.msk [vmem:[%s213 + $0x48] sm:$0xff] %vm439, %v432
      %450 = vst.msk [vmem:[%s213 + $0x50] sm:$0xff] %vm439, %v433
      %451 = vst.msk [vmem:[%s213 + $0x58] sm:$0xff] %vm439, %v434
      %452 = vst.msk [vmem:[%s213 + $0x60] sm:$0xff] %vm439, %v435
      %453 = vst.msk [vmem:[%s213 + $0x68] sm:$0xff] %vm439, %v436
      %454 = vst.msk [vmem:[%s213 + $0x70] sm:$0xff] %vm439, %v437
      %455 = vst.msk [vmem:[%s213 + $0x78] sm:$0xff] %vm439, %v438
      %s456 = smul.u32 8, %s19
      %p457 = scmp.lt.s32.totalorder %s18, 1
      %s458 = scalar_select %p457, %s18, 1
      %p459 = scmp.lt.s32.totalorder %s456, 15
      %s460 = scalar_select %p459, %s456, 15
      %s461 = smul.addr %s460, 2
      %s462 = smul.addr %s458, 32
      %s463 = sadd.s32 %s461, %s462
      %s464 = smul.addr %s463, 8
      %s465 = scalar_lea.vmem %s3, %s464
      // Predicated region
      $region33: #{a_call__.3} parent=31 // pred_check
        %p466 = pneg %p116
      $region34: #{a_call__.3} parent=31 // pred_check_branch
        %468 = sbr.rel (%p466) target = $region36
      $region35: #{a_call__.3} parent=31 // pred_region
        %s469 = smul.u32 8, %s19
      $region36: #{a_call__.3} parent=31 // pred_fallthru
        _
    $region32: #{a_call__.3} parent=5 // pred_fallthru
      _
    %p470 = scmp.le.s32.totalorder 2, %s9
    // Predicated region
    $region37: #{a_call__.3} parent=5 // pred_check
      %p471 = pneg %p470
    $region38: #{a_call__.3} parent=5 // pred_check_branch
      %473 = sbr.rel (%p471) target = $region40
    $region39: #{a_call__.3} parent=5 // pred_region
      %s474 = ssub.s32 %s9, 2
      // Predicated region
      $region41: #{a_call__.3} parent=39 // pred_check
        %p475 = pneg %p122
      $region42: #{a_call__.3} parent=39 // pred_check_branch
        %477 = sbr.rel (%p475) target = $region44
      $region43: #{a_call__.3} parent=39 // pred_region
        %s478 = smul.u32 8, %s21
        %p479 = scmp.lt.s32.totalorder %s20, 1
        %s480 = scalar_select %p479, %s20, 1
        %p481 = scmp.lt.s32.totalorder %s478, 15
        %s482 = scalar_select %p481, %s478, 15
        %s483 = smul.addr %s482, 2
        %s484 = smul.addr %s480, 32
        %s485 = sadd.s32 %s483, %s484
        %s486 = smul.addr %s485, 8
        %s487 = scalar_lea.vmem %s3, %s486
      $region44: #{a_call__.3} parent=39 // pred_fallthru
        _
    $region40: #{a_call__.3} parent=5 // pred_fallthru
      _
  $region6: #{a_call__.3} parent=0 // loop_footer
    %s13 = sadd.s32 1, %s9
  $region7: #{a_call__.3} parent=0 // loop_footer_branch
    %8 = sbr.rel target = $region3
  $region8: #{a_call__.3} parent=0 // loop_exit
    _

// kernel: a_call__.5
$region0: #{a_call__.5}
  #allocation0 [shape = 'u32[]', space=smem, size = 0x4, offset = 0x4, fixed_abs, tag = 'smem constant byte address 0x4 - core index']
  #allocation1 [shape = 'u32[144,128]{1,0:T(1,128)}', space=vmem, size = 0x12000, scoped, tag = 'internal scratch']
  #allocation2 [shape = 'f32[10,10,64]{2,1,0:T(8,128)}', space=vmem, size = 0x14000, scoped, tag = 'scratch operand']
  #allocation3 [shape = 'bf16[8,8,192]{2,1,0:T(8,128)(2,1)}', space=vmem, size = 0x8000, scoped, tag = 'scratch operand']
  %s0 = inlined_call_operand.vmem [shape: bf16[2,8,8,64], index: 0, kind: input, shape index: {}, may-alias: {0,1,2}]
  %s1 = inlined_call_operand.vmem [shape: bf16[2,8,8,64], index: 1, kind: input, shape index: {}, may-alias: {0,1,2}]
  %s2 = inlined_call_operand.vmem [shape: bf16[2,8,8,64], index: 2, kind: input, shape index: {}, may-alias: {0,1,2}]
  %s3 = inlined_call_operand.vmem [shape: bf16[3,192,128], index: 3, kind: input, shape index: {}]
  %s4 = inlined_call_operand.vmem [shape: f32[1,128], index: 4, kind: input, shape index: {}]
  %s5 = inlined_call_operand.hbm [shape: f32[2,8,8,128], index: 5, kind: output, shape index: {}]
  %s6 = sld [smem:[#allocation0]]
  $region53: #{a_call__.5} parent=0
    _
  %s8 = ssub.s32 1, %s6
  %s9 = scalar_select 0, %s8, %s6
  $region1: #{a_call__.5} parent=0
    #allocation4 [shape = 'u8[65536]{0}', space=vmem, size = 0x10000, scoped, tag = 'output window, operand 0']
    #allocation5 [shape = 's32[2]{0}', space=sflag, size = 0x8, scoped, tag = 'scoped memory for a_call__.5']
    %10 = vsyncpa [#allocation5], 0
    %s11 = scalar_lea.sflag [#allocation5], 1
    %12 = vsyncpa %s11, 0
    loop: start=0, step=1, limit=4
    $region2: #{a_call__.5} parent=1 // loop_pre_header
      _
    $region3: #{a_call__.5} parent=1 // loop_header
      %s14 = sphi 0, %s18
      %p15 = scmp.ge.s32.totalorder %s14, 4
      %s21 = sphi 0, %s33
      %s22 = sphi 0, %s29
      %s23 = sphi 0, %s21
      %s24 = sphi 0, %s22
      %s25 = sphi 0, %s23
      %s26 = sphi 0, %s24
      %s46 = sphi 0, %s48
      %s49 = sphi 0, %s46
      %s50 = sphi 0, %s49
      %s66 = sphi 0, %s50
      %s74 = sphi 0, %s76
      %s77 = sphi 0, %s74
      %s78 = sphi 0, %s77
      %s94 = sphi 0, %s78
      %s110 = sphi 0, %s112
      %s113 = sphi 0, %s110
      %s114 = sphi 0, %s113
      %s130 = sphi 0, %s114
      %s134 = sphi 0, %s134
      %s136 = sphi 0, %s134
      %s137 = sphi 0, %s136
      %s151 = sphi 0, %s137
      %s155 = sphi 0, %s155
      %s157 = sphi 0, %s155
      %s158 = sphi 0, %s157
      %s172 = sphi 0, %s158
      %s180 = sphi 0, %s182
      %s183 = sphi 0, %s180
      %s184 = sphi 0, %s183
      %s200 = sphi 0, %s184
    $region4: #{a_call__.5} parent=1 // loop_header_branch
      %17 = sbr.rel (%p15) target = $region8
    $region5: #{a_call__.5} parent=1 // loop_body
      %s19 = ssub.s32 %s14, 1
      %s20 = ssub.s32 %s14, 2
      %s27 = sadd.s32 1, %s22
      %p28 = scmp.ge.s32.totalorder %s27, 1
      %s29 = scalar_select %p28, 0, %s27
      %s30 = sadd.s32 1, %s21
      %s31 = scalar_select %p28, %s30, %s21
      %p32 = scmp.ge.s32.totalorder %s31, 2
      %s33 = scalar_select %p32, 0, %s31
      %s34 = smul.u32 %s22, 8
      %s35 = ssub.s32 %s34, 1
      %p36 = scmp.gt.s32.totalorder %s35, 0
      %s37 = scalar_select %p36, %s35, 0
      %s38 = smul.u32 %s29, 8
      %s39 = ssub.s32 %s38, 1
      %p40 = scmp.gt.s32.totalorder %s39, 0
      %s41 = scalar_select %p40, %s39, 0
      %s42 = ssub.s32 %s21, %s33
      %s43 = ssub.s32 %s37, %s41
      %s44 = sor.u32 %s42, %s43
      %p45 = scmp.eq.s32.totalorder %s44, 0
      %s47 = sadd.s32 %s46, 1
      %s48 = scalar_select %p45, %s46, %s47
      %p51 = pneg %p45
      %p52 = scmp.eq.s32.totalorder %s14, 1
      %p53 = por %p51, %p52
      %p54 = scmp.ne.s32.totalorder %s46, %s49
      %p55 = scmp.eq.s32.totalorder %s14, 0
      %p56 = por %p54, %p55
      %p57 = scmp.ne.s32.totalorder %s46, %s49
      %p58 = scmp.eq.s32.totalorder %s19, 1
      %p59 = por %p57, %p58
      %p60 = scmp.ne.s32.totalorder %s49, %s50
      %p61 = scmp.eq.s32.totalorder %s19, 0
      %p62 = por %p60, %p61
      %p63 = scmp.ne.s32.totalorder %s49, %s50
      %p64 = scmp.eq.s32.totalorder %s20, 1
      %p65 = por %p63, %p64
      %p67 = scmp.ne.s32.totalorder %s50, %s66
      %p68 = scmp.eq.s32.totalorder %s20, 0
      %p69 = por %p67, %p68
      %s70 = ssub.s32 %s21, %s33
      %s71 = ssub.s32 %s22, %s29
      %s72 = sor.u32 %s70, %s71
      %p73 = scmp.eq.s32.totalorder %s72, 0
      %s75 = sadd.s32 %s74, 1
      %s76 = scalar_select %p73, %s74, %s75
      %p79 = pneg %p73
      %p80 = scmp.eq.s32.totalorder %s14, 1
      %p81 = por %p79, %p80
      %p82 = scmp.ne.s32.totalorder %s74, %s77
      %p83 = scmp.eq.s32.totalorder %s14, 0
      %p84 = por %p82, %p83
      %p85 = scmp.ne.s32.totalorder %s74, %s77
      %p86 = scmp.eq.s32.totalorder %s19, 1
      %p87 = por %p85, %p86
      %p88 = scmp.ne.s32.totalorder %s77, %s78
      %p89 = scmp.eq.s32.totalorder %s19, 0
      %p90 = por %p88, %p89
      %p91 = scmp.ne.s32.totalorder %s77, %s78
      %p92 = scmp.eq.s32.totalorder %s20, 1
      %p93 = por %p91, %p92
      %p95 = scmp.ne.s32.totalorder %s78, %s94
      %p96 = scmp.eq.s32.totalorder %s20, 0
      %p97 = por %p95, %p96
      %s98 = smul.u32 %s22, 8
      %s99 = sadd.s32 %s98, 8
      %p100 = scmp.lt.s32.totalorder %s99, 7
      %s101 = scalar_select %p100, %s99, 7
      %s102 = smul.u32 %s29, 8
      %s103 = sadd.s32 %s102, 8
      %p104 = scmp.lt.s32.totalorder %s103, 7
      %s105 = scalar_select %p104, %s103, 7
      %s106 = ssub.s32 %s21, %s33
      %s107 = ssub.s32 %s101, %s105
      %s108 = sor.u32 %s106, %s107
      %p109 = scmp.eq.s32.totalorder %s108, 0
      %s111 = sadd.s32 %s110, 1
      %s112 = scalar_select %p109, %s110, %s111
      %p115 = pneg %p109
      %p116 = scmp.eq.s32.totalorder %s14, 1
      %p117 = por %p115, %p116
      %p118 = scmp.ne.s32.totalorder %s110, %s113
      %p119 = scmp.eq.s32.totalorder %s14, 0
      %p120 = por %p118, %p119
      %p121 = scmp.ne.s32.totalorder %s110, %s113
      %p122 = scmp.eq.s32.totalorder %s19, 1
      %p123 = por %p121, %p122
      %p124 = scmp.ne.s32.totalorder %s113, %s114
      %p125 = scmp.eq.s32.totalorder %s19, 0
      %p126 = por %p124, %p125
      %p127 = scmp.ne.s32.totalorder %s113, %s114
      %p128 = scmp.eq.s32.totalorder %s20, 1
      %p129 = por %p127, %p128
      %p131 = scmp.ne.s32.totalorder %s114, %s130
      %p132 = scmp.eq.s32.totalorder %s20, 0
      %p133 = por %p131, %p132
      %s135 = sadd.s32 %s134, 1
      %p138 = scmp.eq.s32.totalorder %s14, 1
      %p139 = scmp.ne.s32.totalorder %s134, %s136
      %p140 = scmp.eq.s32.totalorder %s14, 0
      %p141 = por %p139, %p140
      %p142 = scmp.ne.s32.totalorder %s134, %s136
      %p143 = scmp.eq.s32.totalorder %s19, 1
      %p144 = por %p142, %p143
      %p145 = scmp.ne.s32.totalorder %s136, %s137
      %p146 = scmp.eq.s32.totalorder %s19, 0
      %p147 = por %p145, %p146
      %p148 = scmp.ne.s32.totalorder %s136, %s137
      %p149 = scmp.eq.s32.totalorder %s20, 1
      %p150 = por %p148, %p149
      %p152 = scmp.ne.s32.totalorder %s137, %s151
      %p153 = scmp.eq.s32.totalorder %s20, 0
      %p154 = por %p152, %p153
      %s156 = sadd.s32 %s155, 1
      %p159 = scmp.eq.s32.totalorder %s14, 1
      %p160 = scmp.ne.s32.totalorder %s155, %s157
      %p161 = scmp.eq.s32.totalorder %s14, 0
      %p162 = por %p160, %p161
      %p163 = scmp.ne.s32.totalorder %s155, %s157
      %p164 = scmp.eq.s32.totalorder %s19, 1
      %p165 = por %p163, %p164
      %p166 = scmp.ne.s32.totalorder %s157, %s158
      %p167 = scmp.eq.s32.totalorder %s19, 0
      %p168 = por %p166, %p167
      %p169 = scmp.ne.s32.totalorder %s157, %s158
      %p170 = scmp.eq.s32.totalorder %s20, 1
      %p171 = por %p169, %p170
      %p173 = scmp.ne.s32.totalorder %s158, %s172
      %p174 = scmp.eq.s32.totalorder %s20, 0
      %p175 = por %p173, %p174
      %s176 = ssub.s32 %s21, %s33
      %s177 = ssub.s32 %s22, %s29
      %s178 = sor.u32 %s176, %s177
      %p179 = scmp.eq.s32.totalorder %s178, 0
      %s181 = sadd.s32 %s180, 1
      %s182 = scalar_select %p179, %s180, %s181
      %p185 = pneg %p179
      %p186 = scmp.eq.s32.totalorder %s14, 1
      %p187 = por %p185, %p186
      %p188 = scmp.ne.s32.totalorder %s180, %s183
      %p189 = scmp.eq.s32.totalorder %s14, 0
      %p190 = por %p188, %p189
      %p191 = scmp.ne.s32.totalorder %s180, %s183
      %p192 = scmp.eq.s32.totalorder %s19, 1
      %p193 = por %p191, %p192
      %p194 = scmp.ne.s32.totalorder %s183, %s184
      %p195 = scmp.eq.s32.totalorder %s19, 0
      %p196 = por %p194, %p195
      %p197 = scmp.ne.s32.totalorder %s183, %s184
      %p198 = scmp.eq.s32.totalorder %s20, 1
      %p199 = por %p197, %p198
      %p201 = scmp.ne.s32.totalorder %s184, %s200
      %p202 = scmp.eq.s32.totalorder %s20, 0
      %p203 = por %p201, %p202
      %p204 = scmp.le.s32.totalorder 1, %s14
      %p205 = scmp.lt.s32.totalorder %s14, 3
      %p206 = pnand %p204, %p205
      %p207 = pneg %p206
      // Predicated region
      $region9: #{a_call__.5} parent=5 // pred_check
        _
      $region10: #{a_call__.5} parent=5 // pred_check_branch
        %209 = sbr.rel (%p206) target = $region12
      $region11: #{a_call__.5} parent=5 // pred_region
        %s210 = ssub.s32 %s14, 1
        // Predicated region
        $region13: #{a_call__.5} parent=11 // pred_check
          %p211 = pneg %p147
        $region14: #{a_call__.5} parent=11 // pred_check_branch
          %213 = sbr.rel (%p211) target = $region16
        $region15: #{a_call__.5} parent=11 // pred_region
          _
        $region16: #{a_call__.5} parent=11 // pred_fallthru
          _
        // Predicated region
        $region17: #{a_call__.5} parent=11 // pred_check
          %p214 = pneg %p168
        $region18: #{a_call__.5} parent=11 // pred_check_branch
          %216 = sbr.rel (%p214) target = $region20
        $region19: #{a_call__.5} parent=11 // pred_region
          _
        $region20: #{a_call__.5} parent=11 // pred_fallthru
          _
      $region12: #{a_call__.5} parent=5 // pred_fallthru
        _
      %p217 = scmp.lt.s32.totalorder %s14, 2
      // Predicated region
      $region21: #{a_call__.5} parent=5 // pred_check
        %p218 = pneg %p217
      $region22: #{a_call__.5} parent=5 // pred_check_branch
        %220 = sbr.rel (%p218) target = $region24
      $region23: #{a_call__.5} parent=5 // pred_region
        // Predicated region
        $region25: #{a_call__.5} parent=23 // pred_check
          %p221 = pneg %p56
        $region26: #{a_call__.5} parent=23 // pred_check_branch
          %223 = sbr.rel (%p221) target = $region28
        $region27: #{a_call__.5} parent=23 // pred_region
          %s224 = smul.u32 %s22, 8
          %s225 = ssub.s32 %s224, 1
          %p226 = scmp.gt.s32.totalorder %s225, 0
          %s227 = scalar_select %p226, %s225, 0
          %p228 = scmp.lt.s32.totalorder %s21, 1
          %s229 = scalar_select %p228, %s21, 1
          %p230 = scmp.lt.s32.totalorder %s227, 7
          %s231 = scalar_select %p230, %s227, 7
          %s232 = smul.addr %s229, 8
          %s233 = sadd.s32 %s231, %s232
          %s234 = smul.addr %s233, 4
          %s235 = scalar_lea.vmem %s0, %s234
          %s236 = smul.u32 %s22, 8
          %s237 = ssub.s32 %s236, 1
          %p238 = scmp.gt.s32.totalorder %s237, 0
          %s239 = scalar_select %p238, %s237, 0
        $region28: #{a_call__.5} parent=23 // pred_fallthru
          _
        // Predicated region
        $region29: #{a_call__.5} parent=23 // pred_check
          %p240 = pneg %p84
        $region30: #{a_call__.5} parent=23 // pred_check_branch
          %242 = sbr.rel (%p240) target = $region32
        $region31: #{a_call__.5} parent=23 // pred_region
          %s243 = smul.u32 8, %s22
          %p244 = scmp.lt.s32.totalorder %s21, 1
          %s245 = scalar_select %p244, %s21, 1
          %p246 = scmp.lt.s32.totalorder %s243, 7
          %s247 = scalar_select %p246, %s243, 7
          %s248 = smul.addr %s245, 8
          %s249 = sadd.s32 %s247, %s248
          %s250 = smul.addr %s249, 4
          %s251 = scalar_lea.vmem %s1, %s250
          %s252 = smul.u32 8, %s22
        $region32: #{a_call__.5} parent=23 // pred_fallthru
          _
        // Predicated region
        $region33: #{a_call__.5} parent=23 // pred_check
          %p253 = pneg %p120
        $region34: #{a_call__.5} parent=23 // pred_check_branch
          %255 = sbr.rel (%p253) target = $region36
        $region35: #{a_call__.5} parent=23 // pred_region
          %s256 = smul.u32 %s22, 8
          %s257 = sadd.s32 %s256, 8
          %p258 = scmp.lt.s32.totalorder %s257, 7
          %s259 = scalar_select %p258, %s257, 7
          %p260 = scmp.lt.s32.totalorder %s21, 1
          %s261 = scalar_select %p260, %s21, 1
          %p262 = scmp.lt.s32.totalorder %s259, 7
          %s263 = scalar_select %p262, %s259, 7
          %s264 = smul.addr %s261, 8
          %s265 = sadd.s32 %s263, %s264
          %s266 = smul.addr %s265, 4
          %s267 = scalar_lea.vmem %s2, %s266
          %s268 = smul.u32 %s22, 8
          %s269 = sadd.s32 %s268, 8
          %p270 = scmp.lt.s32.totalorder %s269, 7
          %s271 = scalar_select %p270, %s269, 7
        $region36: #{a_call__.5} parent=23 // pred_fallthru
          _
      $region24: #{a_call__.5} parent=5 // pred_fallthru
        _
      %p272 = scmp.le.s32.totalorder 1, %s14
      %p273 = scmp.lt.s32.totalorder %s14, 3
      %p274 = pnand %p272, %p273
      %p275 = pneg %p274
      // Predicated region
      $region37: #{a_call__.5} parent=5 // pred_check
        _
      $region38: #{a_call__.5} parent=5 // pred_check_branch
        %277 = sbr.rel (%p274) target = $region40
      $region39: #{a_call__.5} parent=5 // pred_region
        %s278 = ssub.s32 %s14, 1
        %s279 = smul.u32 %s24, 8
        %s280 = ssub.s32 %s279, 1
        %p281 = scmp.gt.s32.totalorder %s280, 0
        %s282 = scalar_select %p281, %s280, 0
        %p283 = scmp.lt.s32.totalorder %s23, 1
        %s284 = scalar_select %p283, %s23, 1
        %p285 = scmp.lt.s32.totalorder %s282, 7
        %s286 = scalar_select %p285, %s282, 7
        %s287 = smul.addr %s284, 8
        %s288 = sadd.s32 %s286, %s287
        %s289 = smul.addr %s288, 4
        %s290 = scalar_lea.vmem %s0, %s289
        %p291 = pneg %p62
        %p292 = pneg %p59
        %s293 = smul.u32 8, %s24
        %p294 = scmp.lt.s32.totalorder %s23, 1
        %s295 = scalar_select %p294, %s23, 1
        %p296 = scmp.lt.s32.totalorder %s293, 7
        %s297 = scalar_select %p296, %s293, 7
        %s298 = smul.addr %s295, 8
        %s299 = sadd.s32 %s297, %s298
        %s300 = smul.addr %s299, 4
        %s301 = scalar_lea.vmem %s1, %s300
        %p302 = pneg %p90
        %p303 = pneg %p87
        %s304 = smul.u32 %s24, 8
        %s305 = sadd.s32 %s304, 8
        %p306 = scmp.lt.s32.totalorder %s305, 7
        %s307 = scalar_select %p306, %s305, 7
        %p308 = scmp.lt.s32.totalorder %s23, 1
        %s309 = scalar_select %p308, %s23, 1
        %p310 = scmp.lt.s32.totalorder %s307, 7
        %s311 = scalar_select %p310, %s307, 7
        %s312 = smul.addr %s309, 8
        %s313 = sadd.s32 %s311, %s312
        %s314 = smul.addr %s313, 4
        %s315 = scalar_lea.vmem %s2, %s314
        %p316 = pneg %p126
        %p317 = pneg %p123
        %p318 = pneg %p147
        %p319 = pneg %p144
        %p320 = pneg %p168
        %p321 = pneg %p165
        %p322 = pneg %p196
        %p323 = pneg %p193
        %s324 = sand.u32 %s183, 1
        %s325 = scalar_lea.sflag [#allocation5], %s324
        %s326 = sand.u32 %s183, 1
        %s327 = smul.addr %s326, 64
        %s328 = scalar_lea.vmem [#allocation4], %s327
        %s329 = smul.u32 %s24, 8
        %s330 = ssub.s32 %s329, 1
        %p331 = scmp.gt.s32.totalorder %s330, 0
        %s332 = scalar_select %p331, %s330, 0
        %p333 = scmp.lt.s32.totalorder %s23, 1
        %s334 = scalar_select %p333, %s23, 1
        %p335 = scmp.lt.s32.totalorder %s332, 7
        %s336 = scalar_select %p335, %s332, 7
        %s337 = smul.addr %s334, 8
        %s338 = sadd.s32 %s336, %s337
        %s339 = smul.addr %s338, 4
        %s340 = scalar_lea.vmem %s0, %s339
        %s341 = smul.u32 %s24, 8
        %s342 = ssub.s32 %s341, 1
        %p343 = scmp.gt.s32.totalorder %s342, 0
        %s344 = scalar_select %p343, %s342, 0
        %s345 = smul.u32 8, %s24
        %p346 = scmp.lt.s32.totalorder %s23, 1
        %s347 = scalar_select %p346, %s23, 1
        %p348 = scmp.lt.s32.totalorder %s345, 7
        %s349 = scalar_select %p348, %s345, 7
        %s350 = smul.addr %s347, 8
        %s351 = sadd.s32 %s349, %s350
        %s352 = smul.addr %s351, 4
        %s353 = scalar_lea.vmem %s1, %s352
        %s354 = smul.u32 8, %s24
        %s355 = smul.u32 %s24, 8
        %s356 = sadd.s32 %s355, 8
        %p357 = scmp.lt.s32.totalorder %s356, 7
        %s358 = scalar_select %p357, %s356, 7
        %p359 = scmp.lt.s32.totalorder %s23, 1
        %s360 = scalar_select %p359, %s23, 1
        %p361 = scmp.lt.s32.totalorder %s358, 7
        %s362 = scalar_select %p361, %s358, 7
        %s363 = smul.addr %s360, 8
        %s364 = sadd.s32 %s362, %s363
        %s365 = smul.addr %s364, 4
        %s366 = scalar_lea.vmem %s2, %s365
        %s367 = smul.u32 %s24, 8
        %s368 = sadd.s32 %s367, 8
        %p369 = scmp.lt.s32.totalorder %s368, 7
        %s370 = scalar_select %p369, %s368, 7
        %s371 = smul.u32 8, %s24
        %vm373 = vcmask 523264
        %374 = vst.msk [vmem:[#allocation2] sm:$0xff] %vm373, 0.0
        %vm375 = vcmask 517120
        %376 = vst.msk [vmem:[#allocation2 + $0x8] sm:$0x3] %vm375, 0.0
        %377 = vst.msk [vmem:[#allocation2 + $0x10] sm:$0xff] %vm373, 0.0
        %378 = vst.msk [vmem:[#allocation2 + $0x18] sm:$0x3] %vm375, 0.0
        %379 = vst.msk [vmem:[#allocation2 + $0x20] sm:$0xff] %vm373, 0.0
        %380 = vst.msk [vmem:[#allocation2 + $0x28] sm:$0x3] %vm375, 0.0
        %381 = vst.msk [vmem:[#allocation2 + $0x30] sm:$0xff] %vm373, 0.0
        %382 = vst.msk [vmem:[#allocation2 + $0x38] sm:$0x3] %vm375, 0.0
        %383 = vst.msk [vmem:[#allocation2 + $0x40] sm:$0xff] %vm373, 0.0
        %384 = vst.msk [vmem:[#allocation2 + $0x48] sm:$0x3] %vm375, 0.0
        %385 = vst.msk [vmem:[#allocation2 + $0x50] sm:$0xff] %vm373, 0.0
        %386 = vst.msk [vmem:[#allocation2 + $0x58] sm:$0x3] %vm375, 0.0
        %387 = vst.msk [vmem:[#allocation2 + $0x60] sm:$0xff] %vm373, 0.0
        %388 = vst.msk [vmem:[#allocation2 + $0x68] sm:$0x3] %vm375, 0.0
        %389 = vst.msk [vmem:[#allocation2 + $0x70] sm:$0xff] %vm373, 0.0
        %390 = vst.msk [vmem:[#allocation2 + $0x78] sm:$0x3] %vm375, 0.0
        %391 = vst.msk [vmem:[#allocation2 + $0x80] sm:$0xff] %vm373, 0.0
        %392 = vst.msk [vmem:[#allocation2 + $0x88] sm:$0x3] %vm375, 0.0
        %393 = vst.msk [vmem:[#allocation2 + $0x90] sm:$0xff] %vm373, 0.0
        %394 = vst.msk [vmem:[#allocation2 + $0x98] sm:$0x3] %vm375, 0.0
        %v395 = vld [vmem:[%s353] sm:$0xf]
        %v396 = vld [vmem:[%s353 + $0x4] sm:$0xf]
        %v397 = vld [vmem:[%s353 + $0x8] sm:$0xf]
        %v398 = vld [vmem:[%s353 + $0xc] sm:$0xf]
        %v399 = vld [vmem:[%s353 + $0x10] sm:$0xf]
        %v400 = vld [vmem:[%s353 + $0x14] sm:$0xf]
        %v401 = vld [vmem:[%s353 + $0x18] sm:$0xf]
        %v402 = vld [vmem:[%s353 + $0x1c] sm:$0xf]
        %v403 = vunpack.c.l.bf16 %v395
        %v404 = vunpack.c.l.bf16 %v396
        %v405 = vunpack.c.l.bf16 %v397
        %v406 = vunpack.c.l.bf16 %v398
        %v407 = vunpack.c.l.bf16 %v399
        %v408 = vunpack.c.l.bf16 %v400
        %v409 = vunpack.c.l.bf16 %v401
        %v410 = vunpack.c.l.bf16 %v402
        %s411 = scalar_lea.vmem [#allocation2], 16
        %412 = vst.msk [vmem:[%s411 + $0x1] sm:$0xff] %vm373, %v403
        %413 = vst.msk [vmem:[%s411 + $0x11] sm:$0xff] %vm373, %v404
        %414 = vst.msk [vmem:[%s411 + $0x21] sm:$0xff] %vm373, %v405
        %415 = vst.msk [vmem:[%s411 + $0x31] sm:$0xff] %vm373, %v406
        %416 = vst.msk [vmem:[%s411 + $0x41] sm:$0xff] %vm373, %v407
        %417 = vst.msk [vmem:[%s411 + $0x51] sm:$0xff] %vm373, %v408
        %418 = vst.msk [vmem:[%s411 + $0x61] sm:$0xff] %vm373, %v409
        %419 = vst.msk [vmem:[%s411 + $0x71] sm:$0xff] %vm373, %v410
        %p420 = scmp.gt.s32.totalorder %s24, 0
        %v421 = vld [vmem:[%s340] sm:$0xf]
        %s422 = scalar_select %p420, 1, 0
        %v423 = vstv %s422
        %vm424 = vcmp.eq.s32.totalorder %v423, 1
        %v425 = vsel %vm424, %v421, 0
        %v426 = vunpack.c.l.bf16 %v425
        %p427 = scmp.lt.s32.totalorder %s24, 0
        %v428 = vld [vmem:[%s366] sm:$0xf]
        %s429 = scalar_select %p427, 1, 0
        %v430 = vstv %s429
        %vm431 = vcmp.eq.s32.totalorder %v430, 1
        %v432 = vsel %vm431, %v428, 0
        %v433 = vunpack.c.l.bf16 %v432
        %434 = vst.msk [vmem:[#allocation2 + $0x1] sm:$0xff] %vm373, %v426
        %s435 = scalar_lea.vmem [#allocation2], 144
        %436 = vst.msk [vmem:[%s435 + $0x1] sm:$0xff] %vm373, %v433
        %v437 = vld [vmem:[#allocation2] sm:$0xff]
        %v438 = vld [vmem:[#allocation2 + $0x10] sm:$0xff]
        %v439 = vld [vmem:[#allocation2 + $0x20] sm:$0xff]
        %v440 = vld [vmem:[#allocation2 + $0x30] sm:$0xff]
        %v441 = vld [vmem:[#allocation2 + $0x40] sm:$0xff]
        %v442 = vld [vmem:[#allocation2 + $0x50] sm:$0xff]
        %v443 = vld [vmem:[#allocation2 + $0x60] sm:$0xff]
        %v444 = vld [vmem:[#allocation2 + $0x70] sm:$0xff]
        %v445 = vpack.c.bf16 %v437, %v437
        %v446 = vpack.c.bf16 %v438, %v438
        %v447 = vpack.c.bf16 %v439, %v439
        %v448 = vpack.c.bf16 %v440, %v440
        %v449 = vpack.c.bf16 %v441, %v441
        %v450 = vpack.c.bf16 %v442, %v442
        %v451 = vpack.c.bf16 %v443, %v443
        %v452 = vpack.c.bf16 %v444, %v444
        %vm453 = vcmask 519168
        %454 = vst.msk [vmem:[#allocation3] sm:$0xf] %vm453, %v445
        %455 = vst.msk [vmem:[#allocation3 + $0x8] sm:$0xf] %vm453, %v446
        %456 = vst.msk [vmem:[#allocation3 + $0x10] sm:$0xf] %vm453, %v447
        %457 = vst.msk [vmem:[#allocation3 + $0x18] sm:$0xf] %vm453, %v448
        %458 = vst.msk [vmem:[#allocation3 + $0x20] sm:$0xf] %vm453, %v449
        %459 = vst.msk [vmem:[#allocation3 + $0x28] sm:$0xf] %vm453, %v450
        %460 = vst.msk [vmem:[#allocation3 + $0x30] sm:$0xf] %vm453, %v451
        %461 = vst.msk [vmem:[#allocation3 + $0x38] sm:$0xf] %vm453, %v452
        %v462 = vld [vmem:[#allocation2 + $0x1] sm:$0xff]
        %v463 = vld [vmem:[#allocation2 + $0x11] sm:$0xff]
        %v464 = vld [vmem:[#allocation2 + $0x21] sm:$0xff]
        %v465 = vld [vmem:[#allocation2 + $0x31] sm:$0xff]
        %v466 = vld [vmem:[#allocation2 + $0x41] sm:$0xff]
        %v467 = vld [vmem:[#allocation2 + $0x51] sm:$0xff]
        %v468 = vld [vmem:[#allocation2 + $0x61] sm:$0xff]
        %v469 = vld [vmem:[#allocation2 + $0x71] sm:$0xff]
        %v470 = vpack.c.bf16 %v462, %v462
        %v471 = vpack.c.bf16 %v463, %v463
        %v472 = vpack.c.bf16 %v464, %v464
        %v473 = vpack.c.bf16 %v465, %v465
        %v474 = vpack.c.bf16 %v466, %v466
        %v475 = vpack.c.bf16 %v467, %v467
        %v476 = vpack.c.bf16 %v468, %v468
        %v477 = vpack.c.bf16 %v469, %v469
        %v486 = vunpack.c.l.b16 %v470
        %v487 = vunpack.c.l.b16 %v471
        %v488 = vunpack.c.l.b16 %v472
        %v489 = vunpack.c.l.b16 %v473
        %v490 = vunpack.c.l.b16 %v474
        %v491 = vunpack.c.l.b16 %v475
        %v492 = vunpack.c.l.b16 %v476
        %v493 = vunpack.c.l.b16 %v477
        %v494 = vpack.c.b16 %v486, %v486
        %v495 = vpack.c.b16 %v487, %v487
        %v496 = vpack.c.b16 %v488, %v488
        %v497 = vpack.c.b16 %v489, %v489
        %v498 = vpack.c.b16 %v490, %v490
        %v499 = vpack.c.b16 %v491, %v491
        %v500 = vpack.c.b16 %v492, %v492
        %v501 = vpack.c.b16 %v493, %v493
        %502 = vrot.lane.b32.xlu0 %v494, 64
        %v503 = vpop.permute.xlu0 %502
        %504 = vrot.lane.b32.xlu0 %v495, 64
        %v505 = vpop.permute.xlu0 %504
        %506 = vrot.lane.b32.xlu0 %v496, 64
        %v507 = vpop.permute.xlu0 %506
        %508 = vrot.lane.b32.xlu0 %v497, 64
        %v509 = vpop.permute.xlu0 %508
        %510 = vrot.lane.b32.xlu0 %v498, 64
        %v511 = vpop.permute.xlu0 %510
        %512 = vrot.lane.b32.xlu0 %v499, 64
        %v513 = vpop.permute.xlu0 %512
        %514 = vrot.lane.b32.xlu0 %v500, 64
        %v515 = vpop.permute.xlu0 %514
        %516 = vrot.lane.b32.xlu0 %v501, 64
        %v517 = vpop.permute.xlu0 %516
        %vm526 = vcmask 1043968
        %527 = vst.msk [vmem:[#allocation3] sm:$0xf] %vm526, %v503
        %528 = vst.msk [vmem:[#allocation3 + $0x8] sm:$0xf] %vm526, %v505
        %529 = vst.msk [vmem:[#allocation3 + $0x10] sm:$0xf] %vm526, %v507
        %530 = vst.msk [vmem:[#allocation3 + $0x18] sm:$0xf] %vm526, %v509
        %531 = vst.msk [vmem:[#allocation3 + $0x20] sm:$0xf] %vm526, %v511
        %532 = vst.msk [vmem:[#allocation3 + $0x28] sm:$0xf] %vm526, %v513
        %533 = vst.msk [vmem:[#allocation3 + $0x30] sm:$0xf] %vm526, %v515
        %534 = vst.msk [vmem:[#allocation3 + $0x38] sm:$0xf] %vm526, %v517
        %v535 = vld [vmem:[#allocation2 + $0x2] sm:$0xff]
        %v536 = vld [vmem:[#allocation2 + $0x12] sm:$0xff]
        %v537 = vld [vmem:[#allocation2 + $0x22] sm:$0xff]
        %v538 = vld [vmem:[#allocation2 + $0x32] sm:$0xff]
        %v539 = vld [vmem:[#allocation2 + $0x42] sm:$0xff]
        %v540 = vld [vmem:[#allocation2 + $0x52] sm:$0xff]
        %v541 = vld [vmem:[#allocation2 + $0x62] sm:$0xff]
        %v542 = vld [vmem:[#allocation2 + $0x72] sm:$0xff]
        %v543 = vpack.c.bf16 %v535, %v535
        %v544 = vpack.c.bf16 %v536, %v536
        %v545 = vpack.c.bf16 %v537, %v537
        %v546 = vpack.c.bf16 %v538, %v538
        %v547 = vpack.c.bf16 %v539, %v539
        %v548 = vpack.c.bf16 %v540, %v540
        %v549 = vpack.c.bf16 %v541, %v541
        %v550 = vpack.c.bf16 %v542, %v542
        %551 = vst.msk [vmem:[#allocation3 + $0x4] sm:$0xf] %vm453, %v543
        %552 = vst.msk [vmem:[#allocation3 + $0xc] sm:$0xf] %vm453, %v544
        %553 = vst.msk [vmem:[#allocation3 + $0x14] sm:$0xf] %vm453, %v545
        %554 = vst.msk [vmem:[#allocation3 + $0x1c] sm:$0xf] %vm453, %v546
        %555 = vst.msk [vmem:[#allocation3 + $0x24] sm:$0xf] %vm453, %v547
        %556 = vst.msk [vmem:[#allocation3 + $0x2c] sm:$0xf] %vm453, %v548
        %557 = vst.msk [vmem:[#allocation3 + $0x34] sm:$0xf] %vm453, %v549
        %558 = vst.msk [vmem:[#allocation3 + $0x3c] sm:$0xf] %vm453, %v550
        %v559 = vld [vmem:[#allocation3] sm:$0xff]
        %v560 = vld [vmem:[#allocation3 + $0x8] sm:$0xff]
        %v561 = vld [vmem:[#allocation3 + $0x10] sm:$0xff]
        %v562 = vld [vmem:[#allocation3 + $0x18] sm:$0xff]
        %v563 = vld [vmem:[#allocation3 + $0x20] sm:$0xff]
        %v564 = vld [vmem:[#allocation3 + $0x28] sm:$0xff]
        %v565 = vld [vmem:[#allocation3 + $0x30] sm:$0xff]
        %v566 = vld [vmem:[#allocation3 + $0x38] sm:$0xff]
        %v567 = vld [vmem:[%s3] sm:$0xf]
        %v568 = vld [vmem:[%s3 + $0x4] sm:$0xf]
        %v569 = vld [vmem:[%s3 + $0x8] sm:$0xf]
        %v570 = vld [vmem:[%s3 + $0xc] sm:$0xf]
        %v571 = vld [vmem:[%s3 + $0x10] sm:$0xf]
        %v572 = vld [vmem:[%s3 + $0x14] sm:$0xf]
        %v573 = vld [vmem:[%s3 + $0x18] sm:$0xf]
        %v574 = vld [vmem:[%s3 + $0x1c] sm:$0xf]
        %v575 = vld [vmem:[%s3 + $0x20] sm:$0xf]
        %v576 = vld [vmem:[%s3 + $0x24] sm:$0xf]
        %v577 = vld [vmem:[%s3 + $0x28] sm:$0xf]
        %v578 = vld [vmem:[%s3 + $0x2c] sm:$0xf]
        %v579 = vld [vmem:[%s3 + $0x30] sm:$0xf]
        %v580 = vld [vmem:[%s3 + $0x34] sm:$0xf]
        %v581 = vld [vmem:[%s3 + $0x38] sm:$0xf]
        %v582 = vld [vmem:[%s3 + $0x3c] sm:$0xf]
        %v583 = vld [vmem:[%s3 + $0x40] sm:$0xf]
        %v584 = vld [vmem:[%s3 + $0x44] sm:$0xf]
        %v585 = vld [vmem:[%s3 + $0x48] sm:$0xf]
        %v586 = vld [vmem:[%s3 + $0x4c] sm:$0xf]
        %v587 = vld [vmem:[%s3 + $0x50] sm:$0xf]
        %v588 = vld [vmem:[%s3 + $0x54] sm:$0xf]
        %v589 = vld [vmem:[%s3 + $0x58] sm:$0xf]
        %v590 = vld [vmem:[%s3 + $0x5c] sm:$0xf]
        %v591 = vld [vmem:[%s411] sm:$0xff]
        %v592 = vld [vmem:[%s411 + $0x10] sm:$0xff]
        %v593 = vld [vmem:[%s411 + $0x20] sm:$0xff]
        %v594 = vld [vmem:[%s411 + $0x30] sm:$0xff]
        %v595 = vld [vmem:[%s411 + $0x40] sm:$0xff]
        %v596 = vld [vmem:[%s411 + $0x50] sm:$0xff]
        %v597 = vld [vmem:[%s411 + $0x60] sm:$0xff]
        %v598 = vld [vmem:[%s411 + $0x70] sm:$0xff]
        %v599 = vpack.c.bf16 %v591, %v591
        %v600 = vpack.c.bf16 %v592, %v592
        %v601 = vpack.c.bf16 %v593, %v593
        %v602 = vpack.c.bf16 %v594, %v594
        %v603 = vpack.c.bf16 %v595, %v595
        %v604 = vpack.c.bf16 %v596, %v596
        %v605 = vpack.c.bf16 %v597, %v597
        %v606 = vpack.c.bf16 %v598, %v598
        %607 = vst.msk [vmem:[#allocation3] sm:$0xf] %vm453, %v599
        %608 = vst.msk [vmem:[#allocation3 + $0x8] sm:$0xf] %vm453, %v600
        %609 = vst.msk [vmem:[#allocation3 + $0x10] sm:$0xf] %vm453, %v601
        %610 = vst.msk [vmem:[#allocation3 + $0x18] sm:$0xf] %vm453, %v602
        %611 = vst.msk [vmem:[#allocation3 + $0x20] sm:$0xf] %vm453, %v603
        %612 = vst.msk [vmem:[#allocation3 + $0x28] sm:$0xf] %vm453, %v604
        %613 = vst.msk [vmem:[#allocation3 + $0x30] sm:$0xf] %vm453, %v605
        %614 = vst.msk [vmem:[#allocation3 + $0x38] sm:$0xf] %vm453, %v606
        %v615 = vld [vmem:[%s411 + $0x1] sm:$0xff]
        %v616 = vld [vmem:[%s411 + $0x11] sm:$0xff]
        %v617 = vld [vmem:[%s411 + $0x21] sm:$0xff]
        %v618 = vld [vmem:[%s411 + $0x31] sm:$0xff]
        %v619 = vld [vmem:[%s411 + $0x41] sm:$0xff]
        %v620 = vld [vmem:[%s411 + $0x51] sm:$0xff]
        %v621 = vld [vmem:[%s411 + $0x61] sm:$0xff]
        %v622 = vld [vmem:[%s411 + $0x71] sm:$0xff]
        %v623 = vpack.c.bf16 %v615, %v615
        %v624 = vpack.c.bf16 %v616, %v616
        %v625 = vpack.c.bf16 %v617, %v617
        %v626 = vpack.c.bf16 %v618, %v618
        %v627 = vpack.c.bf16 %v619, %v619
        %v628 = vpack.c.bf16 %v620, %v620
        %v629 = vpack.c.bf16 %v621, %v621
        %v630 = vpack.c.bf16 %v622, %v622
        %v639 = vunpack.c.l.b16 %v623
        %v640 = vunpack.c.l.b16 %v624
        %v641 = vunpack.c.l.b16 %v625
        %v642 = vunpack.c.l.b16 %v626
        %v643 = vunpack.c.l.b16 %v627
        %v644 = vunpack.c.l.b16 %v628
        %v645 = vunpack.c.l.b16 %v629
        %v646 = vunpack.c.l.b16 %v630
        %v647 = vpack.c.b16 %v639, %v639
        %v648 = vpack.c.b16 %v640, %v640
        %v649 = vpack.c.b16 %v641, %v641
        %v650 = vpack.c.b16 %v642, %v642
        %v651 = vpack.c.b16 %v643, %v643
        %v652 = vpack.c.b16 %v644, %v644
        %v653 = vpack.c.b16 %v645, %v645
        %v654 = vpack.c.b16 %v646, %v646
        %655 = vrot.lane.b32.xlu0 %v647, 64
        %v656 = vpop.permute.xlu0 %655
        %657 = vrot.lane.b32.xlu0 %v648, 64
        %v658 = vpop.permute.xlu0 %657
        %659 = vrot.lane.b32.xlu0 %v649, 64
        %v660 = vpop.permute.xlu0 %659
        %661 = vrot.lane.b32.xlu0 %v650, 64
        %v662 = vpop.permute.xlu0 %661
        %663 = vrot.lane.b32.xlu0 %v651, 64
        %v664 = vpop.permute.xlu0 %663
        %665 = vrot.lane.b32.xlu0 %v652, 64
        %v666 = vpop.permute.xlu0 %665
        %667 = vrot.lane.b32.xlu0 %v653, 64
        %v668 = vpop.permute.xlu0 %667
        %669 = vrot.lane.b32.xlu0 %v654, 64
        %v670 = vpop.permute.xlu0 %669
        %679 = vst.msk [vmem:[#allocation3] sm:$0xf] %vm526, %v656
        %680 = vst.msk [vmem:[#allocation3 + $0x8] sm:$0xf] %vm526, %v658
        %681 = vst.msk [vmem:[#allocation3 + $0x10] sm:$0xf] %vm526, %v660
        %682 = vst.msk [vmem:[#allocation3 + $0x18] sm:$0xf] %vm526, %v662
        %683 = vst.msk [vmem:[#allocation3 + $0x20] sm:$0xf] %vm526, %v664
        %684 = vst.msk [vmem:[#allocation3 + $0x28] sm:$0xf] %vm526, %v666
        %685 = vst.msk [vmem:[#allocation3 + $0x30] sm:$0xf] %vm526, %v668
        %686 = vst.msk [vmem:[#allocation3 + $0x38] sm:$0xf] %vm526, %v670
        %v687 = vld [vmem:[%s411 + $0x2] sm:$0xff]
        %v688 = vld [vmem:[%s411 + $0x12] sm:$0xff]
        %v689 = vld [vmem:[%s411 + $0x22] sm:$0xff]
        %v690 = vld [vmem:[%s411 + $0x32] sm:$0xff]
        %v691 = vld [vmem:[%s411 + $0x42] sm:$0xff]
        %v692 = vld [vmem:[%s411 + $0x52] sm:$0xff]
        %v693 = vld [vmem:[%s411 + $0x62] sm:$0xff]
        %v694 = vld [vmem:[%s411 + $0x72] sm:$0xff]
        %v695 = vpack.c.bf16 %v687, %v687
        %v696 = vpack.c.bf16 %v688, %v688
        %v697 = vpack.c.bf16 %v689, %v689
        %v698 = vpack.c.bf16 %v690, %v690
        %v699 = vpack.c.bf16 %v691, %v691
        %v700 = vpack.c.bf16 %v692, %v692
        %v701 = vpack.c.bf16 %v693, %v693
        %v702 = vpack.c.bf16 %v694, %v694
        %703 = vst.msk [vmem:[#allocation3 + $0x4] sm:$0xf] %vm453, %v695
        %704 = vst.msk [vmem:[#allocation3 + $0xc] sm:$0xf] %vm453, %v696
        %705 = vst.msk [vmem:[#allocation3 + $0x14] sm:$0xf] %vm453, %v697
        %706 = vst.msk [vmem:[#allocation3 + $0x1c] sm:$0xf] %vm453, %v698
        %707 = vst.msk [vmem:[#allocation3 + $0x24] sm:$0xf] %vm453, %v699
        %708 = vst.msk [vmem:[#allocation3 + $0x2c] sm:$0xf] %vm453, %v700
        %709 = vst.msk [vmem:[#allocation3 + $0x34] sm:$0xf] %vm453, %v701
        %710 = vst.msk [vmem:[#allocation3 + $0x3c] sm:$0xf] %vm453, %v702
        %v711 = vld [vmem:[#allocation3] sm:$0xff]
        %v712 = vld [vmem:[#allocation3 + $0x8] sm:$0xff]
        %v713 = vld [vmem:[#allocation3 + $0x10] sm:$0xff]
        %v714 = vld [vmem:[#allocation3 + $0x18] sm:$0xff]
        %v715 = vld [vmem:[#allocation3 + $0x20] sm:$0xff]
        %v716 = vld [vmem:[#allocation3 + $0x28] sm:$0xff]
        %v717 = vld [vmem:[#allocation3 + $0x30] sm:$0xff]
        %v718 = vld [vmem:[#allocation3 + $0x38] sm:$0xff]
        %s719 = scalar_lea.vmem %s3, 96
        %v720 = vld [vmem:[%s719] sm:$0xf]
        %v721 = vld [vmem:[%s719 + $0x4] sm:$0xf]
        %v722 = vld [vmem:[%s719 + $0x8] sm:$0xf]
        %v723 = vld [vmem:[%s719 + $0xc] sm:$0xf]
        %v724 = vld [vmem:[%s719 + $0x10] sm:$0xf]
        %v725 = vld [vmem:[%s719 + $0x14] sm:$0xf]
        %v726 = vld [vmem:[%s719 + $0x18] sm:$0xf]
        %v727 = vld [vmem:[%s719 + $0x1c] sm:$0xf]
        %v728 = vld [vmem:[%s719 + $0x20] sm:$0xf]
        %v729 = vld [vmem:[%s719 + $0x24] sm:$0xf]
        %v730 = vld [vmem:[%s719 + $0x28] sm:$0xf]
        %v731 = vld [vmem:[%s719 + $0x2c] sm:$0xf]
        %v732 = vld [vmem:[%s719 + $0x30] sm:$0xf]
        %v733 = vld [vmem:[%s719 + $0x34] sm:$0xf]
        %v734 = vld [vmem:[%s719 + $0x38] sm:$0xf]
        %v735 = vld [vmem:[%s719 + $0x3c] sm:$0xf]
        %v736 = vld [vmem:[%s719 + $0x40] sm:$0xf]
        %v737 = vld [vmem:[%s719 + $0x44] sm:$0xf]
        %v738 = vld [vmem:[%s719 + $0x48] sm:$0xf]
        %v739 = vld [vmem:[%s719 + $0x4c] sm:$0xf]
        %v740 = vld [vmem:[%s719 + $0x50] sm:$0xf]
        %v741 = vld [vmem:[%s719 + $0x54] sm:$0xf]
        %v742 = vld [vmem:[%s719 + $0x58] sm:$0xf]
        %v743 = vld [vmem:[%s719 + $0x5c] sm:$0xf]
        %v752 = vunpack.c.l.b16 %v711
        %v753 = vunpack.c.h.b16 %v711
        %v754 = vunpack.c.l.b16 %v712
        %v755 = vunpack.c.h.b16 %v712
        %v756 = vunpack.c.l.b16 %v713
        %v757 = vunpack.c.h.b16 %v713
        %v758 = vunpack.c.l.b16 %v714
        %v759 = vunpack.c.h.b16 %v714
        %v760 = vunpack.c.l.b16 %v715
        %v761 = vunpack.c.h.b16 %v715
        %v762 = vunpack.c.l.b16 %v716
        %v763 = vunpack.c.h.b16 %v716
        %v764 = vunpack.c.l.b16 %v717
        %v765 = vunpack.c.h.b16 %v717
        %v766 = vunpack.c.l.b16 %v718
        %v767 = vunpack.c.h.b16 %v718
        %v768 = vpack.c.b16 %v754, %v752
        %v769 = vpack.c.b16 %v755, %v753
        %v770 = vpack.c.b16 %v758, %v756
        %v771 = vpack.c.b16 %v759, %v757
        %v772 = vpack.c.b16 %v762, %v760
        %v773 = vpack.c.b16 %v763, %v761
        %v774 = vpack.c.b16 %v766, %v764
        %v775 = vpack.c.b16 %v767, %v765
        %v804 = vunpack.c.l.b16 %v720
        %v805 = vunpack.c.l.b16 %v721
        %v806 = vunpack.c.l.b16 %v722
        %v807 = vunpack.c.l.b16 %v723
        %v808 = vunpack.c.l.b16 %v724
        %v809 = vunpack.c.l.b16 %v725
        %v810 = vunpack.c.l.b16 %v726
        %v811 = vunpack.c.l.b16 %v727
        %v812 = vunpack.c.l.b16 %v728
        %v813 = vunpack.c.l.b16 %v729
        %v814 = vunpack.c.l.b16 %v730
        %v815 = vunpack.c.l.b16 %v731
        %v816 = vunpack.c.l.b16 %v732
        %v817 = vunpack.c.l.b16 %v733
        %v818 = vunpack.c.l.b16 %v734
        %v819 = vunpack.c.l.b16 %v735
        %v820 = vunpack.c.l.b16 %v736
        %v821 = vunpack.c.l.b16 %v737
        %v822 = vunpack.c.l.b16 %v738
        %v823 = vunpack.c.l.b16 %v739
        %v824 = vunpack.c.l.b16 %v740
        %v825 = vunpack.c.l.b16 %v741
        %v826 = vunpack.c.l.b16 %v742
        %v827 = vunpack.c.l.b16 %v743
        %v828 = vpack.c.b16 %v805, %v804
        %v829 = vpack.c.b16 %v807, %v806
        %v830 = vpack.c.b16 %v809, %v808
        %v831 = vpack.c.b16 %v811, %v810
        %v832 = vpack.c.b16 %v813, %v812
        %v833 = vpack.c.b16 %v815, %v814
        %v834 = vpack.c.b16 %v817, %v816
        %v835 = vpack.c.b16 %v819, %v818
        %v836 = vpack.c.b16 %v821, %v820
        %v837 = vpack.c.b16 %v823, %v822
        %v838 = vpack.c.b16 %v825, %v824
        %v839 = vpack.c.b16 %v827, %v826
        %v853 = vsel %vm373, %v769, 0
        %v856 = vsel %vm373, %v771, 0
        %v859 = vsel %vm373, %v773, 0
        %v862 = vsel %vm373, %v775, 0
        %864 = vmatprep.subr.bf16.mxu0 0
        %865 = vmatpush1.bf16.msra.mxu0 %v835
        %866 = vmatprep.subr.bf16.mxu0 0
        %867 = vmatpush1.bf16.msra.mxu0 %v834
        %868 = vmatprep.subr.bf16.mxu0 0
        %869 = vmatpush1.bf16.msra.mxu0 %v833
        %870 = vmatprep.subr.bf16.mxu0 0
        %871 = vmatpush1.bf16.msra.mxu0 %v832
        %872 = vmatprep.subr.bf16.mxu0 0
        %873 = vmatpush1.bf16.msra.mxu0 %v831
        %874 = vmatprep.subr.bf16.mxu0 0
        %875 = vmatpush1.bf16.msra.mxu0 %v830
        %876 = vmatprep.subr.bf16.mxu0 0
        %877 = vmatpush1.bf16.msra.mxu0 %v829
        %878 = vmatprep.subr.bf16.mxu0 0
        %879 = vmatpush1.bf16.msra.mxu0 %v828
        %880 = vmatprep.subr.bf16.mxu0 0
        %881 = vmatpush2.bf16.msra.mxu0 0
        %882 = vmatprep.subr.bf16.mxu0 0
        %883 = vmatpush2.bf16.msra.mxu0 0
        %884 = vmatprep.subr.bf16.mxu0 0
        %885 = vmatpush2.bf16.msra.mxu0 0
        %886 = vmatprep.subr.bf16.mxu0 0
        %887 = vmatpush2.bf16.msra.mxu0 0
        %888 = vmatprep.subr.bf16.mxu0 0
        %889 = vmatpush2.bf16.msra.mxu0 %v839
        %890 = vmatprep.subr.bf16.mxu0 0
        %891 = vmatpush2.bf16.msra.mxu0 %v838
        %892 = vmatprep.subr.bf16.mxu0 0
        %893 = vmatpush2.bf16.msra.mxu0 %v837
        %894 = vmatprep.subr.bf16.mxu0 0
        %895 = vmatpush2.bf16.msra.mxu0 %v836
        %896 = vmatprep.mubr.bf16.mxu0 %v853
        %897 = vmatmul.mubr.bf16.gmra.mxu0 %v768
        %v898 = vpop.f32.mrf.mxu0
        %v899 = vadd.f32 0.0, %v898
        %v900 = vpop.f32.mrf.mxu0
        %v901 = vpop.f32.mrf.mxu0
        %v902 = vadd.f32 0.0, %v901
        %v903 = vpop.f32.mrf.mxu0
        %904 = vmatprep.mubr.bf16.mxu0 %v856
        %905 = vmatmul.mubr.bf16.gmra.mxu0 %v770
        %v906 = vpop.f32.mrf.mxu0
        %v907 = vadd.f32 0.0, %v906
        %v908 = vpop.f32.mrf.mxu0
        %v909 = vpop.f32.mrf.mxu0
        %v910 = vadd.f32 0.0, %v909
        %v911 = vpop.f32.mrf.mxu0
        %912 = vmatprep.mubr.bf16.mxu0 %v859
        %913 = vmatmul.mubr.bf16.gmra.mxu0 %v772
        %v914 = vpop.f32.mrf.mxu0
        %v915 = vadd.f32 0.0, %v914
        %v916 = vpop.f32.mrf.mxu0
        %v917 = vpop.f32.mrf.mxu0
        %v918 = vadd.f32 0.0, %v917
        %v919 = vpop.f32.mrf.mxu0
        %920 = vmatprep.mubr.bf16.mxu0 %v862
        %921 = vmatmul.mubr.bf16.gmra.mxu0 %v774
        %v922 = vpop.f32.mrf.mxu0
        %v923 = vadd.f32 0.0, %v922
        %v924 = vpop.f32.mrf.mxu0
        %v925 = vpop.f32.mrf.mxu0
        %v926 = vadd.f32 0.0, %v925
        %v927 = vpop.f32.mrf.mxu0
        %928 = vdwg.mxu0
        %v937 = vunpack.c.l.b16 %v559
        %v938 = vunpack.c.h.b16 %v559
        %v939 = vunpack.c.l.b16 %v560
        %v940 = vunpack.c.h.b16 %v560
        %v941 = vunpack.c.l.b16 %v561
        %v942 = vunpack.c.h.b16 %v561
        %v943 = vunpack.c.l.b16 %v562
        %v944 = vunpack.c.h.b16 %v562
        %v945 = vunpack.c.l.b16 %v563
        %v946 = vunpack.c.h.b16 %v563
        %v947 = vunpack.c.l.b16 %v564
        %v948 = vunpack.c.h.b16 %v564
        %v949 = vunpack.c.l.b16 %v565
        %v950 = vunpack.c.h.b16 %v565
        %v951 = vunpack.c.l.b16 %v566
        %v952 = vunpack.c.h.b16 %v566
        %v953 = vpack.c.b16 %v939, %v937
        %v954 = vpack.c.b16 %v940, %v938
        %v955 = vpack.c.b16 %v943, %v941
        %v956 = vpack.c.b16 %v944, %v942
        %v957 = vpack.c.b16 %v947, %v945
        %v958 = vpack.c.b16 %v948, %v946
        %v959 = vpack.c.b16 %v951, %v949
        %v960 = vpack.c.b16 %v952, %v950
        %v989 = vunpack.c.l.b16 %v567
        %v990 = vunpack.c.l.b16 %v568
        %v991 = vunpack.c.l.b16 %v569
        %v992 = vunpack.c.l.b16 %v570
        %v993 = vunpack.c.l.b16 %v571
        %v994 = vunpack.c.l.b16 %v572
        %v995 = vunpack.c.l.b16 %v573
        %v996 = vunpack.c.l.b16 %v574
        %v997 = vunpack.c.l.b16 %v575
        %v998 = vunpack.c.l.b16 %v576
        %v999 = vunpack.c.l.b16 %v577
        %v1000 = vunpack.c.l.b16 %v578
        %v1001 = vunpack.c.l.b16 %v579
        %v1002 = vunpack.c.l.b16 %v580
        %v1003 = vunpack.c.l.b16 %v581
        %v1004 = vunpack.c.l.b16 %v582
        %v1005 = vunpack.c.l.b16 %v583
        %v1006 = vunpack.c.l.b16 %v584
        %v1007 = vunpack.c.l.b16 %v585
        %v1008 = vunpack.c.l.b16 %v586
        %v1009 = vunpack.c.l.b16 %v587
        %v1010 = vunpack.c.l.b16 %v588
        %v1011 = vunpack.c.l.b16 %v589
        %v1012 = vunpack.c.l.b16 %v590
        %v1013 = vpack.c.b16 %v990, %v989
        %v1014 = vpack.c.b16 %v992, %v991
        %v1015 = vpack.c.b16 %v994, %v993
        %v1016 = vpack.c.b16 %v996, %v995
        %v1017 = vpack.c.b16 %v998, %v997
        %v1018 = vpack.c.b16 %v1000, %v999
        %v1019 = vpack.c.b16 %v1002, %v1001
        %v1020 = vpack.c.b16 %v1004, %v1003
        %v1021 = vpack.c.b16 %v1006, %v1005
        %v1022 = vpack.c.b16 %v1008, %v1007
        %v1023 = vpack.c.b16 %v1010, %v1009
        %v1024 = vpack.c.b16 %v1012, %v1011
        %v1038 = vsel %vm373, %v954, 0
        %v1041 = vsel %vm373, %v956, 0
        %v1044 = vsel %vm373, %v958, 0
        %v1047 = vsel %vm373, %v960, 0
        %1049 = vmatprep.subr.bf16.mxu0 0
        %1050 = vmatpush1.bf16.msra.mxu0 %v1020
        %1051 = vmatprep.subr.bf16.mxu0 0
        %1052 = vmatpush1.bf16.msra.mxu0 %v1019
        %1053 = vmatprep.subr.bf16.mxu0 0
        %1054 = vmatpush1.bf16.msra.mxu0 %v1018
        %1055 = vmatprep.subr.bf16.mxu0 0
        %1056 = vmatpush1.bf16.msra.mxu0 %v1017
        %1057 = vmatprep.subr.bf16.mxu0 0
        %1058 = vmatpush1.bf16.msra.mxu0 %v1016
        %1059 = vmatprep.subr.bf16.mxu0 0
        %1060 = vmatpush1.bf16.msra.mxu0 %v1015
        %1061 = vmatprep.subr.bf16.mxu0 0
        %1062 = vmatpush1.bf16.msra.mxu0 %v1014
        %1063 = vmatprep.subr.bf16.mxu0 0
        %1064 = vmatpush1.bf16.msra.mxu0 %v1013
        %1065 = vmatprep.subr.bf16.mxu0 0
        %1066 = vmatpush2.bf16.msra.mxu0 0
        %1067 = vmatprep.subr.bf16.mxu0 0
        %1068 = vmatpush2.bf16.msra.mxu0 0
        %1069 = vmatprep.subr.bf16.mxu0 0
        %1070 = vmatpush2.bf16.msra.mxu0 0
        %1071 = vmatprep.subr.bf16.mxu0 0
        %1072 = vmatpush2.bf16.msra.mxu0 0
        %1073 = vmatprep.subr.bf16.mxu0 0
        %1074 = vmatpush2.bf16.msra.mxu0 %v1024
        %1075 = vmatprep.subr.bf16.mxu0 0
        %1076 = vmatpush2.bf16.msra.mxu0 %v1023
        %1077 = vmatprep.subr.bf16.mxu0 0
        %1078 = vmatpush2.bf16.msra.mxu0 %v1022
        %1079 = vmatprep.subr.bf16.mxu0 0
        %1080 = vmatpush2.bf16.msra.mxu0 %v1021
        %1081 = vmatprep.mubr.bf16.mxu0 %v1038
        %1082 = vmatmul.mubr.bf16.gmra.mxu0 %v953
        %v1083 = vpop.f32.mrf.mxu0
        %v1084 = vadd.f32 %v899, %v1083
        %v1085 = vpop.f32.mrf.mxu0
        %v1086 = vpop.f32.mrf.mxu0
        %v1087 = vadd.f32 %v902, %v1086
        %v1088 = vpop.f32.mrf.mxu0
        %1089 = vmatprep.mubr.bf16.mxu0 %v1041
        %1090 = vmatmul.mubr.bf16.gmra.mxu0 %v955
        %v1091 = vpop.f32.mrf.mxu0
        %v1092 = vadd.f32 %v907, %v1091
        %v1093 = vpop.f32.mrf.mxu0
        %v1094 = vpop.f32.mrf.mxu0
        %v1095 = vadd.f32 %v910, %v1094
        %v1096 = vpop.f32.mrf.mxu0
        %1097 = vmatprep.mubr.bf16.mxu0 %v1044
        %1098 = vmatmul.mubr.bf16.gmra.mxu0 %v957
        %v1099 = vpop.f32.mrf.mxu0
        %v1100 = vadd.f32 %v915, %v1099
        %v1101 = vpop.f32.mrf.mxu0
        %v1102 = vpop.f32.mrf.mxu0
        %v1103 = vadd.f32 %v918, %v1102
        %v1104 = vpop.f32.mrf.mxu0
        %1105 = vmatprep.mubr.bf16.mxu0 %v1047
        %1106 = vmatmul.mubr.bf16.gmra.mxu0 %v959
        %v1107 = vpop.f32.mrf.mxu0
        %v1108 = vadd.f32 %v923, %v1107
        %v1109 = vpop.f32.mrf.mxu0
        %v1110 = vpop.f32.mrf.mxu0
        %v1111 = vadd.f32 %v926, %v1110
        %v1112 = vpop.f32.mrf.mxu0
        %1113 = vdwg.mxu0
        %s1114 = scalar_lea.vmem [#allocation2], 32
        %v1115 = vld [vmem:[%s1114] sm:$0xff]
        %v1116 = vld [vmem:[%s1114 + $0x10] sm:$0xff]
        %v1117 = vld [vmem:[%s1114 + $0x20] sm:$0xff]
        %v1118 = vld [vmem:[%s1114 + $0x30] sm:$0xff]
        %v1119 = vld [vmem:[%s1114 + $0x40] sm:$0xff]
        %v1120 = vld [vmem:[%s1114 + $0x50] sm:$0xff]
        %v1121 = vld [vmem:[%s1114 + $0x60] sm:$0xff]
        %v1122 = vld [vmem:[%s1114 + $0x70] sm:$0xff]
        %v1123 = vpack.c.bf16 %v1115, %v1115
        %v1124 = vpack.c.bf16 %v1116, %v1116
        %v1125 = vpack.c.bf16 %v1117, %v1117
        %v1126 = vpack.c.bf16 %v1118, %v1118
        %v1127 = vpack.c.bf16 %v1119, %v1119
        %v1128 = vpack.c.bf16 %v1120, %v1120
        %v1129 = vpack.c.bf16 %v1121, %v1121
        %v1130 = vpack.c.bf16 %v1122, %v1122
        %1131 = vst.msk [vmem:[#allocation3] sm:$0xf] %vm453, %v1123
        %1132 = vst.msk [vmem:[#allocation3 + $0x8] sm:$0xf] %vm453, %v1124
        %1133 = vst.msk [vmem:[#allocation3 + $0x10] sm:$0xf] %vm453, %v1125
        %1134 = vst.msk [vmem:[#allocation3 + $0x18] sm:$0xf] %vm453, %v1126
        %1135 = vst.msk [vmem:[#allocation3 + $0x20] sm:$0xf] %vm453, %v1127
        %1136 = vst.msk [vmem:[#allocation3 + $0x28] sm:$0xf] %vm453, %v1128
        %1137 = vst.msk [vmem:[#allocation3 + $0x30] sm:$0xf] %vm453, %v1129
        %1138 = vst.msk [vmem:[#allocation3 + $0x38] sm:$0xf] %vm453, %v1130
        %v1139 = vld [vmem:[%s1114 + $0x1] sm:$0xff]
        %v1140 = vld [vmem:[%s1114 + $0x11] sm:$0xff]
        %v1141 = vld [vmem:[%s1114 + $0x21] sm:$0xff]
        %v1142 = vld [vmem:[%s1114 + $0x31] sm:$0xff]
        %v1143 = vld [vmem:[%s1114 + $0x41] sm:$0xff]
        %v1144 = vld [vmem:[%s1114 + $0x51] sm:$0xff]
        %v1145 = vld [vmem:[%s1114 + $0x61] sm:$0xff]
        %v1146 = vld [vmem:[%s1114 + $0x71] sm:$0xff]
        %v1147 = vpack.c.bf16 %v1139, %v1139
        %v1148 = vpack.c.bf16 %v1140, %v1140
        %v1149 = vpack.c.bf16 %v1141, %v1141
        %v1150 = vpack.c.bf16 %v1142, %v1142
        %v1151 = vpack.c.bf16 %v1143, %v1143
        %v1152 = vpack.c.bf16 %v1144, %v1144
        %v1153 = vpack.c.bf16 %v1145, %v1145
        %v1154 = vpack.c.bf16 %v1146, %v1146
        %v1163 = vunpack.c.l.b16 %v1147
        %v1164 = vunpack.c.l.b16 %v1148
        %v1165 = vunpack.c.l.b16 %v1149
        %v1166 = vunpack.c.l.b16 %v1150
        %v1167 = vunpack.c.l.b16 %v1151
        %v1168 = vunpack.c.l.b16 %v1152
        %v1169 = vunpack.c.l.b16 %v1153
        %v1170 = vunpack.c.l.b16 %v1154
        %v1171 = vpack.c.b16 %v1163, %v1163
        %v1172 = vpack.c.b16 %v1164, %v1164
        %v1173 = vpack.c.b16 %v1165, %v1165
        %v1174 = vpack.c.b16 %v1166, %v1166
        %v1175 = vpack.c.b16 %v1167, %v1167
        %v1176 = vpack.c.b16 %v1168, %v1168
        %v1177 = vpack.c.b16 %v1169, %v1169
        %v1178 = vpack.c.b16 %v1170, %v1170
        %1179 = vrot.lane.b32.xlu0 %v1171, 64
        %v1180 = vpop.permute.xlu0 %1179
        %1181 = vrot.lane.b32.xlu0 %v1172, 64
        %v1182 = vpop.permute.xlu0 %1181
        %1183 = vrot.lane.b32.xlu0 %v1173, 64
        %v1184 = vpop.permute.xlu0 %1183
        %1185 = vrot.lane.b32.xlu0 %v1174, 64
        %v1186 = vpop.permute.xlu0 %1185
        %1187 = vrot.lane.b32.xlu0 %v1175, 64
        %v1188 = vpop.permute.xlu0 %1187
        %1189 = vrot.lane.b32.xlu0 %v1176, 64
        %v1190 = vpop.permute.xlu0 %1189
        %1191 = vrot.lane.b32.xlu0 %v1177, 64
        %v1192 = vpop.permute.xlu0 %1191
        %1193 = vrot.lane.b32.xlu0 %v1178, 64
        %v1194 = vpop.permute.xlu0 %1193
        %1203 = vst.msk [vmem:[#allocation3] sm:$0xf] %vm526, %v1180
        %1204 = vst.msk [vmem:[#allocation3 + $0x8] sm:$0xf] %vm526, %v1182
        %1205 = vst.msk [vmem:[#allocation3 + $0x10] sm:$0xf] %vm526, %v1184
        %1206 = vst.msk [vmem:[#allocation3 + $0x18] sm:$0xf] %vm526, %v1186
        %1207 = vst.msk [vmem:[#allocation3 + $0x20] sm:$0xf] %vm526, %v1188
        %1208 = vst.msk [vmem:[#allocation3 + $0x28] sm:$0xf] %vm526, %v1190
        %1209 = vst.msk [vmem:[#allocation3 + $0x30] sm:$0xf] %vm526, %v1192
        %1210 = vst.msk [vmem:[#allocation3 + $0x38] sm:$0xf] %vm526, %v1194
        %v1211 = vld [vmem:[%s1114 + $0x2] sm:$0xff]
        %v1212 = vld [vmem:[%s1114 + $0x12] sm:$0xff]
        %v1213 = vld [vmem:[%s1114 + $0x22] sm:$0xff]
        %v1214 = vld [vmem:[%s1114 + $0x32] sm:$0xff]
        %v1215 = vld [vmem:[%s1114 + $0x42] sm:$0xff]
        %v1216 = vld [vmem:[%s1114 + $0x52] sm:$0xff]
        %v1217 = vld [vmem:[%s1114 + $0x62] sm:$0xff]
        %v1218 = vld [vmem:[%s1114 + $0x72] sm:$0xff]
        %v1219 = vpack.c.bf16 %v1211, %v1211
        %v1220 = vpack.c.bf16 %v1212, %v1212
        %v1221 = vpack.c.bf16 %v1213, %v1213
        %v1222 = vpack.c.bf16 %v1214, %v1214
        %v1223 = vpack.c.bf16 %v1215, %v1215
        %v1224 = vpack.c.bf16 %v1216, %v1216
        %v1225 = vpack.c.bf16 %v1217, %v1217
        %v1226 = vpack.c.bf16 %v1218, %v1218
        %1227 = vst.msk [vmem:[#allocation3 + $0x4] sm:$0xf] %vm453, %v1219
        %1228 = vst.msk [vmem:[#allocation3 + $0xc] sm:$0xf] %vm453, %v1220
        %1229 = vst.msk [vmem:[#allocation3 + $0x14] sm:$0xf] %vm453, %v1221
        %1230 = vst.msk [vmem:[#allocation3 + $0x1c] sm:$0xf] %vm453, %v1222
        %1231 = vst.msk [vmem:[#allocation3 + $0x24] sm:$0xf] %vm453, %v1223
        %1232 = vst.msk [vmem:[#allocation3 + $0x2c] sm:$0xf] %vm453, %v1224
        %1233 = vst.msk [vmem:[#allocation3 + $0x34] sm:$0xf] %vm453, %v1225
        %1234 = vst.msk [vmem:[#allocation3 + $0x3c] sm:$0xf] %vm453, %v1226
        %v1235 = vld [vmem:[#allocation3] sm:$0xff]
        %v1236 = vld [vmem:[#allocation3 + $0x8] sm:$0xff]
        %v1237 = vld [vmem:[#allocation3 + $0x10] sm:$0xff]
        %v1238 = vld [vmem:[#allocation3 + $0x18] sm:$0xff]
        %v1239 = vld [vmem:[#allocation3 + $0x20] sm:$0xff]
        %v1240 = vld [vmem:[#allocation3 + $0x28] sm:$0xff]
        %v1241 = vld [vmem:[#allocation3 + $0x30] sm:$0xff]
        %v1242 = vld [vmem:[#allocation3 + $0x38] sm:$0xff]
        %s1243 = scalar_lea.vmem %s3, 192
        %v1244 = vld [vmem:[%s1243] sm:$0xf]
        %v1245 = vld [vmem:[%s1243 + $0x4] sm:$0xf]
        %v1246 = vld [vmem:[%s1243 + $0x8] sm:$0xf]
        %v1247 = vld [vmem:[%s1243 + $0xc] sm:$0xf]
        %v1248 = vld [vmem:[%s1243 + $0x10] sm:$0xf]
        %v1249 = vld [vmem:[%s1243 + $0x14] sm:$0xf]
        %v1250 = vld [vmem:[%s1243 + $0x18] sm:$0xf]
        %v1251 = vld [vmem:[%s1243 + $0x1c] sm:$0xf]
        %v1252 = vld [vmem:[%s1243 + $0x20] sm:$0xf]
        %v1253 = vld [vmem:[%s1243 + $0x24] sm:$0xf]
        %v1254 = vld [vmem:[%s1243 + $0x28] sm:$0xf]
        %v1255 = vld [vmem:[%s1243 + $0x2c] sm:$0xf]
        %v1256 = vld [vmem:[%s1243 + $0x30] sm:$0xf]
        %v1257 = vld [vmem:[%s1243 + $0x34] sm:$0xf]
        %v1258 = vld [vmem:[%s1243 + $0x38] sm:$0xf]
        %v1259 = vld [vmem:[%s1243 + $0x3c] sm:$0xf]
        %v1260 = vld [vmem:[%s1243 + $0x40] sm:$0xf]
        %v1261 = vld [vmem:[%s1243 + $0x44] sm:$0xf]
        %v1262 = vld [vmem:[%s1243 + $0x48] sm:$0xf]
        %v1263 = vld [vmem:[%s1243 + $0x4c] sm:$0xf]
        %v1264 = vld [vmem:[%s1243 + $0x50] sm:$0xf]
        %v1265 = vld [vmem:[%s1243 + $0x54] sm:$0xf]
        %v1266 = vld [vmem:[%s1243 + $0x58] sm:$0xf]
        %v1267 = vld [vmem:[%s1243 + $0x5c] sm:$0xf]
        %v1276 = vunpack.c.l.b16 %v1235
        %v1277 = vunpack.c.h.b16 %v1235
        %v1278 = vunpack.c.l.b16 %v1236
        %v1279 = vunpack.c.h.b16 %v1236
        %v1280 = vunpack.c.l.b16 %v1237
        %v1281 = vunpack.c.h.b16 %v1237
        %v1282 = vunpack.c.l.b16 %v1238
        %v1283 = vunpack.c.h.b16 %v1238
        %v1284 = vunpack.c.l.b16 %v1239
        %v1285 = vunpack.c.h.b16 %v1239
        %v1286 = vunpack.c.l.b16 %v1240
        %v1287 = vunpack.c.h.b16 %v1240
        %v1288 = vunpack.c.l.b16 %v1241
        %v1289 = vunpack.c.h.b16 %v1241
        %v1290 = vunpack.c.l.b16 %v1242
        %v1291 = vunpack.c.h.b16 %v1242
        %v1292 = vpack.c.b16 %v1278, %v1276
        %v1293 = vpack.c.b16 %v1279, %v1277
        %v1294 = vpack.c.b16 %v1282, %v1280
        %v1295 = vpack.c.b16 %v1283, %v1281
        %v1296 = vpack.c.b16 %v1286, %v1284
        %v1297 = vpack.c.b16 %v1287, %v1285
        %v1298 = vpack.c.b16 %v1290, %v1288
        %v1299 = vpack.c.b16 %v1291, %v1289
        %v1328 = vunpack.c.l.b16 %v1244
        %v1329 = vunpack.c.l.b16 %v1245
        %v1330 = vunpack.c.l.b16 %v1246
        %v1331 = vunpack.c.l.b16 %v1247
        %v1332 = vunpack.c.l.b16 %v1248
        %v1333 = vunpack.c.l.b16 %v1249
        %v1334 = vunpack.c.l.b16 %v1250
        %v1335 = vunpack.c.l.b16 %v1251
        %v1336 = vunpack.c.l.b16 %v1252
        %v1337 = vunpack.c.l.b16 %v1253
        %v1338 = vunpack.c.l.b16 %v1254
        %v1339 = vunpack.c.l.b16 %v1255
        %v1340 = vunpack.c.l.b16 %v1256
        %v1341 = vunpack.c.l.b16 %v1257
        %v1342 = vunpack.c.l.b16 %v1258
        %v1343 = vunpack.c.l.b16 %v1259
        %v1344 = vunpack.c.l.b16 %v1260
        %v1345 = vunpack.c.l.b16 %v1261
        %v1346 = vunpack.c.l.b16 %v1262
        %v1347 = vunpack.c.l.b16 %v1263
        %v1348 = vunpack.c.l.b16 %v1264
        %v1349 = vunpack.c.l.b16 %v1265
        %v1350 = vunpack.c.l.b16 %v1266
        %v1351 = vunpack.c.l.b16 %v1267
        %v1352 = vpack.c.b16 %v1329, %v1328
        %v1353 = vpack.c.b16 %v1331, %v1330
        %v1354 = vpack.c.b16 %v1333, %v1332
        %v1355 = vpack.c.b16 %v1335, %v1334
        %v1356 = vpack.c.b16 %v1337, %v1336
        %v1357 = vpack.c.b16 %v1339, %v1338
        %v1358 = vpack.c.b16 %v1341, %v1340
        %v1359 = vpack.c.b16 %v1343, %v1342
        %v1360 = vpack.c.b16 %v1345, %v1344
        %v1361 = vpack.c.b16 %v1347, %v1346
        %v1362 = vpack.c.b16 %v1349, %v1348
        %v1363 = vpack.c.b16 %v1351, %v1350
        %v1377 = vsel %vm373, %v1293, 0
        %v1380 = vsel %vm373, %v1295, 0
        %v1383 = vsel %vm373, %v1297, 0
        %v1386 = vsel %vm373, %v1299, 0
        %1388 = vmatprep.subr.bf16.mxu0 0
        %1389 = vmatpush1.bf16.msra.mxu0 %v1359
        %1390 = vmatprep.subr.bf16.mxu0 0
        %1391 = vmatpush1.bf16.msra.mxu0 %v1358
        %1392 = vmatprep.subr.bf16.mxu0 0
        %1393 = vmatpush1.bf16.msra.mxu0 %v1357
        %1394 = vmatprep.subr.bf16.mxu0 0
        %1395 = vmatpush1.bf16.msra.mxu0 %v1356
        %1396 = vmatprep.subr.bf16.mxu0 0
        %1397 = vmatpush1.bf16.msra.mxu0 %v1355
        %1398 = vmatprep.subr.bf16.mxu0 0
        %1399 = vmatpush1.bf16.msra.mxu0 %v1354
        %1400 = vmatprep.subr.bf16.mxu0 0
        %1401 = vmatpush1.bf16.msra.mxu0 %v1353
        %1402 = vmatprep.subr.bf16.mxu0 0
        %1403 = vmatpush1.bf16.msra.mxu0 %v1352
        %1404 = vmatprep.subr.bf16.mxu0 0
        %1405 = vmatpush2.bf16.msra.mxu0 0
        %1406 = vmatprep.subr.bf16.mxu0 0
        %1407 = vmatpush2.bf16.msra.mxu0 0
        %1408 = vmatprep.subr.bf16.mxu0 0
        %1409 = vmatpush2.bf16.msra.mxu0 0
        %1410 = vmatprep.subr.bf16.mxu0 0
        %1411 = vmatpush2.bf16.msra.mxu0 0
        %1412 = vmatprep.subr.bf16.mxu0 0
        %1413 = vmatpush2.bf16.msra.mxu0 %v1363
        %1414 = vmatprep.subr.bf16.mxu0 0
        %1415 = vmatpush2.bf16.msra.mxu0 %v1362
        %1416 = vmatprep.subr.bf16.mxu0 0
        %1417 = vmatpush2.bf16.msra.mxu0 %v1361
        %1418 = vmatprep.subr.bf16.mxu0 0
        %1419 = vmatpush2.bf16.msra.mxu0 %v1360
        %1420 = vmatprep.mubr.bf16.mxu0 %v1377
        %1421 = vmatmul.mubr.bf16.gmra.mxu0 %v1292
        %v1422 = vpop.f32.mrf.mxu0
        %v1423 = vadd.f32 0.0, %v1422
        %v1424 = vpop.f32.mrf.mxu0
        %v1425 = vpop.f32.mrf.mxu0
        %v1426 = vadd.f32 0.0, %v1425
        %v1427 = vpop.f32.mrf.mxu0
        %1428 = vmatprep.mubr.bf16.mxu0 %v1380
        %1429 = vmatmul.mubr.bf16.gmra.mxu0 %v1294
        %v1430 = vpop.f32.mrf.mxu0
        %v1431 = vadd.f32 0.0, %v1430
        %v1432 = vpop.f32.mrf.mxu0
        %v1433 = vpop.f32.mrf.mxu0
        %v1434 = vadd.f32 0.0, %v1433
        %v1435 = vpop.f32.mrf.mxu0
        %1436 = vmatprep.mubr.bf16.mxu0 %v1383
        %1437 = vmatmul.mubr.bf16.gmra.mxu0 %v1296
        %v1438 = vpop.f32.mrf.mxu0
        %v1439 = vadd.f32 0.0, %v1438
        %v1440 = vpop.f32.mrf.mxu0
        %v1441 = vpop.f32.mrf.mxu0
        %v1442 = vadd.f32 0.0, %v1441
        %v1443 = vpop.f32.mrf.mxu0
        %1444 = vmatprep.mubr.bf16.mxu0 %v1386
        %1445 = vmatmul.mubr.bf16.gmra.mxu0 %v1298
        %v1446 = vpop.f32.mrf.mxu0
        %v1447 = vadd.f32 0.0, %v1446
        %v1448 = vpop.f32.mrf.mxu0
        %v1449 = vpop.f32.mrf.mxu0
        %v1450 = vadd.f32 0.0, %v1449
        %v1451 = vpop.f32.mrf.mxu0
        %1452 = vdwg.mxu0
        %v1453 = vadd.f32 %v1084, %v1423
        %v1454 = vadd.f32 %v1087, %v1426
        %v1455 = vadd.f32 %v1092, %v1431
        %v1456 = vadd.f32 %v1095, %v1434
        %v1457 = vadd.f32 %v1100, %v1439
        %v1458 = vadd.f32 %v1103, %v1442
        %v1459 = vadd.f32 %v1108, %v1447
        %v1460 = vadd.f32 %v1111, %v1450
        %v1461 = vld [vmem:[%s4] sm:$0x1]
        %v1463 = vlaneseq
        %v1464 = vshrl.u32 %v1463, 7
        %v1465 = vsub.s32 0, %v1464
        %v1466 = vrot.slane %v1461, %v1465
        %v1468 = vadd.f32 %v1453, %v1466
        %v1469 = vadd.f32 %v1454, %v1466
        %v1470 = vadd.f32 %v1455, %v1466
        %v1471 = vadd.f32 %v1456, %v1466
        %v1472 = vadd.f32 %v1457, %v1466
        %v1473 = vadd.f32 %v1458, %v1466
        %v1474 = vadd.f32 %v1459, %v1466
        %v1475 = vadd.f32 %v1460, %v1466
        %v1476 = vmax.f32 %v1468, 0.0
        %v1477 = vmax.f32 %v1469, 0.0
        %v1478 = vmax.f32 %v1470, 0.0
        %v1479 = vmax.f32 %v1471, 0.0
        %v1480 = vmax.f32 %v1472, 0.0
        %v1481 = vmax.f32 %v1473, 0.0
        %v1482 = vmax.f32 %v1474, 0.0
        %v1483 = vmax.f32 %v1475, 0.0
        %1484 = vst [vmem:[%s328] sm:$0xff] %v1476
        %1485 = vst [vmem:[%s328 + $0x8] sm:$0xff] %v1477
        %1486 = vst [vmem:[%s328 + $0x10] sm:$0xff] %v1478
        %1487 = vst [vmem:[%s328 + $0x18] sm:$0xff] %v1479
        %1488 = vst [vmem:[%s328 + $0x20] sm:$0xff] %v1480
        %1489 = vst [vmem:[%s328 + $0x28] sm:$0xff] %v1481
        %1490 = vst [vmem:[%s328 + $0x30] sm:$0xff] %v1482
        %1491 = vst [vmem:[%s328 + $0x38] sm:$0xff] %v1483
        %s1492 = sand.u32 %s183, 1
        %s1493 = scalar_lea.sflag [#allocation5], %s1492
        %s1494 = sand.u32 %s183, 1
        %s1495 = smul.addr %s1494, 64
        %s1496 = scalar_lea.vmem [#allocation4], %s1495
        // Predicated region
        $region41: #{a_call__.5} parent=39 // pred_check
          %p1497 = pneg %p193
        $region42: #{a_call__.5} parent=39 // pred_check_branch
          %1499 = sbr.rel (%p1497) target = $region44
        $region43: #{a_call__.5} parent=39 // pred_region
          %s1500 = smul.u32 8, %s24
          %s1502 = ssub.s32 1024, 1024
          %1503 = vsyncadd %s1493, %s1502
          %s1504 = smul.addr %s23, 8
          %s1505 = sadd.s32 %s1500, %s1504
          %s1506 = smul.addr %s1505, 128
          %s1507 = scalar_lea.hbm %s5, %s1506
          %s1508 = sshll.u32 %s1496, 4
          %s1509 = int_to_ptr.vmem [resolvable:$true] %s1508
          %1514 = dma.vmem_to_hbm [thread:$0]  %s1509, 1024, %s1507, %s1493, 128, 128, 8
        $region44: #{a_call__.5} parent=39 // pred_fallthru
          _
      $region40: #{a_call__.5} parent=5 // pred_fallthru
        _
      %p1515 = scmp.le.s32.totalorder 2, %s14
      // Predicated region
      $region45: #{a_call__.5} parent=5 // pred_check
        %p1516 = pneg %p1515
      $region46: #{a_call__.5} parent=5 // pred_check_branch
        %1518 = sbr.rel (%p1516) target = $region48
      $region47: #{a_call__.5} parent=5 // pred_region
        %s1519 = ssub.s32 %s14, 2
        // Predicated region
        $region49: #{a_call__.5} parent=47 // pred_check
          %p1520 = pneg %p199
        $region50: #{a_call__.5} parent=47 // pred_check_branch
          %1522 = sbr.rel (%p1520) target = $region52
        $region51: #{a_call__.5} parent=47 // pred_region
          %s1523 = sand.u32 %s184, 1
          %s1524 = scalar_lea.sflag [#allocation5], %s1523
          %s1525 = sand.u32 %s184, 1
          %s1526 = smul.addr %s1525, 64
          %s1527 = scalar_lea.vmem [#allocation4], %s1526
          %1528 = dma.done %s1524, 1024
        $region52: #{a_call__.5} parent=47 // pred_fallthru
          _
      $region48: #{a_call__.5} parent=5 // pred_fallthru
        _
    $region6: #{a_call__.5} parent=1 // loop_footer
      %s18 = sadd.s32 1, %s14
    $region7: #{a_call__.5} parent=1 // loop_footer_branch
      %13 = sbr.rel target = $region3
    $region8: #{a_call__.5} parent=1 // loop_exit
      _
    %1529 = vsyncpa [#allocation5], 1
    %s1530 = scalar_lea.sflag [#allocation5], 1
    %1531 = vsyncpa %s1530, 1

// kernel: a_call__.4
$region0: #{a_call__.4}
  #allocation0 [shape = 'u32[]', space=smem, size = 0x4, offset = 0x4, fixed_abs, tag = 'smem constant byte address 0x4 - core index']
  #allocation1 [shape = 'u32[144,128]{1,0:T(1,128)}', space=vmem, size = 0x12000, scoped, tag = 'internal scratch']
  #allocation2 [shape = 'f32[10,18,64]{2,1,0:T(8,128)}', space=vmem, size = 0x1e000, scoped, tag = 'scratch operand']
  #allocation3 [shape = 'bf16[8,16,192]{2,1,0:T(8,128)(2,1)}', space=vmem, size = 0x10000, scoped, tag = 'scratch operand']
  #allocation4 [shape = 'f32[4,16,64]{2,1,0:T(8,128)}', space=vmem, size = 0x8000, scoped, tag = 'scratch operand']
  %s0 = inlined_call_operand.vmem [shape: f32[2,16,16,64], index: 0, kind: input, shape index: {}, may-alias: {0,1,2}]
  %s1 = inlined_call_operand.vmem [shape: f32[2,16,16,64], index: 1, kind: input, shape index: {}, may-alias: {0,1,2}]
  %s2 = inlined_call_operand.vmem [shape: f32[2,16,16,64], index: 2, kind: input, shape index: {}, may-alias: {0,1,2}]
  %s3 = inlined_call_operand.vmem [shape: bf16[3,192,64], index: 3, kind: input, shape index: {}]
  %s4 = inlined_call_operand.vmem [shape: f32[1,64], index: 4, kind: input, shape index: {}]
  %s5 = inlined_call_operand.hbm [shape: f32[2,16,16,64], index: 5, kind: output, shape index: {0}]
  %s6 = inlined_call_operand.vmem [shape: bf16[2,8,8,64], index: 6, kind: output, shape index: {1}]
  %7 = xla_tuple %s5, %s6
  %s8 = sld [smem:[#allocation0]]
  $region61: #{a_call__.4} parent=0
    _
  %s10 = ssub.s32 1, %s8
  %s11 = scalar_select 0, %s10, %s8
  $region1: #{a_call__.4} parent=0
    #allocation5 [shape = 'u8[131072]{0}', space=vmem, size = 0x20000, scoped, tag = 'output window, operand 0']
    #allocation6 [shape = 's32[2]{0}', space=sflag, size = 0x8, scoped, tag = 'scoped memory for a_call__.4']
    %12 = vsyncpa [#allocation6], 0
    %s13 = scalar_lea.sflag [#allocation6], 1
    %14 = vsyncpa %s13, 0
    loop: start=0, step=1, limit=6
    $region2: #{a_call__.4} parent=1 // loop_pre_header
      _
    $region3: #{a_call__.4} parent=1 // loop_header
      %s16 = sphi 0, %s20
      %p17 = scmp.ge.s32.totalorder %s16, 6
      %s23 = sphi 0, %s35
      %s24 = sphi 0, %s31
      %s25 = sphi 0, %s23
      %s26 = sphi 0, %s24
      %s27 = sphi 0, %s25
      %s28 = sphi 0, %s26
      %s48 = sphi 0, %s50
      %s51 = sphi 0, %s48
      %s52 = sphi 0, %s51
      %s68 = sphi 0, %s52
      %s76 = sphi 0, %s78
      %s79 = sphi 0, %s76
      %s80 = sphi 0, %s79
      %s96 = sphi 0, %s80
      %s112 = sphi 0, %s114
      %s115 = sphi 0, %s112
      %s116 = sphi 0, %s115
      %s132 = sphi 0, %s116
      %s136 = sphi 0, %s136
      %s138 = sphi 0, %s136
      %s139 = sphi 0, %s138
      %s153 = sphi 0, %s139
      %s157 = sphi 0, %s157
      %s159 = sphi 0, %s157
      %s160 = sphi 0, %s159
      %s174 = sphi 0, %s160
      %s182 = sphi 0, %s184
      %s185 = sphi 0, %s182
      %s186 = sphi 0, %s185
      %s202 = sphi 0, %s186
      %s210 = sphi 0, %s212
      %s213 = sphi 0, %s210
      %s214 = sphi 0, %s213
      %s230 = sphi 0, %s214
    $region4: #{a_call__.4} parent=1 // loop_header_branch
      %19 = sbr.rel (%p17) target = $region8
    $region5: #{a_call__.4} parent=1 // loop_body
      %s21 = ssub.s32 %s16, 1
      %s22 = ssub.s32 %s16, 2
      %s29 = sadd.s32 1, %s24
      %p30 = scmp.ge.s32.totalorder %s29, 2
      %s31 = scalar_select %p30, 0, %s29
      %s32 = sadd.s32 1, %s23
      %s33 = scalar_select %p30, %s32, %s23
      %p34 = scmp.ge.s32.totalorder %s33, 2
      %s35 = scalar_select %p34, 0, %s33
      %s36 = smul.u32 %s24, 8
      %s37 = ssub.s32 %s36, 1
      %p38 = scmp.gt.s32.totalorder %s37, 0
      %s39 = scalar_select %p38, %s37, 0
      %s40 = smul.u32 %s31, 8
      %s41 = ssub.s32 %s40, 1
      %p42 = scmp.gt.s32.totalorder %s41, 0
      %s43 = scalar_select %p42, %s41, 0
      %s44 = ssub.s32 %s23, %s35
      %s45 = ssub.s32 %s39, %s43
      %s46 = sor.u32 %s44, %s45
      %p47 = scmp.eq.s32.totalorder %s46, 0
      %s49 = sadd.s32 %s48, 1
      %s50 = scalar_select %p47, %s48, %s49
      %p53 = pneg %p47
      %p54 = scmp.eq.s32.totalorder %s16, 3
      %p55 = por %p53, %p54
      %p56 = scmp.ne.s32.totalorder %s48, %s51
      %p57 = scmp.eq.s32.totalorder %s16, 0
      %p58 = por %p56, %p57
      %p59 = scmp.ne.s32.totalorder %s48, %s51
      %p60 = scmp.eq.s32.totalorder %s21, 3
      %p61 = por %p59, %p60
      %p62 = scmp.ne.s32.totalorder %s51, %s52
      %p63 = scmp.eq.s32.totalorder %s21, 0
      %p64 = por %p62, %p63
      %p65 = scmp.ne.s32.totalorder %s51, %s52
      %p66 = scmp.eq.s32.totalorder %s22, 3
      %p67 = por %p65, %p66
      %p69 = scmp.ne.s32.totalorder %s52, %s68
      %p70 = scmp.eq.s32.totalorder %s22, 0
      %p71 = por %p69, %p70
      %s72 = ssub.s32 %s23, %s35
      %s73 = ssub.s32 %s24, %s31
      %s74 = sor.u32 %s72, %s73
      %p75 = scmp.eq.s32.totalorder %s74, 0
      %s77 = sadd.s32 %s76, 1
      %s78 = scalar_select %p75, %s76, %s77
      %p81 = pneg %p75
      %p82 = scmp.eq.s32.totalorder %s16, 3
      %p83 = por %p81, %p82
      %p84 = scmp.ne.s32.totalorder %s76, %s79
      %p85 = scmp.eq.s32.totalorder %s16, 0
      %p86 = por %p84, %p85
      %p87 = scmp.ne.s32.totalorder %s76, %s79
      %p88 = scmp.eq.s32.totalorder %s21, 3
      %p89 = por %p87, %p88
      %p90 = scmp.ne.s32.totalorder %s79, %s80
      %p91 = scmp.eq.s32.totalorder %s21, 0
      %p92 = por %p90, %p91
      %p93 = scmp.ne.s32.totalorder %s79, %s80
      %p94 = scmp.eq.s32.totalorder %s22, 3
      %p95 = por %p93, %p94
      %p97 = scmp.ne.s32.totalorder %s80, %s96
      %p98 = scmp.eq.s32.totalorder %s22, 0
      %p99 = por %p97, %p98
      %s100 = smul.u32 %s24, 8
      %s101 = sadd.s32 %s100, 8
      %p102 = scmp.lt.s32.totalorder %s101, 15
      %s103 = scalar_select %p102, %s101, 15
      %s104 = smul.u32 %s31, 8
      %s105 = sadd.s32 %s104, 8
      %p106 = scmp.lt.s32.totalorder %s105, 15
      %s107 = scalar_select %p106, %s105, 15
      %s108 = ssub.s32 %s23, %s35
      %s109 = ssub.s32 %s103, %s107
      %s110 = sor.u32 %s108, %s109
      %p111 = scmp.eq.s32.totalorder %s110, 0
      %s113 = sadd.s32 %s112, 1
      %s114 = scalar_select %p111, %s112, %s113
      %p117 = pneg %p111
      %p118 = scmp.eq.s32.totalorder %s16, 3
      %p119 = por %p117, %p118
      %p120 = scmp.ne.s32.totalorder %s112, %s115
      %p121 = scmp.eq.s32.totalorder %s16, 0
      %p122 = por %p120, %p121
      %p123 = scmp.ne.s32.totalorder %s112, %s115
      %p124 = scmp.eq.s32.totalorder %s21, 3
      %p125 = por %p123, %p124
      %p126 = scmp.ne.s32.totalorder %s115, %s116
      %p127 = scmp.eq.s32.totalorder %s21, 0
      %p128 = por %p126, %p127
      %p129 = scmp.ne.s32.totalorder %s115, %s116
      %p130 = scmp.eq.s32.totalorder %s22, 3
      %p131 = por %p129, %p130
      %p133 = scmp.ne.s32.totalorder %s116, %s132
      %p134 = scmp.eq.s32.totalorder %s22, 0
      %p135 = por %p133, %p134
      %s137 = sadd.s32 %s136, 1
      %p140 = scmp.eq.s32.totalorder %s16, 3
      %p141 = scmp.ne.s32.totalorder %s136, %s138
      %p142 = scmp.eq.s32.totalorder %s16, 0
      %p143 = por %p141, %p142
      %p144 = scmp.ne.s32.totalorder %s136, %s138
      %p145 = scmp.eq.s32.totalorder %s21, 3
      %p146 = por %p144, %p145
      %p147 = scmp.ne.s32.totalorder %s138, %s139
      %p148 = scmp.eq.s32.totalorder %s21, 0
      %p149 = por %p147, %p148
      %p150 = scmp.ne.s32.totalorder %s138, %s139
      %p151 = scmp.eq.s32.totalorder %s22, 3
      %p152 = por %p150, %p151
      %p154 = scmp.ne.s32.totalorder %s139, %s153
      %p155 = scmp.eq.s32.totalorder %s22, 0
      %p156 = por %p154, %p155
      %s158 = sadd.s32 %s157, 1
      %p161 = scmp.eq.s32.totalorder %s16, 3
      %p162 = scmp.ne.s32.totalorder %s157, %s159
      %p163 = scmp.eq.s32.totalorder %s16, 0
      %p164 = por %p162, %p163
      %p165 = scmp.ne.s32.totalorder %s157, %s159
      %p166 = scmp.eq.s32.totalorder %s21, 3
      %p167 = por %p165, %p166
      %p168 = scmp.ne.s32.totalorder %s159, %s160
      %p169 = scmp.eq.s32.totalorder %s21, 0
      %p170 = por %p168, %p169
      %p171 = scmp.ne.s32.totalorder %s159, %s160
      %p172 = scmp.eq.s32.totalorder %s22, 3
      %p173 = por %p171, %p172
      %p175 = scmp.ne.s32.totalorder %s160, %s174
      %p176 = scmp.eq.s32.totalorder %s22, 0
      %p177 = por %p175, %p176
      %s178 = ssub.s32 %s23, %s35
      %s179 = ssub.s32 %s24, %s31
      %s180 = sor.u32 %s178, %s179
      %p181 = scmp.eq.s32.totalorder %s180, 0
      %s183 = sadd.s32 %s182, 1
      %s184 = scalar_select %p181, %s182, %s183
      %p187 = pneg %p181
      %p188 = scmp.eq.s32.totalorder %s16, 3
      %p189 = por %p187, %p188
      %p190 = scmp.ne.s32.totalorder %s182, %s185
      %p191 = scmp.eq.s32.totalorder %s16, 0
      %p192 = por %p190, %p191
      %p193 = scmp.ne.s32.totalorder %s182, %s185
      %p194 = scmp.eq.s32.totalorder %s21, 3
      %p195 = por %p193, %p194
      %p196 = scmp.ne.s32.totalorder %s185, %s186
      %p197 = scmp.eq.s32.totalorder %s21, 0
      %p198 = por %p196, %p197
      %p199 = scmp.ne.s32.totalorder %s185, %s186
      %p200 = scmp.eq.s32.totalorder %s22, 3
      %p201 = por %p199, %p200
      %p203 = scmp.ne.s32.totalorder %s186, %s202
      %p204 = scmp.eq.s32.totalorder %s22, 0
      %p205 = por %p203, %p204
      %s206 = ssub.s32 %s23, %s35
      %s207 = ssub.s32 %s24, %s31
      %s208 = sor.u32 %s206, %s207
      %p209 = scmp.eq.s32.totalorder %s208, 0
      %s211 = sadd.s32 %s210, 1
      %s212 = scalar_select %p209, %s210, %s211
      %p215 = pneg %p209
      %p216 = scmp.eq.s32.totalorder %s16, 3
      %p217 = por %p215, %p216
      %p218 = scmp.ne.s32.totalorder %s210, %s213
      %p219 = scmp.eq.s32.totalorder %s16, 0
      %p220 = por %p218, %p219
      %p221 = scmp.ne.s32.totalorder %s210, %s213
      %p222 = scmp.eq.s32.totalorder %s21, 3
      %p223 = por %p221, %p222
      %p224 = scmp.ne.s32.totalorder %s213, %s214
      %p225 = scmp.eq.s32.totalorder %s21, 0
      %p226 = por %p224, %p225
      %p227 = scmp.ne.s32.totalorder %s213, %s214
      %p228 = scmp.eq.s32.totalorder %s22, 3
      %p229 = por %p227, %p228
      %p231 = scmp.ne.s32.totalorder %s214, %s230
      %p232 = scmp.eq.s32.totalorder %s22, 0
      %p233 = por %p231, %p232
      %p234 = scmp.le.s32.totalorder 1, %s16
      %p235 = scmp.lt.s32.totalorder %s16, 5
      %p236 = pnand %p234, %p235
      %p237 = pneg %p236
      // Predicated region
      $region9: #{a_call__.4} parent=5 // pred_check
        _
      $region10: #{a_call__.4} parent=5 // pred_check_branch
        %239 = sbr.rel (%p236) target = $region12
      $region11: #{a_call__.4} parent=5 // pred_region
        %s240 = ssub.s32 %s16, 1
        // Predicated region
        $region13: #{a_call__.4} parent=11 // pred_check
          %p241 = pneg %p149
        $region14: #{a_call__.4} parent=11 // pred_check_branch
          %243 = sbr.rel (%p241) target = $region16
        $region15: #{a_call__.4} parent=11 // pred_region
          _
        $region16: #{a_call__.4} parent=11 // pred_fallthru
          _
        // Predicated region
        $region17: #{a_call__.4} parent=11 // pred_check
          %p244 = pneg %p170
        $region18: #{a_call__.4} parent=11 // pred_check_branch
          %246 = sbr.rel (%p244) target = $region20
        $region19: #{a_call__.4} parent=11 // pred_region
          _
        $region20: #{a_call__.4} parent=11 // pred_fallthru
          _
      $region12: #{a_call__.4} parent=5 // pred_fallthru
        _
      %p247 = scmp.lt.s32.totalorder %s16, 4
      // Predicated region
      $region21: #{a_call__.4} parent=5 // pred_check
        %p248 = pneg %p247
      $region22: #{a_call__.4} parent=5 // pred_check_branch
        %250 = sbr.rel (%p248) target = $region24
      $region23: #{a_call__.4} parent=5 // pred_region
        // Predicated region
        $region25: #{a_call__.4} parent=23 // pred_check
          %p251 = pneg %p58
        $region26: #{a_call__.4} parent=23 // pred_check_branch
          %253 = sbr.rel (%p251) target = $region28
        $region27: #{a_call__.4} parent=23 // pred_region
          %s254 = smul.u32 %s24, 8
          %s255 = ssub.s32 %s254, 1
          %p256 = scmp.gt.s32.totalorder %s255, 0
          %s257 = scalar_select %p256, %s255, 0
          %p258 = scmp.lt.s32.totalorder %s23, 1
          %s259 = scalar_select %p258, %s23, 1
          %p260 = scmp.lt.s32.totalorder %s257, 15
          %s261 = scalar_select %p260, %s257, 15
          %s262 = smul.addr %s261, 2
          %s263 = smul.addr %s259, 32
          %s264 = sadd.s32 %s262, %s263
          %s265 = smul.addr %s264, 8
          %s266 = scalar_lea.vmem %s0, %s265
          %s267 = smul.u32 %s24, 8
          %s268 = ssub.s32 %s267, 1
          %p269 = scmp.gt.s32.totalorder %s268, 0
          %s270 = scalar_select %p269, %s268, 0
        $region28: #{a_call__.4} parent=23 // pred_fallthru
          _
        // Predicated region
        $region29: #{a_call__.4} parent=23 // pred_check
          %p271 = pneg %p86
        $region30: #{a_call__.4} parent=23 // pred_check_branch
          %273 = sbr.rel (%p271) target = $region32
        $region31: #{a_call__.4} parent=23 // pred_region
          %s274 = smul.u32 8, %s24
          %p275 = scmp.lt.s32.totalorder %s23, 1
          %s276 = scalar_select %p275, %s23, 1
          %p277 = scmp.lt.s32.totalorder %s274, 15
          %s278 = scalar_select %p277, %s274, 15
          %s279 = smul.addr %s278, 2
          %s280 = smul.addr %s276, 32
          %s281 = sadd.s32 %s279, %s280
          %s282 = smul.addr %s281, 8
          %s283 = scalar_lea.vmem %s1, %s282
          %s284 = smul.u32 8, %s24
        $region32: #{a_call__.4} parent=23 // pred_fallthru
          _
        // Predicated region
        $region33: #{a_call__.4} parent=23 // pred_check
          %p285 = pneg %p122
        $region34: #{a_call__.4} parent=23 // pred_check_branch
          %287 = sbr.rel (%p285) target = $region36
        $region35: #{a_call__.4} parent=23 // pred_region
          %s288 = smul.u32 %s24, 8
          %s289 = sadd.s32 %s288, 8
          %p290 = scmp.lt.s32.totalorder %s289, 15
          %s291 = scalar_select %p290, %s289, 15
          %p292 = scmp.lt.s32.totalorder %s23, 1
          %s293 = scalar_select %p292, %s23, 1
          %p294 = scmp.lt.s32.totalorder %s291, 15
          %s295 = scalar_select %p294, %s291, 15
          %s296 = smul.addr %s295, 2
          %s297 = smul.addr %s293, 32
          %s298 = sadd.s32 %s296, %s297
          %s299 = smul.addr %s298, 8
          %s300 = scalar_lea.vmem %s2, %s299
          %s301 = smul.u32 %s24, 8
          %s302 = sadd.s32 %s301, 8
          %p303 = scmp.lt.s32.totalorder %s302, 15
          %s304 = scalar_select %p303, %s302, 15
        $region36: #{a_call__.4} parent=23 // pred_fallthru
          _
      $region24: #{a_call__.4} parent=5 // pred_fallthru
        _
      %p305 = scmp.le.s32.totalorder 1, %s16
      %p306 = scmp.lt.s32.totalorder %s16, 5
      %p307 = pnand %p305, %p306
      %p308 = pneg %p307
      // Predicated region
      $region37: #{a_call__.4} parent=5 // pred_check
        _
      $region38: #{a_call__.4} parent=5 // pred_check_branch
        %310 = sbr.rel (%p307) target = $region40
      $region39: #{a_call__.4} parent=5 // pred_region
        %s311 = ssub.s32 %s16, 1
        %s312 = smul.u32 %s26, 8
        %s313 = ssub.s32 %s312, 1
        %p314 = scmp.gt.s32.totalorder %s313, 0
        %s315 = scalar_select %p314, %s313, 0
        %p316 = scmp.lt.s32.totalorder %s25, 1
        %s317 = scalar_select %p316, %s25, 1
        %p318 = scmp.lt.s32.totalorder %s315, 15
        %s319 = scalar_select %p318, %s315, 15
        %s320 = smul.addr %s319, 2
        %s321 = smul.addr %s317, 32
        %s322 = sadd.s32 %s320, %s321
        %s323 = smul.addr %s322, 8
        %s324 = scalar_lea.vmem %s0, %s323
        %p325 = pneg %p64
        %p326 = pneg %p61
        %s327 = smul.u32 8, %s26
        %p328 = scmp.lt.s32.totalorder %s25, 1
        %s329 = scalar_select %p328, %s25, 1
        %p330 = scmp.lt.s32.totalorder %s327, 15
        %s331 = scalar_select %p330, %s327, 15
        %s332 = smul.addr %s331, 2
        %s333 = smul.addr %s329, 32
        %s334 = sadd.s32 %s332, %s333
        %s335 = smul.addr %s334, 8
        %s336 = scalar_lea.vmem %s1, %s335
        %p337 = pneg %p92
        %p338 = pneg %p89
        %s339 = smul.u32 %s26, 8
        %s340 = sadd.s32 %s339, 8
        %p341 = scmp.lt.s32.totalorder %s340, 15
        %s342 = scalar_select %p341, %s340, 15
        %p343 = scmp.lt.s32.totalorder %s25, 1
        %s344 = scalar_select %p343, %s25, 1
        %p345 = scmp.lt.s32.totalorder %s342, 15
        %s346 = scalar_select %p345, %s342, 15
        %s347 = smul.addr %s346, 2
        %s348 = smul.addr %s344, 32
        %s349 = sadd.s32 %s347, %s348
        %s350 = smul.addr %s349, 8
        %s351 = scalar_lea.vmem %s2, %s350
        %p352 = pneg %p128
        %p353 = pneg %p125
        %p354 = pneg %p149
        %p355 = pneg %p146
        %p356 = pneg %p170
        %p357 = pneg %p167
        %p358 = pneg %p198
        %p359 = pneg %p195
        %s360 = sand.u32 %s185, 1
        %s361 = scalar_lea.sflag [#allocation6], %s360
        %s362 = sand.u32 %s185, 1
        %s363 = smul.addr %s362, 128
        %s364 = scalar_lea.vmem [#allocation5], %s363
        %p365 = pneg %p226
        %p366 = pneg %p223
        %s367 = smul.u32 4, %s26
        %p368 = scmp.lt.s32.totalorder %s25, 1
        %s369 = scalar_select %p368, %s25, 1
        %p370 = scmp.lt.s32.totalorder %s367, 7
        %s371 = scalar_select %p370, %s367, 7
        %s372 = smul.addr %s369, 8
        %s373 = sadd.s32 %s371, %s372
        %s374 = smul.addr %s373, 4
        %s375 = scalar_lea.vmem %s6, %s374
        %s376 = smul.u32 %s26, 8
        %s377 = ssub.s32 %s376, 1
        %p378 = scmp.gt.s32.totalorder %s377, 0
        %s379 = scalar_select %p378, %s377, 0
        %p380 = scmp.lt.s32.totalorder %s25, 1
        %s381 = scalar_select %p380, %s25, 1
        %p382 = scmp.lt.s32.totalorder %s379, 15
        %s383 = scalar_select %p382, %s379, 15
        %s384 = smul.addr %s383, 2
        %s385 = smul.addr %s381, 32
        %s386 = sadd.s32 %s384, %s385
        %s387 = smul.addr %s386, 8
        %s388 = scalar_lea.vmem %s0, %s387
        %s389 = smul.u32 %s26, 8
        %s390 = ssub.s32 %s389, 1
        %p391 = scmp.gt.s32.totalorder %s390, 0
        %s392 = scalar_select %p391, %s390, 0
        %s393 = smul.u32 8, %s26
        %p394 = scmp.lt.s32.totalorder %s25, 1
        %s395 = scalar_select %p394, %s25, 1
        %p396 = scmp.lt.s32.totalorder %s393, 15
        %s397 = scalar_select %p396, %s393, 15
        %s398 = smul.addr %s397, 2
        %s399 = smul.addr %s395, 32
        %s400 = sadd.s32 %s398, %s399
        %s401 = smul.addr %s400, 8
        %s402 = scalar_lea.vmem %s1, %s401
        %s403 = smul.u32 8, %s26
        %s404 = smul.u32 %s26, 8
        %s405 = sadd.s32 %s404, 8
        %p406 = scmp.lt.s32.totalorder %s405, 15
        %s407 = scalar_select %p406, %s405, 15
        %p408 = scmp.lt.s32.totalorder %s25, 1
        %s409 = scalar_select %p408, %s25, 1
        %p410 = scmp.lt.s32.totalorder %s407, 15
        %s411 = scalar_select %p410, %s407, 15
        %s412 = smul.addr %s411, 2
        %s413 = smul.addr %s409, 32
        %s414 = sadd.s32 %s412, %s413
        %s415 = smul.addr %s414, 8
        %s416 = scalar_lea.vmem %s2, %s415
        %s417 = smul.u32 %s26, 8
        %s418 = sadd.s32 %s417, 8
        %p419 = scmp.lt.s32.totalorder %s418, 15
        %s420 = scalar_select %p419, %s418, 15
        %s421 = smul.u32 8, %s26
        %s422 = smul.u32 4, %s26
        %p423 = scmp.lt.s32.totalorder %s25, 1
        %s424 = scalar_select %p423, %s25, 1
        %p425 = scmp.lt.s32.totalorder %s422, 7
        %s426 = scalar_select %p425, %s422, 7
        %s427 = smul.addr %s424, 8
        %s428 = sadd.s32 %s426, %s427
        %s429 = smul.addr %s428, 4
        %s430 = scalar_lea.vmem %s6, %s429
        %s431 = smul.u32 4, %s26
        %vm433 = vcmask 523264
        %434 = vst.msk [vmem:[#allocation2] sm:$0xff] %vm433, 0.0
        %435 = vst.msk [vmem:[#allocation2 + $0x8] sm:$0xff] %vm433, 0.0
        %vm436 = vcmask 517120
        %437 = vst.msk [vmem:[#allocation2 + $0x10] sm:$0x3] %vm436, 0.0
        %438 = vst.msk [vmem:[#allocation2 + $0x18] sm:$0xff] %vm433, 0.0
        %439 = vst.msk [vmem:[#allocation2 + $0x20] sm:$0xff] %vm433, 0.0
        %440 = vst.msk [vmem:[#allocation2 + $0x28] sm:$0x3] %vm436, 0.0
        %441 = vst.msk [vmem:[#allocation2 + $0x30] sm:$0xff] %vm433, 0.0
        %442 = vst.msk [vmem:[#allocation2 + $0x38] sm:$0xff] %vm433, 0.0
        %443 = vst.msk [vmem:[#allocation2 + $0x40] sm:$0x3] %vm436, 0.0
        %444 = vst.msk [vmem:[#allocation2 + $0x48] sm:$0xff] %vm433, 0.0
        %445 = vst.msk [vmem:[#allocation2 + $0x50] sm:$0xff] %vm433, 0.0
        %446 = vst.msk [vmem:[#allocation2 + $0x58] sm:$0x3] %vm436, 0.0
        %447 = vst.msk [vmem:[#allocation2 + $0x60] sm:$0xff] %vm433, 0.0
        %448 = vst.msk [vmem:[#allocation2 + $0x68] sm:$0xff] %vm433, 0.0
        %449 = vst.msk [vmem:[#allocation2 + $0x70] sm:$0x3] %vm436, 0.0
        %450 = vst.msk [vmem:[#allocation2 + $0x78] sm:$0xff] %vm433, 0.0
        %451 = vst.msk [vmem:[#allocation2 + $0x80] sm:$0xff] %vm433, 0.0
        %452 = vst.msk [vmem:[#allocation2 + $0x88] sm:$0x3] %vm436, 0.0
        %453 = vst.msk [vmem:[#allocation2 + $0x90] sm:$0xff] %vm433, 0.0
        %454 = vst.msk [vmem:[#allocation2 + $0x98] sm:$0xff] %vm433, 0.0
        %455 = vst.msk [vmem:[#allocation2 + $0xa0] sm:$0x3] %vm436, 0.0
        %456 = vst.msk [vmem:[#allocation2 + $0xa8] sm:$0xff] %vm433, 0.0
        %457 = vst.msk [vmem:[#allocation2 + $0xb0] sm:$0xff] %vm433, 0.0
        %458 = vst.msk [vmem:[#allocation2 + $0xb8] sm:$0x3] %vm436, 0.0
        %459 = vst.msk [vmem:[#allocation2 + $0xc0] sm:$0xff] %vm433, 0.0
        %460 = vst.msk [vmem:[#allocation2 + $0xc8] sm:$0xff] %vm433, 0.0
        %461 = vst.msk [vmem:[#allocation2 + $0xd0] sm:$0x3] %vm436, 0.0
        %462 = vst.msk [vmem:[#allocation2 + $0xd8] sm:$0xff] %vm433, 0.0
        %463 = vst.msk [vmem:[#allocation2 + $0xe0] sm:$0xff] %vm433, 0.0
        %464 = vst.msk [vmem:[#allocation2 + $0xe8] sm:$0x3] %vm436, 0.0
        %v465 = vld [vmem:[%s402] sm:$0xff]
        %v466 = vld [vmem:[%s402 + $0x8] sm:$0xff]
        %v467 = vld [vmem:[%s402 + $0x10] sm:$0xff]
        %v468 = vld [vmem:[%s402 + $0x18] sm:$0xff]
        %v469 = vld [vmem:[%s402 + $0x20] sm:$0xff]
        %v470 = vld [vmem:[%s402 + $0x28] sm:$0xff]
        %v471 = vld [vmem:[%s402 + $0x30] sm:$0xff]
        %v472 = vld [vmem:[%s402 + $0x38] sm:$0xff]
        %v473 = vld [vmem:[%s402 + $0x40] sm:$0xff]
        %v474 = vld [vmem:[%s402 + $0x48] sm:$0xff]
        %v475 = vld [vmem:[%s402 + $0x50] sm:$0xff]
        %v476 = vld [vmem:[%s402 + $0x58] sm:$0xff]
        %v477 = vld [vmem:[%s402 + $0x60] sm:$0xff]
        %v478 = vld [vmem:[%s402 + $0x68] sm:$0xff]
        %v479 = vld [vmem:[%s402 + $0x70] sm:$0xff]
        %v480 = vld [vmem:[%s402 + $0x78] sm:$0xff]
        %s481 = scalar_lea.vmem [#allocation2], 24
        %482 = vst.msk [vmem:[%s481 + $0x1] sm:$0xff] %vm433, %v465
        %483 = vst.msk [vmem:[%s481 + $0x9] sm:$0xff] %vm433, %v466
        %484 = vst.msk [vmem:[%s481 + $0x19] sm:$0xff] %vm433, %v467
        %485 = vst.msk [vmem:[%s481 + $0x21] sm:$0xff] %vm433, %v468
        %486 = vst.msk [vmem:[%s481 + $0x31] sm:$0xff] %vm433, %v469
        %487 = vst.msk [vmem:[%s481 + $0x39] sm:$0xff] %vm433, %v470
        %488 = vst.msk [vmem:[%s481 + $0x49] sm:$0xff] %vm433, %v471
        %489 = vst.msk [vmem:[%s481 + $0x51] sm:$0xff] %vm433, %v472
        %490 = vst.msk [vmem:[%s481 + $0x61] sm:$0xff] %vm433, %v473
        %491 = vst.msk [vmem:[%s481 + $0x69] sm:$0xff] %vm433, %v474
        %492 = vst.msk [vmem:[%s481 + $0x79] sm:$0xff] %vm433, %v475
        %493 = vst.msk [vmem:[%s481 + $0x81] sm:$0xff] %vm433, %v476
        %494 = vst.msk [vmem:[%s481 + $0x91] sm:$0xff] %vm433, %v477
        %495 = vst.msk [vmem:[%s481 + $0x99] sm:$0xff] %vm433, %v478
        %496 = vst.msk [vmem:[%s481 + $0xa9] sm:$0xff] %vm433, %v479
        %497 = vst.msk [vmem:[%s481 + $0xb1] sm:$0xff] %vm433, %v480
        %p498 = scmp.gt.s32.totalorder %s26, 0
        %v499 = vld [vmem:[%s388] sm:$0xff]
        %v500 = vld [vmem:[%s388 + $0x8] sm:$0xff]
        %s501 = scalar_select %p498, 1, 0
        %v502 = vstv %s501
        %vm503 = vcmp.eq.s32.totalorder %v502, 1
        %v504 = vsel %vm503, %v499, 0.0
        %v505 = vsel %vm503, %v500, 0.0
        %p506 = scmp.lt.s32.totalorder %s26, 1
        %v507 = vld [vmem:[%s416] sm:$0xff]
        %v508 = vld [vmem:[%s416 + $0x8] sm:$0xff]
        %s509 = scalar_select %p506, 1, 0
        %v510 = vstv %s509
        %vm511 = vcmp.eq.s32.totalorder %v510, 1
        %v512 = vsel %vm511, %v507, 0.0
        %v513 = vsel %vm511, %v508, 0.0
        %514 = vst.msk [vmem:[#allocation2 + $0x1] sm:$0xff] %vm433, %v504
        %515 = vst.msk [vmem:[#allocation2 + $0x9] sm:$0xff] %vm433, %v505
        %s516 = scalar_lea.vmem [#allocation2], 216
        %517 = vst.msk [vmem:[%s516 + $0x1] sm:$0xff] %vm433, %v512
        %518 = vst.msk [vmem:[%s516 + $0x9] sm:$0xff] %vm433, %v513
        %v519 = vld [vmem:[#allocation2] sm:$0xff]
        %v520 = vld [vmem:[#allocation2 + $0x8] sm:$0xff]
        %v521 = vld [vmem:[#allocation2 + $0x18] sm:$0xff]
        %v522 = vld [vmem:[#allocation2 + $0x20] sm:$0xff]
        %v523 = vld [vmem:[#allocation2 + $0x30] sm:$0xff]
        %v524 = vld [vmem:[#allocation2 + $0x38] sm:$0xff]
        %v525 = vld [vmem:[#allocation2 + $0x48] sm:$0xff]
        %v526 = vld [vmem:[#allocation2 + $0x50] sm:$0xff]
        %v527 = vld [vmem:[#allocation2 + $0x60] sm:$0xff]
        %v528 = vld [vmem:[#allocation2 + $0x68] sm:$0xff]
        %v529 = vld [vmem:[#allocation2 + $0x78] sm:$0xff]
        %v530 = vld [vmem:[#allocation2 + $0x80] sm:$0xff]
        %v531 = vld [vmem:[#allocation2 + $0x90] sm:$0xff]
        %v532 = vld [vmem:[#allocation2 + $0x98] sm:$0xff]
        %v533 = vld [vmem:[#allocation2 + $0xa8] sm:$0xff]
        %v534 = vld [vmem:[#allocation2 + $0xb0] sm:$0xff]
        %v535 = vpack.c.bf16 %v520, %v519
        %v536 = vpack.c.bf16 %v522, %v521
        %v537 = vpack.c.bf16 %v524, %v523
        %v538 = vpack.c.bf16 %v526, %v525
        %v539 = vpack.c.bf16 %v528, %v527
        %v540 = vpack.c.bf16 %v530, %v529
        %v541 = vpack.c.bf16 %v532, %v531
        %v542 = vpack.c.bf16 %v534, %v533
        %v551 = vunpack.c.l.b16 %v535
        %v552 = vunpack.c.h.b16 %v535
        %v553 = vunpack.c.l.b16 %v536
        %v554 = vunpack.c.h.b16 %v536
        %v555 = vunpack.c.l.b16 %v537
        %v556 = vunpack.c.h.b16 %v537
        %v557 = vunpack.c.l.b16 %v538
        %v558 = vunpack.c.h.b16 %v538
        %v559 = vunpack.c.l.b16 %v539
        %v560 = vunpack.c.h.b16 %v539
        %v561 = vunpack.c.l.b16 %v540
        %v562 = vunpack.c.h.b16 %v540
        %v563 = vunpack.c.l.b16 %v541
        %v564 = vunpack.c.h.b16 %v541
        %v565 = vunpack.c.l.b16 %v542
        %v566 = vunpack.c.h.b16 %v542
        %v567 = vpack.c.b16 %v551, %v551
        %v568 = vpack.c.b16 %v552, %v552
        %v569 = vpack.c.b16 %v553, %v553
        %v570 = vpack.c.b16 %v554, %v554
        %v571 = vpack.c.b16 %v555, %v555
        %v572 = vpack.c.b16 %v556, %v556
        %v573 = vpack.c.b16 %v557, %v557
        %v574 = vpack.c.b16 %v558, %v558
        %v575 = vpack.c.b16 %v559, %v559
        %v576 = vpack.c.b16 %v560, %v560
        %v577 = vpack.c.b16 %v561, %v561
        %v578 = vpack.c.b16 %v562, %v562
        %v579 = vpack.c.b16 %v563, %v563
        %v580 = vpack.c.b16 %v564, %v564
        %v581 = vpack.c.b16 %v565, %v565
        %v582 = vpack.c.b16 %v566, %v566
        %vm599 = vcmask 519168
        %600 = vst.msk [vmem:[#allocation3] sm:$0xf] %vm599, %v567
        %601 = vst.msk [vmem:[#allocation3 + $0x8] sm:$0xf] %vm599, %v568
        %602 = vst.msk [vmem:[#allocation3 + $0x10] sm:$0xf] %vm599, %v569
        %603 = vst.msk [vmem:[#allocation3 + $0x18] sm:$0xf] %vm599, %v570
        %604 = vst.msk [vmem:[#allocation3 + $0x20] sm:$0xf] %vm599, %v571
        %605 = vst.msk [vmem:[#allocation3 + $0x28] sm:$0xf] %vm599, %v572
        %606 = vst.msk [vmem:[#allocation3 + $0x30] sm:$0xf] %vm599, %v573
        %607 = vst.msk [vmem:[#allocation3 + $0x38] sm:$0xf] %vm599, %v574
        %608 = vst.msk [vmem:[#allocation3 + $0x40] sm:$0xf] %vm599, %v575
        %609 = vst.msk [vmem:[#allocation3 + $0x48] sm:$0xf] %vm599, %v576
        %610 = vst.msk [vmem:[#allocation3 + $0x50] sm:$0xf] %vm599, %v577
        %611 = vst.msk [vmem:[#allocation3 + $0x58] sm:$0xf] %vm599, %v578
        %612 = vst.msk [vmem:[#allocation3 + $0x60] sm:$0xf] %vm599, %v579
        %613 = vst.msk [vmem:[#allocation3 + $0x68] sm:$0xf] %vm599, %v580
        %614 = vst.msk [vmem:[#allocation3 + $0x70] sm:$0xf] %vm599, %v581
        %615 = vst.msk [vmem:[#allocation3 + $0x78] sm:$0xf] %vm599, %v582
        %v616 = vld [vmem:[#allocation2 + $0x1] sm:$0xff]
        %v617 = vld [vmem:[#allocation2 + $0x9] sm:$0xff]
        %v618 = vld [vmem:[#allocation2 + $0x19] sm:$0xff]
        %v619 = vld [vmem:[#allocation2 + $0x21] sm:$0xff]
        %v620 = vld [vmem:[#allocation2 + $0x31] sm:$0xff]
        %v621 = vld [vmem:[#allocation2 + $0x39] sm:$0xff]
        %v622 = vld [vmem:[#allocation2 + $0x49] sm:$0xff]
        %v623 = vld [vmem:[#allocation2 + $0x51] sm:$0xff]
        %v624 = vld [vmem:[#allocation2 + $0x61] sm:$0xff]
        %v625 = vld [vmem:[#allocation2 + $0x69] sm:$0xff]
        %v626 = vld [vmem:[#allocation2 + $0x79] sm:$0xff]
        %v627 = vld [vmem:[#allocation2 + $0x81] sm:$0xff]
        %v628 = vld [vmem:[#allocation2 + $0x91] sm:$0xff]
        %v629 = vld [vmem:[#allocation2 + $0x99] sm:$0xff]
        %v630 = vld [vmem:[#allocation2 + $0xa9] sm:$0xff]
        %v631 = vld [vmem:[#allocation2 + $0xb1] sm:$0xff]
        %v632 = vpack.c.bf16 %v617, %v616
        %v633 = vpack.c.bf16 %v619, %v618
        %v634 = vpack.c.bf16 %v621, %v620
        %v635 = vpack.c.bf16 %v623, %v622
        %v636 = vpack.c.bf16 %v625, %v624
        %v637 = vpack.c.bf16 %v627, %v626
        %v638 = vpack.c.bf16 %v629, %v628
        %v639 = vpack.c.bf16 %v631, %v630
        %v648 = vunpack.c.l.b16 %v632
        %v649 = vunpack.c.h.b16 %v632
        %v650 = vunpack.c.l.b16 %v633
        %v651 = vunpack.c.h.b16 %v633
        %v652 = vunpack.c.l.b16 %v634
        %v653 = vunpack.c.h.b16 %v634
        %v654 = vunpack.c.l.b16 %v635
        %v655 = vunpack.c.h.b16 %v635
        %v656 = vunpack.c.l.b16 %v636
        %v657 = vunpack.c.h.b16 %v636
        %v658 = vunpack.c.l.b16 %v637
        %v659 = vunpack.c.h.b16 %v637
        %v660 = vunpack.c.l.b16 %v638
        %v661 = vunpack.c.h.b16 %v638
        %v662 = vunpack.c.l.b16 %v639
        %v663 = vunpack.c.h.b16 %v639
        %v664 = vpack.c.b16 %v648, %v648
        %v665 = vpack.c.b16 %v649, %v649
        %v666 = vpack.c.b16 %v650, %v650
        %v667 = vpack.c.b16 %v651, %v651
        %v668 = vpack.c.b16 %v652, %v652
        %v669 = vpack.c.b16 %v653, %v653
        %v670 = vpack.c.b16 %v654, %v654
        %v671 = vpack.c.b16 %v655, %v655
        %v672 = vpack.c.b16 %v656, %v656
        %v673 = vpack.c.b16 %v657, %v657
        %v674 = vpack.c.b16 %v658, %v658
        %v675 = vpack.c.b16 %v659, %v659
        %v676 = vpack.c.b16 %v660, %v660
        %v677 = vpack.c.b16 %v661, %v661
        %v678 = vpack.c.b16 %v662, %v662
        %v679 = vpack.c.b16 %v663, %v663
        %680 = vrot.lane.b32.xlu0 %v664, 64
        %v681 = vpop.permute.xlu0 %680
        %682 = vrot.lane.b32.xlu0 %v665, 64
        %v683 = vpop.permute.xlu0 %682
        %684 = vrot.lane.b32.xlu0 %v666, 64
        %v685 = vpop.permute.xlu0 %684
        %686 = vrot.lane.b32.xlu0 %v667, 64
        %v687 = vpop.permute.xlu0 %686
        %688 = vrot.lane.b32.xlu0 %v668, 64
        %v689 = vpop.permute.xlu0 %688
        %690 = vrot.lane.b32.xlu0 %v669, 64
        %v691 = vpop.permute.xlu0 %690
        %692 = vrot.lane.b32.xlu0 %v670, 64
        %v693 = vpop.permute.xlu0 %692
        %694 = vrot.lane.b32.xlu0 %v671, 64
        %v695 = vpop.permute.xlu0 %694
        %696 = vrot.lane.b32.xlu0 %v672, 64
        %v697 = vpop.permute.xlu0 %696
        %698 = vrot.lane.b32.xlu0 %v673, 64
        %v699 = vpop.permute.xlu0 %698
        %700 = vrot.lane.b32.xlu0 %v674, 64
        %v701 = vpop.permute.xlu0 %700
        %702 = vrot.lane.b32.xlu0 %v675, 64
        %v703 = vpop.permute.xlu0 %702
        %704 = vrot.lane.b32.xlu0 %v676, 64
        %v705 = vpop.permute.xlu0 %704
        %706 = vrot.lane.b32.xlu0 %v677, 64
        %v707 = vpop.permute.xlu0 %706
        %708 = vrot.lane.b32.xlu0 %v678, 64
        %v709 = vpop.permute.xlu0 %708
        %710 = vrot.lane.b32.xlu0 %v679, 64
        %v711 = vpop.permute.xlu0 %710
        %vm728 = vcmask 1043968
        %729 = vst.msk [vmem:[#allocation3] sm:$0xf] %vm728, %v681
        %730 = vst.msk [vmem:[#allocation3 + $0x8] sm:$0xf] %vm728, %v683
        %731 = vst.msk [vmem:[#allocation3 + $0x10] sm:$0xf] %vm728, %v685
        %732 = vst.msk [vmem:[#allocation3 + $0x18] sm:$0xf] %vm728, %v687
        %733 = vst.msk [vmem:[#allocation3 + $0x20] sm:$0xf] %vm728, %v689
        %734 = vst.msk [vmem:[#allocation3 + $0x28] sm:$0xf] %vm728, %v691
        %735 = vst.msk [vmem:[#allocation3 + $0x30] sm:$0xf] %vm728, %v693
        %736 = vst.msk [vmem:[#allocation3 + $0x38] sm:$0xf] %vm728, %v695
        %737 = vst.msk [vmem:[#allocation3 + $0x40] sm:$0xf] %vm728, %v697
        %738 = vst.msk [vmem:[#allocation3 + $0x48] sm:$0xf] %vm728, %v699
        %739 = vst.msk [vmem:[#allocation3 + $0x50] sm:$0xf] %vm728, %v701
        %740 = vst.msk [vmem:[#allocation3 + $0x58] sm:$0xf] %vm728, %v703
        %741 = vst.msk [vmem:[#allocation3 + $0x60] sm:$0xf] %vm728, %v705
        %742 = vst.msk [vmem:[#allocation3 + $0x68] sm:$0xf] %vm728, %v707
        %743 = vst.msk [vmem:[#allocation3 + $0x70] sm:$0xf] %vm728, %v709
        %744 = vst.msk [vmem:[#allocation3 + $0x78] sm:$0xf] %vm728, %v711
        %v745 = vld [vmem:[#allocation2 + $0x2] sm:$0xff]
        %v746 = vld [vmem:[#allocation2 + $0xa] sm:$0xff]
        %v747 = vld [vmem:[#allocation2 + $0x1a] sm:$0xff]
        %v748 = vld [vmem:[#allocation2 + $0x22] sm:$0xff]
        %v749 = vld [vmem:[#allocation2 + $0x32] sm:$0xff]
        %v750 = vld [vmem:[#allocation2 + $0x3a] sm:$0xff]
        %v751 = vld [vmem:[#allocation2 + $0x4a] sm:$0xff]
        %v752 = vld [vmem:[#allocation2 + $0x52] sm:$0xff]
        %v753 = vld [vmem:[#allocation2 + $0x62] sm:$0xff]
        %v754 = vld [vmem:[#allocation2 + $0x6a] sm:$0xff]
        %v755 = vld [vmem:[#allocation2 + $0x7a] sm:$0xff]
        %v756 = vld [vmem:[#allocation2 + $0x82] sm:$0xff]
        %v757 = vld [vmem:[#allocation2 + $0x92] sm:$0xff]
        %v758 = vld [vmem:[#allocation2 + $0x9a] sm:$0xff]
        %v759 = vld [vmem:[#allocation2 + $0xaa] sm:$0xff]
        %v760 = vld [vmem:[#allocation2 + $0xb2] sm:$0xff]
        %v761 = vpack.c.bf16 %v746, %v745
        %v762 = vpack.c.bf16 %v748, %v747
        %v763 = vpack.c.bf16 %v750, %v749
        %v764 = vpack.c.bf16 %v752, %v751
        %v765 = vpack.c.bf16 %v754, %v753
        %v766 = vpack.c.bf16 %v756, %v755
        %v767 = vpack.c.bf16 %v758, %v757
        %v768 = vpack.c.bf16 %v760, %v759
        %v777 = vunpack.c.l.b16 %v761
        %v778 = vunpack.c.h.b16 %v761
        %v779 = vunpack.c.l.b16 %v762
        %v780 = vunpack.c.h.b16 %v762
        %v781 = vunpack.c.l.b16 %v763
        %v782 = vunpack.c.h.b16 %v763
        %v783 = vunpack.c.l.b16 %v764
        %v784 = vunpack.c.h.b16 %v764
        %v785 = vunpack.c.l.b16 %v765
        %v786 = vunpack.c.h.b16 %v765
        %v787 = vunpack.c.l.b16 %v766
        %v788 = vunpack.c.h.b16 %v766
        %v789 = vunpack.c.l.b16 %v767
        %v790 = vunpack.c.h.b16 %v767
        %v791 = vunpack.c.l.b16 %v768
        %v792 = vunpack.c.h.b16 %v768
        %v793 = vpack.c.b16 %v777, %v777
        %v794 = vpack.c.b16 %v778, %v778
        %v795 = vpack.c.b16 %v779, %v779
        %v796 = vpack.c.b16 %v780, %v780
        %v797 = vpack.c.b16 %v781, %v781
        %v798 = vpack.c.b16 %v782, %v782
        %v799 = vpack.c.b16 %v783, %v783
        %v800 = vpack.c.b16 %v784, %v784
        %v801 = vpack.c.b16 %v785, %v785
        %v802 = vpack.c.b16 %v786, %v786
        %v803 = vpack.c.b16 %v787, %v787
        %v804 = vpack.c.b16 %v788, %v788
        %v805 = vpack.c.b16 %v789, %v789
        %v806 = vpack.c.b16 %v790, %v790
        %v807 = vpack.c.b16 %v791, %v791
        %v808 = vpack.c.b16 %v792, %v792
        %825 = vst.msk [vmem:[#allocation3 + $0x4] sm:$0xf] %vm599, %v793
        %826 = vst.msk [vmem:[#allocation3 + $0xc] sm:$0xf] %vm599, %v794
        %827 = vst.msk [vmem:[#allocation3 + $0x14] sm:$0xf] %vm599, %v795
        %828 = vst.msk [vmem:[#allocation3 + $0x1c] sm:$0xf] %vm599, %v796
        %829 = vst.msk [vmem:[#allocation3 + $0x24] sm:$0xf] %vm599, %v797
        %830 = vst.msk [vmem:[#allocation3 + $0x2c] sm:$0xf] %vm599, %v798
        %831 = vst.msk [vmem:[#allocation3 + $0x34] sm:$0xf] %vm599, %v799
        %832 = vst.msk [vmem:[#allocation3 + $0x3c] sm:$0xf] %vm599, %v800
        %833 = vst.msk [vmem:[#allocation3 + $0x44] sm:$0xf] %vm599, %v801
        %834 = vst.msk [vmem:[#allocation3 + $0x4c] sm:$0xf] %vm599, %v802
        %835 = vst.msk [vmem:[#allocation3 + $0x54] sm:$0xf] %vm599, %v803
        %836 = vst.msk [vmem:[#allocation3 + $0x5c] sm:$0xf] %vm599, %v804
        %837 = vst.msk [vmem:[#allocation3 + $0x64] sm:$0xf] %vm599, %v805
        %838 = vst.msk [vmem:[#allocation3 + $0x6c] sm:$0xf] %vm599, %v806
        %839 = vst.msk [vmem:[#allocation3 + $0x74] sm:$0xf] %vm599, %v807
        %840 = vst.msk [vmem:[#allocation3 + $0x7c] sm:$0xf] %vm599, %v808
        %v841 = vld [vmem:[#allocation3] sm:$0xff]
        %v842 = vld [vmem:[#allocation3 + $0x8] sm:$0xff]
        %v843 = vld [vmem:[#allocation3 + $0x10] sm:$0xff]
        %v844 = vld [vmem:[#allocation3 + $0x18] sm:$0xff]
        %v845 = vld [vmem:[#allocation3 + $0x20] sm:$0xff]
        %v846 = vld [vmem:[#allocation3 + $0x28] sm:$0xff]
        %v847 = vld [vmem:[#allocation3 + $0x30] sm:$0xff]
        %v848 = vld [vmem:[#allocation3 + $0x38] sm:$0xff]
        %v849 = vld [vmem:[#allocation3 + $0x40] sm:$0xff]
        %v850 = vld [vmem:[#allocation3 + $0x48] sm:$0xff]
        %v851 = vld [vmem:[#allocation3 + $0x50] sm:$0xff]
        %v852 = vld [vmem:[#allocation3 + $0x58] sm:$0xff]
        %v853 = vld [vmem:[#allocation3 + $0x60] sm:$0xff]
        %v854 = vld [vmem:[#allocation3 + $0x68] sm:$0xff]
        %v855 = vld [vmem:[#allocation3 + $0x70] sm:$0xff]
        %v856 = vld [vmem:[#allocation3 + $0x78] sm:$0xff]
        %v857 = vld [vmem:[%s3] sm:$0xf]
        %v858 = vld [vmem:[%s3 + $0x4] sm:$0xf]
        %v859 = vld [vmem:[%s3 + $0x8] sm:$0xf]
        %v860 = vld [vmem:[%s3 + $0xc] sm:$0xf]
        %v861 = vld [vmem:[%s3 + $0x10] sm:$0xf]
        %v862 = vld [vmem:[%s3 + $0x14] sm:$0xf]
        %v863 = vld [vmem:[%s3 + $0x18] sm:$0xf]
        %v864 = vld [vmem:[%s3 + $0x1c] sm:$0xf]
        %v865 = vld [vmem:[%s3 + $0x20] sm:$0xf]
        %v866 = vld [vmem:[%s3 + $0x24] sm:$0xf]
        %v867 = vld [vmem:[%s3 + $0x28] sm:$0xf]
        %v868 = vld [vmem:[%s3 + $0x2c] sm:$0xf]
        %v869 = vld [vmem:[%s3 + $0x30] sm:$0xf]
        %v870 = vld [vmem:[%s3 + $0x34] sm:$0xf]
        %v871 = vld [vmem:[%s3 + $0x38] sm:$0xf]
        %v872 = vld [vmem:[%s3 + $0x3c] sm:$0xf]
        %v873 = vld [vmem:[%s3 + $0x40] sm:$0xf]
        %v874 = vld [vmem:[%s3 + $0x44] sm:$0xf]
        %v875 = vld [vmem:[%s3 + $0x48] sm:$0xf]
        %v876 = vld [vmem:[%s3 + $0x4c] sm:$0xf]
        %v877 = vld [vmem:[%s3 + $0x50] sm:$0xf]
        %v878 = vld [vmem:[%s3 + $0x54] sm:$0xf]
        %v879 = vld [vmem:[%s3 + $0x58] sm:$0xf]
        %v880 = vld [vmem:[%s3 + $0x5c] sm:$0xf]
        %v881 = vld [vmem:[%s481] sm:$0xff]
        %v882 = vld [vmem:[%s481 + $0x8] sm:$0xff]
        %v883 = vld [vmem:[%s481 + $0x18] sm:$0xff]
        %v884 = vld [vmem:[%s481 + $0x20] sm:$0xff]
        %v885 = vld [vmem:[%s481 + $0x30] sm:$0xff]
        %v886 = vld [vmem:[%s481 + $0x38] sm:$0xff]
        %v887 = vld [vmem:[%s481 + $0x48] sm:$0xff]
        %v888 = vld [vmem:[%s481 + $0x50] sm:$0xff]
        %v889 = vld [vmem:[%s481 + $0x60] sm:$0xff]
        %v890 = vld [vmem:[%s481 + $0x68] sm:$0xff]
        %v891 = vld [vmem:[%s481 + $0x78] sm:$0xff]
        %v892 = vld [vmem:[%s481 + $0x80] sm:$0xff]
        %v893 = vld [vmem:[%s481 + $0x90] sm:$0xff]
        %v894 = vld [vmem:[%s481 + $0x98] sm:$0xff]
        %v895 = vld [vmem:[%s481 + $0xa8] sm:$0xff]
        %v896 = vld [vmem:[%s481 + $0xb0] sm:$0xff]
        %v897 = vpack.c.bf16 %v882, %v881
        %v898 = vpack.c.bf16 %v884, %v883
        %v899 = vpack.c.bf16 %v886, %v885
        %v900 = vpack.c.bf16 %v888, %v887
        %v901 = vpack.c.bf16 %v890, %v889
        %v902 = vpack.c.bf16 %v892, %v891
        %v903 = vpack.c.bf16 %v894, %v893
        %v904 = vpack.c.bf16 %v896, %v895
        %v913 = vunpack.c.l.b16 %v897
        %v914 = vunpack.c.h.b16 %v897
        %v915 = vunpack.c.l.b16 %v898
        %v916 = vunpack.c.h.b16 %v898
        %v917 = vunpack.c.l.b16 %v899
        %v918 = vunpack.c.h.b16 %v899
        %v919 = vunpack.c.l.b16 %v900
        %v920 = vunpack.c.h.b16 %v900
        %v921 = vunpack.c.l.b16 %v901
        %v922 = vunpack.c.h.b16 %v901
        %v923 = vunpack.c.l.b16 %v902
        %v924 = vunpack.c.h.b16 %v902
        %v925 = vunpack.c.l.b16 %v903
        %v926 = vunpack.c.h.b16 %v903
        %v927 = vunpack.c.l.b16 %v904
        %v928 = vunpack.c.h.b16 %v904
        %v929 = vpack.c.b16 %v913, %v913
        %v930 = vpack.c.b16 %v914, %v914
        %v931 = vpack.c.b16 %v915, %v915
        %v932 = vpack.c.b16 %v916, %v916
        %v933 = vpack.c.b16 %v917, %v917
        %v934 = vpack.c.b16 %v918, %v918
        %v935 = vpack.c.b16 %v919, %v919
        %v936 = vpack.c.b16 %v920, %v920
        %v937 = vpack.c.b16 %v921, %v921
        %v938 = vpack.c.b16 %v922, %v922
        %v939 = vpack.c.b16 %v923, %v923
        %v940 = vpack.c.b16 %v924, %v924
        %v941 = vpack.c.b16 %v925, %v925
        %v942 = vpack.c.b16 %v926, %v926
        %v943 = vpack.c.b16 %v927, %v927
        %v944 = vpack.c.b16 %v928, %v928
        %961 = vst.msk [vmem:[#allocation3] sm:$0xf] %vm599, %v929
        %962 = vst.msk [vmem:[#allocation3 + $0x8] sm:$0xf] %vm599, %v930
        %963 = vst.msk [vmem:[#allocation3 + $0x10] sm:$0xf] %vm599, %v931
        %964 = vst.msk [vmem:[#allocation3 + $0x18] sm:$0xf] %vm599, %v932
        %965 = vst.msk [vmem:[#allocation3 + $0x20] sm:$0xf] %vm599, %v933
        %966 = vst.msk [vmem:[#allocation3 + $0x28] sm:$0xf] %vm599, %v934
        %967 = vst.msk [vmem:[#allocation3 + $0x30] sm:$0xf] %vm599, %v935
        %968 = vst.msk [vmem:[#allocation3 + $0x38] sm:$0xf] %vm599, %v936
        %969 = vst.msk [vmem:[#allocation3 + $0x40] sm:$0xf] %vm599, %v937
        %970 = vst.msk [vmem:[#allocation3 + $0x48] sm:$0xf] %vm599, %v938
        %971 = vst.msk [vmem:[#allocation3 + $0x50] sm:$0xf] %vm599, %v939
        %972 = vst.msk [vmem:[#allocation3 + $0x58] sm:$0xf] %vm599, %v940
        %973 = vst.msk [vmem:[#allocation3 + $0x60] sm:$0xf] %vm599, %v941
        %974 = vst.msk [vmem:[#allocation3 + $0x68] sm:$0xf] %vm599, %v942
        %975 = vst.msk [vmem:[#allocation3 + $0x70] sm:$0xf] %vm599, %v943
        %976 = vst.msk [vmem:[#allocation3 + $0x78] sm:$0xf] %vm599, %v944
        %v977 = vld [vmem:[%s481 + $0x1] sm:$0xff]
        %v978 = vld [vmem:[%s481 + $0x9] sm:$0xff]
        %v979 = vld [vmem:[%s481 + $0x19] sm:$0xff]
        %v980 = vld [vmem:[%s481 + $0x21] sm:$0xff]
        %v981 = vld [vmem:[%s481 + $0x31] sm:$0xff]
        %v982 = vld [vmem:[%s481 + $0x39] sm:$0xff]
        %v983 = vld [vmem:[%s481 + $0x49] sm:$0xff]
        %v984 = vld [vmem:[%s481 + $0x51] sm:$0xff]
        %v985 = vld [vmem:[%s481 + $0x61] sm:$0xff]
        %v986 = vld [vmem:[%s481 + $0x69] sm:$0xff]
        %v987 = vld [vmem:[%s481 + $0x79] sm:$0xff]
        %v988 = vld [vmem:[%s481 + $0x81] sm:$0xff]
        %v989 = vld [vmem:[%s481 + $0x91] sm:$0xff]
        %v990 = vld [vmem:[%s481 + $0x99] sm:$0xff]
        %v991 = vld [vmem:[%s481 + $0xa9] sm:$0xff]
        %v992 = vld [vmem:[%s481 + $0xb1] sm:$0xff]
        %v993 = vpack.c.bf16 %v978, %v977
        %v994 = vpack.c.bf16 %v980, %v979
        %v995 = vpack.c.bf16 %v982, %v981
        %v996 = vpack.c.bf16 %v984, %v983
        %v997 = vpack.c.bf16 %v986, %v985
        %v998 = vpack.c.bf16 %v988, %v987
        %v999 = vpack.c.bf16 %v990, %v989
        %v1000 = vpack.c.bf16 %v992, %v991
        %v1009 = vunpack.c.l.b16 %v993
        %v1010 = vunpack.c.h.b16 %v993
        %v1011 = vunpack.c.l.b16 %v994
        %v1012 = vunpack.c.h.b16 %v994
        %v1013 = vunpack.c.l.b16 %v995
        %v1014 = vunpack.c.h.b16 %v995
        %v1015 = vunpack.c.l.b16 %v996
        %v1016 = vunpack.c.h.b16 %v996
        %v1017 = vunpack.c.l.b16 %v997
        %v1018 = vunpack.c.h.b16 %v997
        %v1019 = vunpack.c.l.b16 %v998
        %v1020 = vunpack.c.h.b16 %v998
        %v1021 = vunpack.c.l.b16 %v999
        %v1022 = vunpack.c.h.b16 %v999
        %v1023 = vunpack.c.l.b16 %v1000
        %v1024 = vunpack.c.h.b16 %v1000
        %v1025 = vpack.c.b16 %v1009, %v1009
        %v1026 = vpack.c.b16 %v1010, %v1010
        %v1027 = vpack.c.b16 %v1011, %v1011
        %v1028 = vpack.c.b16 %v1012, %v1012
        %v1029 = vpack.c.b16 %v1013, %v1013
        %v1030 = vpack.c.b16 %v1014, %v1014
        %v1031 = vpack.c.b16 %v1015, %v1015
        %v1032 = vpack.c.b16 %v1016, %v1016
        %v1033 = vpack.c.b16 %v1017, %v1017
        %v1034 = vpack.c.b16 %v1018, %v1018
        %v1035 = vpack.c.b16 %v1019, %v1019
        %v1036 = vpack.c.b16 %v1020, %v1020
        %v1037 = vpack.c.b16 %v1021, %v1021
        %v1038 = vpack.c.b16 %v1022, %v1022
        %v1039 = vpack.c.b16 %v1023, %v1023
        %v1040 = vpack.c.b16 %v1024, %v1024
        %1041 = vrot.lane.b32.xlu0 %v1025, 64
        %v1042 = vpop.permute.xlu0 %1041
        %1043 = vrot.lane.b32.xlu0 %v1026, 64
        %v1044 = vpop.permute.xlu0 %1043
        %1045 = vrot.lane.b32.xlu0 %v1027, 64
        %v1046 = vpop.permute.xlu0 %1045
        %1047 = vrot.lane.b32.xlu0 %v1028, 64
        %v1048 = vpop.permute.xlu0 %1047
        %1049 = vrot.lane.b32.xlu0 %v1029, 64
        %v1050 = vpop.permute.xlu0 %1049
        %1051 = vrot.lane.b32.xlu0 %v1030, 64
        %v1052 = vpop.permute.xlu0 %1051
        %1053 = vrot.lane.b32.xlu0 %v1031, 64
        %v1054 = vpop.permute.xlu0 %1053
        %1055 = vrot.lane.b32.xlu0 %v1032, 64
        %v1056 = vpop.permute.xlu0 %1055
        %1057 = vrot.lane.b32.xlu0 %v1033, 64
        %v1058 = vpop.permute.xlu0 %1057
        %1059 = vrot.lane.b32.xlu0 %v1034, 64
        %v1060 = vpop.permute.xlu0 %1059
        %1061 = vrot.lane.b32.xlu0 %v1035, 64
        %v1062 = vpop.permute.xlu0 %1061
        %1063 = vrot.lane.b32.xlu0 %v1036, 64
        %v1064 = vpop.permute.xlu0 %1063
        %1065 = vrot.lane.b32.xlu0 %v1037, 64
        %v1066 = vpop.permute.xlu0 %1065
        %1067 = vrot.lane.b32.xlu0 %v1038, 64
        %v1068 = vpop.permute.xlu0 %1067
        %1069 = vrot.lane.b32.xlu0 %v1039, 64
        %v1070 = vpop.permute.xlu0 %1069
        %1071 = vrot.lane.b32.xlu0 %v1040, 64
        %v1072 = vpop.permute.xlu0 %1071
        %1089 = vst.msk [vmem:[#allocation3] sm:$0xf] %vm728, %v1042
        %1090 = vst.msk [vmem:[#allocation3 + $0x8] sm:$0xf] %vm728, %v1044
        %1091 = vst.msk [vmem:[#allocation3 + $0x10] sm:$0xf] %vm728, %v1046
        %1092 = vst.msk [vmem:[#allocation3 + $0x18] sm:$0xf] %vm728, %v1048
        %1093 = vst.msk [vmem:[#allocation3 + $0x20] sm:$0xf] %vm728, %v1050
        %1094 = vst.msk [vmem:[#allocation3 + $0x28] sm:$0xf] %vm728, %v1052
        %1095 = vst.msk [vmem:[#allocation3 + $0x30] sm:$0xf] %vm728, %v1054
        %1096 = vst.msk [vmem:[#allocation3 + $0x38] sm:$0xf] %vm728, %v1056
        %1097 = vst.msk [vmem:[#allocation3 + $0x40] sm:$0xf] %vm728, %v1058
        %1098 = vst.msk [vmem:[#allocation3 + $0x48] sm:$0xf] %vm728, %v1060
        %1099 = vst.msk [vmem:[#allocation3 + $0x50] sm:$0xf] %vm728, %v1062
        %1100 = vst.msk [vmem:[#allocation3 + $0x58] sm:$0xf] %vm728, %v1064
        %1101 = vst.msk [vmem:[#allocation3 + $0x60] sm:$0xf] %vm728, %v1066
        %1102 = vst.msk [vmem:[#allocation3 + $0x68] sm:$0xf] %vm728, %v1068
        %1103 = vst.msk [vmem:[#allocation3 + $0x70] sm:$0xf] %vm728, %v1070
        %1104 = vst.msk [vmem:[#allocation3 + $0x78] sm:$0xf] %vm728, %v1072
        %v1105 = vld [vmem:[%s481 + $0x2] sm:$0xff]
        %v1106 = vld [vmem:[%s481 + $0xa] sm:$0xff]
        %v1107 = vld [vmem:[%s481 + $0x1a] sm:$0xff]
        %v1108 = vld [vmem:[%s481 + $0x22] sm:$0xff]
        %v1109 = vld [vmem:[%s481 + $0x32] sm:$0xff]
        %v1110 = vld [vmem:[%s481 + $0x3a] sm:$0xff]
        %v1111 = vld [vmem:[%s481 + $0x4a] sm:$0xff]
        %v1112 = vld [vmem:[%s481 + $0x52] sm:$0xff]
        %v1113 = vld [vmem:[%s481 + $0x62] sm:$0xff]
        %v1114 = vld [vmem:[%s481 + $0x6a] sm:$0xff]
        %v1115 = vld [vmem:[%s481 + $0x7a] sm:$0xff]
        %v1116 = vld [vmem:[%s481 + $0x82] sm:$0xff]
        %v1117 = vld [vmem:[%s481 + $0x92] sm:$0xff]
        %v1118 = vld [vmem:[%s481 + $0x9a] sm:$0xff]
        %v1119 = vld [vmem:[%s481 + $0xaa] sm:$0xff]
        %v1120 = vld [vmem:[%s481 + $0xb2] sm:$0xff]
        %v1121 = vpack.c.bf16 %v1106, %v1105
        %v1122 = vpack.c.bf16 %v1108, %v1107
        %v1123 = vpack.c.bf16 %v1110, %v1109
        %v1124 = vpack.c.bf16 %v1112, %v1111
        %v1125 = vpack.c.bf16 %v1114, %v1113
        %v1126 = vpack.c.bf16 %v1116, %v1115
        %v1127 = vpack.c.bf16 %v1118, %v1117
        %v1128 = vpack.c.bf16 %v1120, %v1119
        %v1137 = vunpack.c.l.b16 %v1121
        %v1138 = vunpack.c.h.b16 %v1121
        %v1139 = vunpack.c.l.b16 %v1122
        %v1140 = vunpack.c.h.b16 %v1122
        %v1141 = vunpack.c.l.b16 %v1123
        %v1142 = vunpack.c.h.b16 %v1123
        %v1143 = vunpack.c.l.b16 %v1124
        %v1144 = vunpack.c.h.b16 %v1124
        %v1145 = vunpack.c.l.b16 %v1125
        %v1146 = vunpack.c.h.b16 %v1125
        %v1147 = vunpack.c.l.b16 %v1126
        %v1148 = vunpack.c.h.b16 %v1126
        %v1149 = vunpack.c.l.b16 %v1127
        %v1150 = vunpack.c.h.b16 %v1127
        %v1151 = vunpack.c.l.b16 %v1128
        %v1152 = vunpack.c.h.b16 %v1128
        %v1153 = vpack.c.b16 %v1137, %v1137
        %v1154 = vpack.c.b16 %v1138, %v1138
        %v1155 = vpack.c.b16 %v1139, %v1139
        %v1156 = vpack.c.b16 %v1140, %v1140
        %v1157 = vpack.c.b16 %v1141, %v1141
        %v1158 = vpack.c.b16 %v1142, %v1142
        %v1159 = vpack.c.b16 %v1143, %v1143
        %v1160 = vpack.c.b16 %v1144, %v1144
        %v1161 = vpack.c.b16 %v1145, %v1145
        %v1162 = vpack.c.b16 %v1146, %v1146
        %v1163 = vpack.c.b16 %v1147, %v1147
        %v1164 = vpack.c.b16 %v1148, %v1148
        %v1165 = vpack.c.b16 %v1149, %v1149
        %v1166 = vpack.c.b16 %v1150, %v1150
        %v1167 = vpack.c.b16 %v1151, %v1151
        %v1168 = vpack.c.b16 %v1152, %v1152
        %1185 = vst.msk [vmem:[#allocation3 + $0x4] sm:$0xf] %vm599, %v1153
        %1186 = vst.msk [vmem:[#allocation3 + $0xc] sm:$0xf] %vm599, %v1154
        %1187 = vst.msk [vmem:[#allocation3 + $0x14] sm:$0xf] %vm599, %v1155
        %1188 = vst.msk [vmem:[#allocation3 + $0x1c] sm:$0xf] %vm599, %v1156
        %1189 = vst.msk [vmem:[#allocation3 + $0x24] sm:$0xf] %vm599, %v1157
        %1190 = vst.msk [vmem:[#allocation3 + $0x2c] sm:$0xf] %vm599, %v1158
        %1191 = vst.msk [vmem:[#allocation3 + $0x34] sm:$0xf] %vm599, %v1159
        %1192 = vst.msk [vmem:[#allocation3 + $0x3c] sm:$0xf] %vm599, %v1160
        %1193 = vst.msk [vmem:[#allocation3 + $0x44] sm:$0xf] %vm599, %v1161
        %1194 = vst.msk [vmem:[#allocation3 + $0x4c] sm:$0xf] %vm599, %v1162
        %1195 = vst.msk [vmem:[#allocation3 + $0x54] sm:$0xf] %vm599, %v1163
        %1196 = vst.msk [vmem:[#allocation3 + $0x5c] sm:$0xf] %vm599, %v1164
        %1197 = vst.msk [vmem:[#allocation3 + $0x64] sm:$0xf] %vm599, %v1165
        %1198 = vst.msk [vmem:[#allocation3 + $0x6c] sm:$0xf] %vm599, %v1166
        %1199 = vst.msk [vmem:[#allocation3 + $0x74] sm:$0xf] %vm599, %v1167
        %1200 = vst.msk [vmem:[#allocation3 + $0x7c] sm:$0xf] %vm599, %v1168
        %v1201 = vld [vmem:[#allocation3] sm:$0xff]
        %v1202 = vld [vmem:[#allocation3 + $0x8] sm:$0xff]
        %v1203 = vld [vmem:[#allocation3 + $0x10] sm:$0xff]
        %v1204 = vld [vmem:[#allocation3 + $0x18] sm:$0xff]
        %v1205 = vld [vmem:[#allocation3 + $0x20] sm:$0xff]
        %v1206 = vld [vmem:[#allocation3 + $0x28] sm:$0xff]
        %v1207 = vld [vmem:[#allocation3 + $0x30] sm:$0xff]
        %v1208 = vld [vmem:[#allocation3 + $0x38] sm:$0xff]
        %v1209 = vld [vmem:[#allocation3 + $0x40] sm:$0xff]
        %v1210 = vld [vmem:[#allocation3 + $0x48] sm:$0xff]
        %v1211 = vld [vmem:[#allocation3 + $0x50] sm:$0xff]
        %v1212 = vld [vmem:[#allocation3 + $0x58] sm:$0xff]
        %v1213 = vld [vmem:[#allocation3 + $0x60] sm:$0xff]
        %v1214 = vld [vmem:[#allocation3 + $0x68] sm:$0xff]
        %v1215 = vld [vmem:[#allocation3 + $0x70] sm:$0xff]
        %v1216 = vld [vmem:[#allocation3 + $0x78] sm:$0xff]
        %s1217 = scalar_lea.vmem %s3, 96
        %v1218 = vld [vmem:[%s1217] sm:$0xf]
        %v1219 = vld [vmem:[%s1217 + $0x4] sm:$0xf]
        %v1220 = vld [vmem:[%s1217 + $0x8] sm:$0xf]
        %v1221 = vld [vmem:[%s1217 + $0xc] sm:$0xf]
        %v1222 = vld [vmem:[%s1217 + $0x10] sm:$0xf]
        %v1223 = vld [vmem:[%s1217 + $0x14] sm:$0xf]
        %v1224 = vld [vmem:[%s1217 + $0x18] sm:$0xf]
        %v1225 = vld [vmem:[%s1217 + $0x1c] sm:$0xf]
        %v1226 = vld [vmem:[%s1217 + $0x20] sm:$0xf]
        %v1227 = vld [vmem:[%s1217 + $0x24] sm:$0xf]
        %v1228 = vld [vmem:[%s1217 + $0x28] sm:$0xf]
        %v1229 = vld [vmem:[%s1217 + $0x2c] sm:$0xf]
        %v1230 = vld [vmem:[%s1217 + $0x30] sm:$0xf]
        %v1231 = vld [vmem:[%s1217 + $0x34] sm:$0xf]
        %v1232 = vld [vmem:[%s1217 + $0x38] sm:$0xf]
        %v1233 = vld [vmem:[%s1217 + $0x3c] sm:$0xf]
        %v1234 = vld [vmem:[%s1217 + $0x40] sm:$0xf]
        %v1235 = vld [vmem:[%s1217 + $0x44] sm:$0xf]
        %v1236 = vld [vmem:[%s1217 + $0x48] sm:$0xf]
        %v1237 = vld [vmem:[%s1217 + $0x4c] sm:$0xf]
        %v1238 = vld [vmem:[%s1217 + $0x50] sm:$0xf]
        %v1239 = vld [vmem:[%s1217 + $0x54] sm:$0xf]
        %v1240 = vld [vmem:[%s1217 + $0x58] sm:$0xf]
        %v1241 = vld [vmem:[%s1217 + $0x5c] sm:$0xf]
        %v1258 = vunpack.c.l.b16 %v1201
        %v1259 = vunpack.c.h.b16 %v1201
        %v1260 = vunpack.c.l.b16 %v1202
        %v1261 = vunpack.c.h.b16 %v1202
        %v1262 = vunpack.c.l.b16 %v1203
        %v1263 = vunpack.c.h.b16 %v1203
        %v1264 = vunpack.c.l.b16 %v1204
        %v1265 = vunpack.c.h.b16 %v1204
        %v1266 = vunpack.c.l.b16 %v1205
        %v1267 = vunpack.c.h.b16 %v1205
        %v1268 = vunpack.c.l.b16 %v1206
        %v1269 = vunpack.c.h.b16 %v1206
        %v1270 = vunpack.c.l.b16 %v1207
        %v1271 = vunpack.c.h.b16 %v1207
        %v1272 = vunpack.c.l.b16 %v1208
        %v1273 = vunpack.c.h.b16 %v1208
        %v1274 = vunpack.c.l.b16 %v1209
        %v1275 = vunpack.c.h.b16 %v1209
        %v1276 = vunpack.c.l.b16 %v1210
        %v1277 = vunpack.c.h.b16 %v1210
        %v1278 = vunpack.c.l.b16 %v1211
        %v1279 = vunpack.c.h.b16 %v1211
        %v1280 = vunpack.c.l.b16 %v1212
        %v1281 = vunpack.c.h.b16 %v1212
        %v1282 = vunpack.c.l.b16 %v1213
        %v1283 = vunpack.c.h.b16 %v1213
        %v1284 = vunpack.c.l.b16 %v1214
        %v1285 = vunpack.c.h.b16 %v1214
        %v1286 = vunpack.c.l.b16 %v1215
        %v1287 = vunpack.c.h.b16 %v1215
        %v1288 = vunpack.c.l.b16 %v1216
        %v1289 = vunpack.c.h.b16 %v1216
        %v1290 = vpack.c.b16 %v1260, %v1258
        %v1291 = vpack.c.b16 %v1261, %v1259
        %v1292 = vpack.c.b16 %v1264, %v1262
        %v1293 = vpack.c.b16 %v1265, %v1263
        %v1294 = vpack.c.b16 %v1268, %v1266
        %v1295 = vpack.c.b16 %v1269, %v1267
        %v1296 = vpack.c.b16 %v1272, %v1270
        %v1297 = vpack.c.b16 %v1273, %v1271
        %v1298 = vpack.c.b16 %v1276, %v1274
        %v1299 = vpack.c.b16 %v1277, %v1275
        %v1300 = vpack.c.b16 %v1280, %v1278
        %v1301 = vpack.c.b16 %v1281, %v1279
        %v1302 = vpack.c.b16 %v1284, %v1282
        %v1303 = vpack.c.b16 %v1285, %v1283
        %v1304 = vpack.c.b16 %v1288, %v1286
        %v1305 = vpack.c.b16 %v1289, %v1287
        %v1338 = vunpack.c.l.b16 %v1218
        %v1339 = vunpack.c.l.b16 %v1219
        %v1340 = vunpack.c.l.b16 %v1220
        %v1341 = vunpack.c.l.b16 %v1221
        %v1342 = vunpack.c.l.b16 %v1222
        %v1343 = vunpack.c.l.b16 %v1223
        %v1344 = vunpack.c.l.b16 %v1224
        %v1345 = vunpack.c.l.b16 %v1225
        %v1346 = vunpack.c.l.b16 %v1226
        %v1347 = vunpack.c.l.b16 %v1227
        %v1348 = vunpack.c.l.b16 %v1228
        %v1349 = vunpack.c.l.b16 %v1229
        %v1350 = vunpack.c.l.b16 %v1230
        %v1351 = vunpack.c.l.b16 %v1231
        %v1352 = vunpack.c.l.b16 %v1232
        %v1353 = vunpack.c.l.b16 %v1233
        %v1354 = vunpack.c.l.b16 %v1234
        %v1355 = vunpack.c.l.b16 %v1235
        %v1356 = vunpack.c.l.b16 %v1236
        %v1357 = vunpack.c.l.b16 %v1237
        %v1358 = vunpack.c.l.b16 %v1238
        %v1359 = vunpack.c.l.b16 %v1239
        %v1360 = vunpack.c.l.b16 %v1240
        %v1361 = vunpack.c.l.b16 %v1241
        %v1362 = vpack.c.b16 %v1339, %v1338
        %v1363 = vpack.c.b16 %v1341, %v1340
        %v1364 = vpack.c.b16 %v1343, %v1342
        %v1365 = vpack.c.b16 %v1345, %v1344
        %v1366 = vpack.c.b16 %v1347, %v1346
        %v1367 = vpack.c.b16 %v1349, %v1348
        %v1368 = vpack.c.b16 %v1351, %v1350
        %v1369 = vpack.c.b16 %v1353, %v1352
        %v1370 = vpack.c.b16 %v1355, %v1354
        %v1371 = vpack.c.b16 %v1357, %v1356
        %v1372 = vpack.c.b16 %v1359, %v1358
        %v1373 = vpack.c.b16 %v1361, %v1360
        %v1387 = vsel %vm433, %v1291, 0
        %v1390 = vsel %vm433, %v1293, 0
        %v1393 = vsel %vm433, %v1295, 0
        %v1396 = vsel %vm433, %v1297, 0
        %v1399 = vsel %vm433, %v1299, 0
        %v1402 = vsel %vm433, %v1301, 0
        %v1405 = vsel %vm433, %v1303, 0
        %v1408 = vsel %vm433, %v1305, 0
        %1410 = vmatprep.subr.bf16.mxu0 0
        %1411 = vmatpush1.bf16.msra.mxu0 %v1369
        %1412 = vmatprep.subr.bf16.mxu0 0
        %1413 = vmatpush1.bf16.msra.mxu0 %v1368
        %1414 = vmatprep.subr.bf16.mxu0 0
        %1415 = vmatpush1.bf16.msra.mxu0 %v1367
        %1416 = vmatprep.subr.bf16.mxu0 0
        %1417 = vmatpush1.bf16.msra.mxu0 %v1366
        %1418 = vmatprep.subr.bf16.mxu0 0
        %1419 = vmatpush1.bf16.msra.mxu0 %v1365
        %1420 = vmatprep.subr.bf16.mxu0 0
        %1421 = vmatpush1.bf16.msra.mxu0 %v1364
        %1422 = vmatprep.subr.bf16.mxu0 0
        %1423 = vmatpush1.bf16.msra.mxu0 %v1363
        %1424 = vmatprep.subr.bf16.mxu0 0
        %1425 = vmatpush1.bf16.msra.mxu0 %v1362
        %1426 = vmatprep.subr.bf16.mxu0 0
        %1427 = vmatpush2.bf16.msra.mxu0 0
        %1428 = vmatprep.subr.bf16.mxu0 0
        %1429 = vmatpush2.bf16.msra.mxu0 0
        %1430 = vmatprep.subr.bf16.mxu0 0
        %1431 = vmatpush2.bf16.msra.mxu0 0
        %1432 = vmatprep.subr.bf16.mxu0 0
        %1433 = vmatpush2.bf16.msra.mxu0 0
        %1434 = vmatprep.subr.bf16.mxu0 0
        %1435 = vmatpush2.bf16.msra.mxu0 %v1373
        %1436 = vmatprep.subr.bf16.mxu0 0
        %1437 = vmatpush2.bf16.msra.mxu0 %v1372
        %1438 = vmatprep.subr.bf16.mxu0 0
        %1439 = vmatpush2.bf16.msra.mxu0 %v1371
        %1440 = vmatprep.subr.bf16.mxu0 0
        %1441 = vmatpush2.bf16.msra.mxu0 %v1370
        %1442 = vmatprep.mubr.bf16.mxu0 %v1387
        %1443 = vmatmul.mubr.bf16.gmra.mxu0 %v1290
        %v1444 = vpop.f32.mrf.mxu0
        %v1445 = vadd.f32 0.0, %v1444
        %v1446 = vpop.f32.mrf.mxu0
        %v1447 = vpop.f32.mrf.mxu0
        %v1448 = vadd.f32 0.0, %v1447
        %v1449 = vpop.f32.mrf.mxu0
        %1450 = vmatprep.mubr.bf16.mxu0 %v1390
        %1451 = vmatmul.mubr.bf16.gmra.mxu0 %v1292
        %v1452 = vpop.f32.mrf.mxu0
        %v1453 = vadd.f32 0.0, %v1452
        %v1454 = vpop.f32.mrf.mxu0
        %v1455 = vpop.f32.mrf.mxu0
        %v1456 = vadd.f32 0.0, %v1455
        %v1457 = vpop.f32.mrf.mxu0
        %1458 = vmatprep.mubr.bf16.mxu0 %v1393
        %1459 = vmatmul.mubr.bf16.gmra.mxu0 %v1294
        %v1460 = vpop.f32.mrf.mxu0
        %v1461 = vadd.f32 0.0, %v1460
        %v1462 = vpop.f32.mrf.mxu0
        %v1463 = vpop.f32.mrf.mxu0
        %v1464 = vadd.f32 0.0, %v1463
        %v1465 = vpop.f32.mrf.mxu0
        %1466 = vmatprep.mubr.bf16.mxu0 %v1396
        %1467 = vmatmul.mubr.bf16.gmra.mxu0 %v1296
        %v1468 = vpop.f32.mrf.mxu0
        %v1469 = vadd.f32 0.0, %v1468
        %v1470 = vpop.f32.mrf.mxu0
        %v1471 = vpop.f32.mrf.mxu0
        %v1472 = vadd.f32 0.0, %v1471
        %v1473 = vpop.f32.mrf.mxu0
        %1474 = vmatprep.mubr.bf16.mxu0 %v1399
        %1475 = vmatmul.mubr.bf16.gmra.mxu0 %v1298
        %v1476 = vpop.f32.mrf.mxu0
        %v1477 = vadd.f32 0.0, %v1476
        %v1478 = vpop.f32.mrf.mxu0
        %v1479 = vpop.f32.mrf.mxu0
        %v1480 = vadd.f32 0.0, %v1479
        %v1481 = vpop.f32.mrf.mxu0
        %1482 = vmatprep.mubr.bf16.mxu0 %v1402
        %1483 = vmatmul.mubr.bf16.gmra.mxu0 %v1300
        %v1484 = vpop.f32.mrf.mxu0
        %v1485 = vadd.f32 0.0, %v1484
        %v1486 = vpop.f32.mrf.mxu0
        %v1487 = vpop.f32.mrf.mxu0
        %v1488 = vadd.f32 0.0, %v1487
        %v1489 = vpop.f32.mrf.mxu0
        %1490 = vmatprep.mubr.bf16.mxu0 %v1405
        %1491 = vmatmul.mubr.bf16.gmra.mxu0 %v1302
        %v1492 = vpop.f32.mrf.mxu0
        %v1493 = vadd.f32 0.0, %v1492
        %v1494 = vpop.f32.mrf.mxu0
        %v1495 = vpop.f32.mrf.mxu0
        %v1496 = vadd.f32 0.0, %v1495
        %v1497 = vpop.f32.mrf.mxu0
        %1498 = vmatprep.mubr.bf16.mxu0 %v1408
        %1499 = vmatmul.mubr.bf16.gmra.mxu0 %v1304
        %v1500 = vpop.f32.mrf.mxu0
        %v1501 = vadd.f32 0.0, %v1500
        %v1502 = vpop.f32.mrf.mxu0
        %v1503 = vpop.f32.mrf.mxu0
        %v1504 = vadd.f32 0.0, %v1503
        %v1505 = vpop.f32.mrf.mxu0
        %1506 = vdwg.mxu0
        %v1523 = vunpack.c.l.b16 %v841
        %v1524 = vunpack.c.h.b16 %v841
        %v1525 = vunpack.c.l.b16 %v842
        %v1526 = vunpack.c.h.b16 %v842
        %v1527 = vunpack.c.l.b16 %v843
        %v1528 = vunpack.c.h.b16 %v843
        %v1529 = vunpack.c.l.b16 %v844
        %v1530 = vunpack.c.h.b16 %v844
        %v1531 = vunpack.c.l.b16 %v845
        %v1532 = vunpack.c.h.b16 %v845
        %v1533 = vunpack.c.l.b16 %v846
        %v1534 = vunpack.c.h.b16 %v846
        %v1535 = vunpack.c.l.b16 %v847
        %v1536 = vunpack.c.h.b16 %v847
        %v1537 = vunpack.c.l.b16 %v848
        %v1538 = vunpack.c.h.b16 %v848
        %v1539 = vunpack.c.l.b16 %v849
        %v1540 = vunpack.c.h.b16 %v849
        %v1541 = vunpack.c.l.b16 %v850
        %v1542 = vunpack.c.h.b16 %v850
        %v1543 = vunpack.c.l.b16 %v851
        %v1544 = vunpack.c.h.b16 %v851
        %v1545 = vunpack.c.l.b16 %v852
        %v1546 = vunpack.c.h.b16 %v852
        %v1547 = vunpack.c.l.b16 %v853
        %v1548 = vunpack.c.h.b16 %v853
        %v1549 = vunpack.c.l.b16 %v854
        %v1550 = vunpack.c.h.b16 %v854
        %v1551 = vunpack.c.l.b16 %v855
        %v1552 = vunpack.c.h.b16 %v855
        %v1553 = vunpack.c.l.b16 %v856
        %v1554 = vunpack.c.h.b16 %v856
        %v1555 = vpack.c.b16 %v1525, %v1523
        %v1556 = vpack.c.b16 %v1526, %v1524
        %v1557 = vpack.c.b16 %v1529, %v1527
        %v1558 = vpack.c.b16 %v1530, %v1528
        %v1559 = vpack.c.b16 %v1533, %v1531
        %v1560 = vpack.c.b16 %v1534, %v1532
        %v1561 = vpack.c.b16 %v1537, %v1535
        %v1562 = vpack.c.b16 %v1538, %v1536
        %v1563 = vpack.c.b16 %v1541, %v1539
        %v1564 = vpack.c.b16 %v1542, %v1540
        %v1565 = vpack.c.b16 %v1545, %v1543
        %v1566 = vpack.c.b16 %v1546, %v1544
        %v1567 = vpack.c.b16 %v1549, %v1547
        %v1568 = vpack.c.b16 %v1550, %v1548
        %v1569 = vpack.c.b16 %v1553, %v1551
        %v1570 = vpack.c.b16 %v1554, %v1552
        %v1603 = vunpack.c.l.b16 %v857
        %v1604 = vunpack.c.l.b16 %v858
        %v1605 = vunpack.c.l.b16 %v859
        %v1606 = vunpack.c.l.b16 %v860
        %v1607 = vunpack.c.l.b16 %v861
        %v1608 = vunpack.c.l.b16 %v862
        %v1609 = vunpack.c.l.b16 %v863
        %v1610 = vunpack.c.l.b16 %v864
        %v1611 = vunpack.c.l.b16 %v865
        %v1612 = vunpack.c.l.b16 %v866
        %v1613 = vunpack.c.l.b16 %v867
        %v1614 = vunpack.c.l.b16 %v868
        %v1615 = vunpack.c.l.b16 %v869
        %v1616 = vunpack.c.l.b16 %v870
        %v1617 = vunpack.c.l.b16 %v871
        %v1618 = vunpack.c.l.b16 %v872
        %v1619 = vunpack.c.l.b16 %v873
        %v1620 = vunpack.c.l.b16 %v874
        %v1621 = vunpack.c.l.b16 %v875
        %v1622 = vunpack.c.l.b16 %v876
        %v1623 = vunpack.c.l.b16 %v877
        %v1624 = vunpack.c.l.b16 %v878
        %v1625 = vunpack.c.l.b16 %v879
        %v1626 = vunpack.c.l.b16 %v880
        %v1627 = vpack.c.b16 %v1604, %v1603
        %v1628 = vpack.c.b16 %v1606, %v1605
        %v1629 = vpack.c.b16 %v1608, %v1607
        %v1630 = vpack.c.b16 %v1610, %v1609
        %v1631 = vpack.c.b16 %v1612, %v1611
        %v1632 = vpack.c.b16 %v1614, %v1613
        %v1633 = vpack.c.b16 %v1616, %v1615
        %v1634 = vpack.c.b16 %v1618, %v1617
        %v1635 = vpack.c.b16 %v1620, %v1619
        %v1636 = vpack.c.b16 %v1622, %v1621
        %v1637 = vpack.c.b16 %v1624, %v1623
        %v1638 = vpack.c.b16 %v1626, %v1625
        %v1652 = vsel %vm433, %v1556, 0
        %v1655 = vsel %vm433, %v1558, 0
        %v1658 = vsel %vm433, %v1560, 0
        %v1661 = vsel %vm433, %v1562, 0
        %v1664 = vsel %vm433, %v1564, 0
        %v1667 = vsel %vm433, %v1566, 0
        %v1670 = vsel %vm433, %v1568, 0
        %v1673 = vsel %vm433, %v1570, 0
        %1675 = vmatprep.subr.bf16.mxu0 0
        %1676 = vmatpush1.bf16.msra.mxu0 %v1634
        %1677 = vmatprep.subr.bf16.mxu0 0
        %1678 = vmatpush1.bf16.msra.mxu0 %v1633
        %1679 = vmatprep.subr.bf16.mxu0 0
        %1680 = vmatpush1.bf16.msra.mxu0 %v1632
        %1681 = vmatprep.subr.bf16.mxu0 0
        %1682 = vmatpush1.bf16.msra.mxu0 %v1631
        %1683 = vmatprep.subr.bf16.mxu0 0
        %1684 = vmatpush1.bf16.msra.mxu0 %v1630
        %1685 = vmatprep.subr.bf16.mxu0 0
        %1686 = vmatpush1.bf16.msra.mxu0 %v1629
        %1687 = vmatprep.subr.bf16.mxu0 0
        %1688 = vmatpush1.bf16.msra.mxu0 %v1628
        %1689 = vmatprep.subr.bf16.mxu0 0
        %1690 = vmatpush1.bf16.msra.mxu0 %v1627
        %1691 = vmatprep.subr.bf16.mxu0 0
        %1692 = vmatpush2.bf16.msra.mxu0 0
        %1693 = vmatprep.subr.bf16.mxu0 0
        %1694 = vmatpush2.bf16.msra.mxu0 0
        %1695 = vmatprep.subr.bf16.mxu0 0
        %1696 = vmatpush2.bf16.msra.mxu0 0
        %1697 = vmatprep.subr.bf16.mxu0 0
        %1698 = vmatpush2.bf16.msra.mxu0 0
        %1699 = vmatprep.subr.bf16.mxu0 0
        %1700 = vmatpush2.bf16.msra.mxu0 %v1638
        %1701 = vmatprep.subr.bf16.mxu0 0
        %1702 = vmatpush2.bf16.msra.mxu0 %v1637
        %1703 = vmatprep.subr.bf16.mxu0 0
        %1704 = vmatpush2.bf16.msra.mxu0 %v1636
        %1705 = vmatprep.subr.bf16.mxu0 0
        %1706 = vmatpush2.bf16.msra.mxu0 %v1635
        %1707 = vmatprep.mubr.bf16.mxu0 %v1652
        %1708 = vmatmul.mubr.bf16.gmra.mxu0 %v1555
        %v1709 = vpop.f32.mrf.mxu0
        %v1710 = vadd.f32 %v1445, %v1709
        %v1711 = vpop.f32.mrf.mxu0
        %v1712 = vpop.f32.mrf.mxu0
        %v1713 = vadd.f32 %v1448, %v1712
        %v1714 = vpop.f32.mrf.mxu0
        %1715 = vmatprep.mubr.bf16.mxu0 %v1655
        %1716 = vmatmul.mubr.bf16.gmra.mxu0 %v1557
        %v1717 = vpop.f32.mrf.mxu0
        %v1718 = vadd.f32 %v1453, %v1717
        %v1719 = vpop.f32.mrf.mxu0
        %v1720 = vpop.f32.mrf.mxu0
        %v1721 = vadd.f32 %v1456, %v1720
        %v1722 = vpop.f32.mrf.mxu0
        %1723 = vmatprep.mubr.bf16.mxu0 %v1658
        %1724 = vmatmul.mubr.bf16.gmra.mxu0 %v1559
        %v1725 = vpop.f32.mrf.mxu0
        %v1726 = vadd.f32 %v1461, %v1725
        %v1727 = vpop.f32.mrf.mxu0
        %v1728 = vpop.f32.mrf.mxu0
        %v1729 = vadd.f32 %v1464, %v1728
        %v1730 = vpop.f32.mrf.mxu0
        %1731 = vmatprep.mubr.bf16.mxu0 %v1661
        %1732 = vmatmul.mubr.bf16.gmra.mxu0 %v1561
        %v1733 = vpop.f32.mrf.mxu0
        %v1734 = vadd.f32 %v1469, %v1733
        %v1735 = vpop.f32.mrf.mxu0
        %v1736 = vpop.f32.mrf.mxu0
        %v1737 = vadd.f32 %v1472, %v1736
        %v1738 = vpop.f32.mrf.mxu0
        %1739 = vmatprep.mubr.bf16.mxu0 %v1664
        %1740 = vmatmul.mubr.bf16.gmra.mxu0 %v1563
        %v1741 = vpop.f32.mrf.mxu0
        %v1742 = vadd.f32 %v1477, %v1741
        %v1743 = vpop.f32.mrf.mxu0
        %v1744 = vpop.f32.mrf.mxu0
        %v1745 = vadd.f32 %v1480, %v1744
        %v1746 = vpop.f32.mrf.mxu0
        %1747 = vmatprep.mubr.bf16.mxu0 %v1667
        %1748 = vmatmul.mubr.bf16.gmra.mxu0 %v1565
        %v1749 = vpop.f32.mrf.mxu0
        %v1750 = vadd.f32 %v1485, %v1749
        %v1751 = vpop.f32.mrf.mxu0
        %v1752 = vpop.f32.mrf.mxu0
        %v1753 = vadd.f32 %v1488, %v1752
        %v1754 = vpop.f32.mrf.mxu0
        %1755 = vmatprep.mubr.bf16.mxu0 %v1670
        %1756 = vmatmul.mubr.bf16.gmra.mxu0 %v1567
        %v1757 = vpop.f32.mrf.mxu0
        %v1758 = vadd.f32 %v1493, %v1757
        %v1759 = vpop.f32.mrf.mxu0
        %v1760 = vpop.f32.mrf.mxu0
        %v1761 = vadd.f32 %v1496, %v1760
        %v1762 = vpop.f32.mrf.mxu0
        %1763 = vmatprep.mubr.bf16.mxu0 %v1673
        %1764 = vmatmul.mubr.bf16.gmra.mxu0 %v1569
        %v1765 = vpop.f32.mrf.mxu0
        %v1766 = vadd.f32 %v1501, %v1765
        %v1767 = vpop.f32.mrf.mxu0
        %v1768 = vpop.f32.mrf.mxu0
        %v1769 = vadd.f32 %v1504, %v1768
        %v1770 = vpop.f32.mrf.mxu0
        %1771 = vdwg.mxu0
        %s1772 = scalar_lea.vmem [#allocation2], 48
        %v1773 = vld [vmem:[%s1772] sm:$0xff]
        %v1774 = vld [vmem:[%s1772 + $0x8] sm:$0xff]
        %v1775 = vld [vmem:[%s1772 + $0x18] sm:$0xff]
        %v1776 = vld [vmem:[%s1772 + $0x20] sm:$0xff]
        %v1777 = vld [vmem:[%s1772 + $0x30] sm:$0xff]
        %v1778 = vld [vmem:[%s1772 + $0x38] sm:$0xff]
        %v1779 = vld [vmem:[%s1772 + $0x48] sm:$0xff]
        %v1780 = vld [vmem:[%s1772 + $0x50] sm:$0xff]
        %v1781 = vld [vmem:[%s1772 + $0x60] sm:$0xff]
        %v1782 = vld [vmem:[%s1772 + $0x68] sm:$0xff]
        %v1783 = vld [vmem:[%s1772 + $0x78] sm:$0xff]
        %v1784 = vld [vmem:[%s1772 + $0x80] sm:$0xff]
        %v1785 = vld [vmem:[%s1772 + $0x90] sm:$0xff]
        %v1786 = vld [vmem:[%s1772 + $0x98] sm:$0xff]
        %v1787 = vld [vmem:[%s1772 + $0xa8] sm:$0xff]
        %v1788 = vld [vmem:[%s1772 + $0xb0] sm:$0xff]
        %v1789 = vpack.c.bf16 %v1774, %v1773
        %v1790 = vpack.c.bf16 %v1776, %v1775
        %v1791 = vpack.c.bf16 %v1778, %v1777
        %v1792 = vpack.c.bf16 %v1780, %v1779
        %v1793 = vpack.c.bf16 %v1782, %v1781
        %v1794 = vpack.c.bf16 %v1784, %v1783
        %v1795 = vpack.c.bf16 %v1786, %v1785
        %v1796 = vpack.c.bf16 %v1788, %v1787
        %v1805 = vunpack.c.l.b16 %v1789
        %v1806 = vunpack.c.h.b16 %v1789
        %v1807 = vunpack.c.l.b16 %v1790
        %v1808 = vunpack.c.h.b16 %v1790
        %v1809 = vunpack.c.l.b16 %v1791
        %v1810 = vunpack.c.h.b16 %v1791
        %v1811 = vunpack.c.l.b16 %v1792
        %v1812 = vunpack.c.h.b16 %v1792
        %v1813 = vunpack.c.l.b16 %v1793
        %v1814 = vunpack.c.h.b16 %v1793
        %v1815 = vunpack.c.l.b16 %v1794
        %v1816 = vunpack.c.h.b16 %v1794
        %v1817 = vunpack.c.l.b16 %v1795
        %v1818 = vunpack.c.h.b16 %v1795
        %v1819 = vunpack.c.l.b16 %v1796
        %v1820 = vunpack.c.h.b16 %v1796
        %v1821 = vpack.c.b16 %v1805, %v1805
        %v1822 = vpack.c.b16 %v1806, %v1806
        %v1823 = vpack.c.b16 %v1807, %v1807
        %v1824 = vpack.c.b16 %v1808, %v1808
        %v1825 = vpack.c.b16 %v1809, %v1809
        %v1826 = vpack.c.b16 %v1810, %v1810
        %v1827 = vpack.c.b16 %v1811, %v1811
        %v1828 = vpack.c.b16 %v1812, %v1812
        %v1829 = vpack.c.b16 %v1813, %v1813
        %v1830 = vpack.c.b16 %v1814, %v1814
        %v1831 = vpack.c.b16 %v1815, %v1815
        %v1832 = vpack.c.b16 %v1816, %v1816
        %v1833 = vpack.c.b16 %v1817, %v1817
        %v1834 = vpack.c.b16 %v1818, %v1818
        %v1835 = vpack.c.b16 %v1819, %v1819
        %v1836 = vpack.c.b16 %v1820, %v1820
        %1853 = vst.msk [vmem:[#allocation3] sm:$0xf] %vm599, %v1821
        %1854 = vst.msk [vmem:[#allocation3 + $0x8] sm:$0xf] %vm599, %v1822
        %1855 = vst.msk [vmem:[#allocation3 + $0x10] sm:$0xf] %vm599, %v1823
        %1856 = vst.msk [vmem:[#allocation3 + $0x18] sm:$0xf] %vm599, %v1824
        %1857 = vst.msk [vmem:[#allocation3 + $0x20] sm:$0xf] %vm599, %v1825
        %1858 = vst.msk [vmem:[#allocation3 + $0x28] sm:$0xf] %vm599, %v1826
        %1859 = vst.msk [vmem:[#allocation3 + $0x30] sm:$0xf] %vm599, %v1827
        %1860 = vst.msk [vmem:[#allocation3 + $0x38] sm:$0xf] %vm599, %v1828
        %1861 = vst.msk [vmem:[#allocation3 + $0x40] sm:$0xf] %vm599, %v1829
        %1862 = vst.msk [vmem:[#allocation3 + $0x48] sm:$0xf] %vm599, %v1830
        %1863 = vst.msk [vmem:[#allocation3 + $0x50] sm:$0xf] %vm599, %v1831
        %1864 = vst.msk [vmem:[#allocation3 + $0x58] sm:$0xf] %vm599, %v1832
        %1865 = vst.msk [vmem:[#allocation3 + $0x60] sm:$0xf] %vm599, %v1833
        %1866 = vst.msk [vmem:[#allocation3 + $0x68] sm:$0xf] %vm599, %v1834
        %1867 = vst.msk [vmem:[#allocation3 + $0x70] sm:$0xf] %vm599, %v1835
        %1868 = vst.msk [vmem:[#allocation3 + $0x78] sm:$0xf] %vm599, %v1836
        %v1869 = vld [vmem:[%s1772 + $0x1] sm:$0xff]
        %v1870 = vld [vmem:[%s1772 + $0x9] sm:$0xff]
        %v1871 = vld [vmem:[%s1772 + $0x19] sm:$0xff]
        %v1872 = vld [vmem:[%s1772 + $0x21] sm:$0xff]
        %v1873 = vld [vmem:[%s1772 + $0x31] sm:$0xff]
        %v1874 = vld [vmem:[%s1772 + $0x39] sm:$0xff]
        %v1875 = vld [vmem:[%s1772 + $0x49] sm:$0xff]
        %v1876 = vld [vmem:[%s1772 + $0x51] sm:$0xff]
        %v1877 = vld [vmem:[%s1772 + $0x61] sm:$0xff]
        %v1878 = vld [vmem:[%s1772 + $0x69] sm:$0xff]
        %v1879 = vld [vmem:[%s1772 + $0x79] sm:$0xff]
        %v1880 = vld [vmem:[%s1772 + $0x81] sm:$0xff]
        %v1881 = vld [vmem:[%s1772 + $0x91] sm:$0xff]
        %v1882 = vld [vmem:[%s1772 + $0x99] sm:$0xff]
        %v1883 = vld [vmem:[%s1772 + $0xa9] sm:$0xff]
        %v1884 = vld [vmem:[%s1772 + $0xb1] sm:$0xff]
        %v1885 = vpack.c.bf16 %v1870, %v1869
        %v1886 = vpack.c.bf16 %v1872, %v1871
        %v1887 = vpack.c.bf16 %v1874, %v1873
        %v1888 = vpack.c.bf16 %v1876, %v1875
        %v1889 = vpack.c.bf16 %v1878, %v1877
        %v1890 = vpack.c.bf16 %v1880, %v1879
        %v1891 = vpack.c.bf16 %v1882, %v1881
        %v1892 = vpack.c.bf16 %v1884, %v1883
        %v1901 = vunpack.c.l.b16 %v1885
        %v1902 = vunpack.c.h.b16 %v1885
        %v1903 = vunpack.c.l.b16 %v1886
        %v1904 = vunpack.c.h.b16 %v1886
        %v1905 = vunpack.c.l.b16 %v1887
        %v1906 = vunpack.c.h.b16 %v1887
        %v1907 = vunpack.c.l.b16 %v1888
        %v1908 = vunpack.c.h.b16 %v1888
        %v1909 = vunpack.c.l.b16 %v1889
        %v1910 = vunpack.c.h.b16 %v1889
        %v1911 = vunpack.c.l.b16 %v1890
        %v1912 = vunpack.c.h.b16 %v1890
        %v1913 = vunpack.c.l.b16 %v1891
        %v1914 = vunpack.c.h.b16 %v1891
        %v1915 = vunpack.c.l.b16 %v1892
        %v1916 = vunpack.c.h.b16 %v1892
        %v1917 = vpack.c.b16 %v1901, %v1901
        %v1918 = vpack.c.b16 %v1902, %v1902
        %v1919 = vpack.c.b16 %v1903, %v1903
        %v1920 = vpack.c.b16 %v1904, %v1904
        %v1921 = vpack.c.b16 %v1905, %v1905
        %v1922 = vpack.c.b16 %v1906, %v1906
        %v1923 = vpack.c.b16 %v1907, %v1907
        %v1924 = vpack.c.b16 %v1908, %v1908
        %v1925 = vpack.c.b16 %v1909, %v1909
        %v1926 = vpack.c.b16 %v1910, %v1910
        %v1927 = vpack.c.b16 %v1911, %v1911
        %v1928 = vpack.c.b16 %v1912, %v1912
        %v1929 = vpack.c.b16 %v1913, %v1913
        %v1930 = vpack.c.b16 %v1914, %v1914
        %v1931 = vpack.c.b16 %v1915, %v1915
        %v1932 = vpack.c.b16 %v1916, %v1916
        %1933 = vrot.lane.b32.xlu0 %v1917, 64
        %v1934 = vpop.permute.xlu0 %1933
        %1935 = vrot.lane.b32.xlu0 %v1918, 64
        %v1936 = vpop.permute.xlu0 %1935
        %1937 = vrot.lane.b32.xlu0 %v1919, 64
        %v1938 = vpop.permute.xlu0 %1937
        %1939 = vrot.lane.b32.xlu0 %v1920, 64
        %v1940 = vpop.permute.xlu0 %1939
        %1941 = vrot.lane.b32.xlu0 %v1921, 64
        %v1942 = vpop.permute.xlu0 %1941
        %1943 = vrot.lane.b32.xlu0 %v1922, 64
        %v1944 = vpop.permute.xlu0 %1943
        %1945 = vrot.lane.b32.xlu0 %v1923, 64
        %v1946 = vpop.permute.xlu0 %1945
        %1947 = vrot.lane.b32.xlu0 %v1924, 64
        %v1948 = vpop.permute.xlu0 %1947
        %1949 = vrot.lane.b32.xlu0 %v1925, 64
        %v1950 = vpop.permute.xlu0 %1949
        %1951 = vrot.lane.b32.xlu0 %v1926, 64
        %v1952 = vpop.permute.xlu0 %1951
        %1953 = vrot.lane.b32.xlu0 %v1927, 64
        %v1954 = vpop.permute.xlu0 %1953
        %1955 = vrot.lane.b32.xlu0 %v1928, 64
        %v1956 = vpop.permute.xlu0 %1955
        %1957 = vrot.lane.b32.xlu0 %v1929, 64
        %v1958 = vpop.permute.xlu0 %1957
        %1959 = vrot.lane.b32.xlu0 %v1930, 64
        %v1960 = vpop.permute.xlu0 %1959
        %1961 = vrot.lane.b32.xlu0 %v1931, 64
        %v1962 = vpop.permute.xlu0 %1961
        %1963 = vrot.lane.b32.xlu0 %v1932, 64
        %v1964 = vpop.permute.xlu0 %1963
        %1981 = vst.msk [vmem:[#allocation3] sm:$0xf] %vm728, %v1934
        %1982 = vst.msk [vmem:[#allocation3 + $0x8] sm:$0xf] %vm728, %v1936
        %1983 = vst.msk [vmem:[#allocation3 + $0x10] sm:$0xf] %vm728, %v1938
        %1984 = vst.msk [vmem:[#allocation3 + $0x18] sm:$0xf] %vm728, %v1940
        %1985 = vst.msk [vmem:[#allocation3 + $0x20] sm:$0xf] %vm728, %v1942
        %1986 = vst.msk [vmem:[#allocation3 + $0x28] sm:$0xf] %vm728, %v1944
        %1987 = vst.msk [vmem:[#allocation3 + $0x30] sm:$0xf] %vm728, %v1946
        %1988 = vst.msk [vmem:[#allocation3 + $0x38] sm:$0xf] %vm728, %v1948
        %1989 = vst.msk [vmem:[#allocation3 + $0x40] sm:$0xf] %vm728, %v1950
        %1990 = vst.msk [vmem:[#allocation3 + $0x48] sm:$0xf] %vm728, %v1952
        %1991 = vst.msk [vmem:[#allocation3 + $0x50] sm:$0xf] %vm728, %v1954
        %1992 = vst.msk [vmem:[#allocation3 + $0x58] sm:$0xf] %vm728, %v1956
        %1993 = vst.msk [vmem:[#allocation3 + $0x60] sm:$0xf] %vm728, %v1958
        %1994 = vst.msk [vmem:[#allocation3 + $0x68] sm:$0xf] %vm728, %v1960
        %1995 = vst.msk [vmem:[#allocation3 + $0x70] sm:$0xf] %vm728, %v1962
        %1996 = vst.msk [vmem:[#allocation3 + $0x78] sm:$0xf] %vm728, %v1964
        %v1997 = vld [vmem:[%s1772 + $0x2] sm:$0xff]
        %v1998 = vld [vmem:[%s1772 + $0xa] sm:$0xff]
        %v1999 = vld [vmem:[%s1772 + $0x1a] sm:$0xff]
        %v2000 = vld [vmem:[%s1772 + $0x22] sm:$0xff]
        %v2001 = vld [vmem:[%s1772 + $0x32] sm:$0xff]
        %v2002 = vld [vmem:[%s1772 + $0x3a] sm:$0xff]
        %v2003 = vld [vmem:[%s1772 + $0x4a] sm:$0xff]
        %v2004 = vld [vmem:[%s1772 + $0x52] sm:$0xff]
        %v2005 = vld [vmem:[%s1772 + $0x62] sm:$0xff]
        %v2006 = vld [vmem:[%s1772 + $0x6a] sm:$0xff]
        %v2007 = vld [vmem:[%s1772 + $0x7a] sm:$0xff]
        %v2008 = vld [vmem:[%s1772 + $0x82] sm:$0xff]
        %v2009 = vld [vmem:[%s1772 + $0x92] sm:$0xff]
        %v2010 = vld [vmem:[%s1772 + $0x9a] sm:$0xff]
        %v2011 = vld [vmem:[%s1772 + $0xaa] sm:$0xff]
        %v2012 = vld [vmem:[%s1772 + $0xb2] sm:$0xff]
        %v2013 = vpack.c.bf16 %v1998, %v1997
        %v2014 = vpack.c.bf16 %v2000, %v1999
        %v2015 = vpack.c.bf16 %v2002, %v2001
        %v2016 = vpack.c.bf16 %v2004, %v2003
        %v2017 = vpack.c.bf16 %v2006, %v2005
        %v2018 = vpack.c.bf16 %v2008, %v2007
        %v2019 = vpack.c.bf16 %v2010, %v2009
        %v2020 = vpack.c.bf16 %v2012, %v2011
        %v2029 = vunpack.c.l.b16 %v2013
        %v2030 = vunpack.c.h.b16 %v2013
        %v2031 = vunpack.c.l.b16 %v2014
        %v2032 = vunpack.c.h.b16 %v2014
        %v2033 = vunpack.c.l.b16 %v2015
        %v2034 = vunpack.c.h.b16 %v2015
        %v2035 = vunpack.c.l.b16 %v2016
        %v2036 = vunpack.c.h.b16 %v2016
        %v2037 = vunpack.c.l.b16 %v2017
        %v2038 = vunpack.c.h.b16 %v2017
        %v2039 = vunpack.c.l.b16 %v2018
        %v2040 = vunpack.c.h.b16 %v2018
        %v2041 = vunpack.c.l.b16 %v2019
        %v2042 = vunpack.c.h.b16 %v2019
        %v2043 = vunpack.c.l.b16 %v2020
        %v2044 = vunpack.c.h.b16 %v2020
        %v2045 = vpack.c.b16 %v2029, %v2029
        %v2046 = vpack.c.b16 %v2030, %v2030
        %v2047 = vpack.c.b16 %v2031, %v2031
        %v2048 = vpack.c.b16 %v2032, %v2032
        %v2049 = vpack.c.b16 %v2033, %v2033
        %v2050 = vpack.c.b16 %v2034, %v2034
        %v2051 = vpack.c.b16 %v2035, %v2035
        %v2052 = vpack.c.b16 %v2036, %v2036
        %v2053 = vpack.c.b16 %v2037, %v2037
        %v2054 = vpack.c.b16 %v2038, %v2038
        %v2055 = vpack.c.b16 %v2039, %v2039
        %v2056 = vpack.c.b16 %v2040, %v2040
        %v2057 = vpack.c.b16 %v2041, %v2041
        %v2058 = vpack.c.b16 %v2042, %v2042
        %v2059 = vpack.c.b16 %v2043, %v2043
        %v2060 = vpack.c.b16 %v2044, %v2044
        %2077 = vst.msk [vmem:[#allocation3 + $0x4] sm:$0xf] %vm599, %v2045
        %2078 = vst.msk [vmem:[#allocation3 + $0xc] sm:$0xf] %vm599, %v2046
        %2079 = vst.msk [vmem:[#allocation3 + $0x14] sm:$0xf] %vm599, %v2047
        %2080 = vst.msk [vmem:[#allocation3 + $0x1c] sm:$0xf] %vm599, %v2048
        %2081 = vst.msk [vmem:[#allocation3 + $0x24] sm:$0xf] %vm599, %v2049
        %2082 = vst.msk [vmem:[#allocation3 + $0x2c] sm:$0xf] %vm599, %v2050
        %2083 = vst.msk [vmem:[#allocation3 + $0x34] sm:$0xf] %vm599, %v2051
        %2084 = vst.msk [vmem:[#allocation3 + $0x3c] sm:$0xf] %vm599, %v2052
        %2085 = vst.msk [vmem:[#allocation3 + $0x44] sm:$0xf] %vm599, %v2053
        %2086 = vst.msk [vmem:[#allocation3 + $0x4c] sm:$0xf] %vm599, %v2054
        %2087 = vst.msk [vmem:[#allocation3 + $0x54] sm:$0xf] %vm599, %v2055
        %2088 = vst.msk [vmem:[#allocation3 + $0x5c] sm:$0xf] %vm599, %v2056
        %2089 = vst.msk [vmem:[#allocation3 + $0x64] sm:$0xf] %vm599, %v2057
        %2090 = vst.msk [vmem:[#allocation3 + $0x6c] sm:$0xf] %vm599, %v2058
        %2091 = vst.msk [vmem:[#allocation3 + $0x74] sm:$0xf] %vm599, %v2059
        %2092 = vst.msk [vmem:[#allocation3 + $0x7c] sm:$0xf] %vm599, %v2060
        %v2093 = vld [vmem:[#allocation3] sm:$0xff]
        %v2094 = vld [vmem:[#allocation3 + $0x8] sm:$0xff]
        %v2095 = vld [vmem:[#allocation3 + $0x10] sm:$0xff]
        %v2096 = vld [vmem:[#allocation3 + $0x18] sm:$0xff]
        %v2097 = vld [vmem:[#allocation3 + $0x20] sm:$0xff]
        %v2098 = vld [vmem:[#allocation3 + $0x28] sm:$0xff]
        %v2099 = vld [vmem:[#allocation3 + $0x30] sm:$0xff]
        %v2100 = vld [vmem:[#allocation3 + $0x38] sm:$0xff]
        %v2101 = vld [vmem:[#allocation3 + $0x40] sm:$0xff]
        %v2102 = vld [vmem:[#allocation3 + $0x48] sm:$0xff]
        %v2103 = vld [vmem:[#allocation3 + $0x50] sm:$0xff]
        %v2104 = vld [vmem:[#allocation3 + $0x58] sm:$0xff]
        %v2105 = vld [vmem:[#allocation3 + $0x60] sm:$0xff]
        %v2106 = vld [vmem:[#allocation3 + $0x68] sm:$0xff]
        %v2107 = vld [vmem:[#allocation3 + $0x70] sm:$0xff]
        %v2108 = vld [vmem:[#allocation3 + $0x78] sm:$0xff]
        %s2109 = scalar_lea.vmem %s3, 192
        %v2110 = vld [vmem:[%s2109] sm:$0xf]
        %v2111 = vld [vmem:[%s2109 + $0x4] sm:$0xf]
        %v2112 = vld [vmem:[%s2109 + $0x8] sm:$0xf]
        %v2113 = vld [vmem:[%s2109 + $0xc] sm:$0xf]
        %v2114 = vld [vmem:[%s2109 + $0x10] sm:$0xf]
        %v2115 = vld [vmem:[%s2109 + $0x14] sm:$0xf]
        %v2116 = vld [vmem:[%s2109 + $0x18] sm:$0xf]
        %v2117 = vld [vmem:[%s2109 + $0x1c] sm:$0xf]
        %v2118 = vld [vmem:[%s2109 + $0x20] sm:$0xf]
        %v2119 = vld [vmem:[%s2109 + $0x24] sm:$0xf]
        %v2120 = vld [vmem:[%s2109 + $0x28] sm:$0xf]
        %v2121 = vld [vmem:[%s2109 + $0x2c] sm:$0xf]
        %v2122 = vld [vmem:[%s2109 + $0x30] sm:$0xf]
        %v2123 = vld [vmem:[%s2109 + $0x34] sm:$0xf]
        %v2124 = vld [vmem:[%s2109 + $0x38] sm:$0xf]
        %v2125 = vld [vmem:[%s2109 + $0x3c] sm:$0xf]
        %v2126 = vld [vmem:[%s2109 + $0x40] sm:$0xf]
        %v2127 = vld [vmem:[%s2109 + $0x44] sm:$0xf]
        %v2128 = vld [vmem:[%s2109 + $0x48] sm:$0xf]
        %v2129 = vld [vmem:[%s2109 + $0x4c] sm:$0xf]
        %v2130 = vld [vmem:[%s2109 + $0x50] sm:$0xf]
        %v2131 = vld [vmem:[%s2109 + $0x54] sm:$0xf]
        %v2132 = vld [vmem:[%s2109 + $0x58] sm:$0xf]
        %v2133 = vld [vmem:[%s2109 + $0x5c] sm:$0xf]
        %v2150 = vunpack.c.l.b16 %v2093
        %v2151 = vunpack.c.h.b16 %v2093
        %v2152 = vunpack.c.l.b16 %v2094
        %v2153 = vunpack.c.h.b16 %v2094
        %v2154 = vunpack.c.l.b16 %v2095
        %v2155 = vunpack.c.h.b16 %v2095
        %v2156 = vunpack.c.l.b16 %v2096
        %v2157 = vunpack.c.h.b16 %v2096
        %v2158 = vunpack.c.l.b16 %v2097
        %v2159 = vunpack.c.h.b16 %v2097
        %v2160 = vunpack.c.l.b16 %v2098
        %v2161 = vunpack.c.h.b16 %v2098
        %v2162 = vunpack.c.l.b16 %v2099
        %v2163 = vunpack.c.h.b16 %v2099
        %v2164 = vunpack.c.l.b16 %v2100
        %v2165 = vunpack.c.h.b16 %v2100
        %v2166 = vunpack.c.l.b16 %v2101
        %v2167 = vunpack.c.h.b16 %v2101
        %v2168 = vunpack.c.l.b16 %v2102
        %v2169 = vunpack.c.h.b16 %v2102
        %v2170 = vunpack.c.l.b16 %v2103
        %v2171 = vunpack.c.h.b16 %v2103
        %v2172 = vunpack.c.l.b16 %v2104
        %v2173 = vunpack.c.h.b16 %v2104
        %v2174 = vunpack.c.l.b16 %v2105
        %v2175 = vunpack.c.h.b16 %v2105
        %v2176 = vunpack.c.l.b16 %v2106
        %v2177 = vunpack.c.h.b16 %v2106
        %v2178 = vunpack.c.l.b16 %v2107
        %v2179 = vunpack.c.h.b16 %v2107
        %v2180 = vunpack.c.l.b16 %v2108
        %v2181 = vunpack.c.h.b16 %v2108
        %v2182 = vpack.c.b16 %v2152, %v2150
        %v2183 = vpack.c.b16 %v2153, %v2151
        %v2184 = vpack.c.b16 %v2156, %v2154
        %v2185 = vpack.c.b16 %v2157, %v2155
        %v2186 = vpack.c.b16 %v2160, %v2158
        %v2187 = vpack.c.b16 %v2161, %v2159
        %v2188 = vpack.c.b16 %v2164, %v2162
        %v2189 = vpack.c.b16 %v2165, %v2163
        %v2190 = vpack.c.b16 %v2168, %v2166
        %v2191 = vpack.c.b16 %v2169, %v2167
        %v2192 = vpack.c.b16 %v2172, %v2170
        %v2193 = vpack.c.b16 %v2173, %v2171
        %v2194 = vpack.c.b16 %v2176, %v2174
        %v2195 = vpack.c.b16 %v2177, %v2175
        %v2196 = vpack.c.b16 %v2180, %v2178
        %v2197 = vpack.c.b16 %v2181, %v2179
        %v2230 = vunpack.c.l.b16 %v2110
        %v2231 = vunpack.c.l.b16 %v2111
        %v2232 = vunpack.c.l.b16 %v2112
        %v2233 = vunpack.c.l.b16 %v2113
        %v2234 = vunpack.c.l.b16 %v2114
        %v2235 = vunpack.c.l.b16 %v2115
        %v2236 = vunpack.c.l.b16 %v2116
        %v2237 = vunpack.c.l.b16 %v2117
        %v2238 = vunpack.c.l.b16 %v2118
        %v2239 = vunpack.c.l.b16 %v2119
        %v2240 = vunpack.c.l.b16 %v2120
        %v2241 = vunpack.c.l.b16 %v2121
        %v2242 = vunpack.c.l.b16 %v2122
        %v2243 = vunpack.c.l.b16 %v2123
        %v2244 = vunpack.c.l.b16 %v2124
        %v2245 = vunpack.c.l.b16 %v2125
        %v2246 = vunpack.c.l.b16 %v2126
        %v2247 = vunpack.c.l.b16 %v2127
        %v2248 = vunpack.c.l.b16 %v2128
        %v2249 = vunpack.c.l.b16 %v2129
        %v2250 = vunpack.c.l.b16 %v2130
        %v2251 = vunpack.c.l.b16 %v2131
        %v2252 = vunpack.c.l.b16 %v2132
        %v2253 = vunpack.c.l.b16 %v2133
        %v2254 = vpack.c.b16 %v2231, %v2230
        %v2255 = vpack.c.b16 %v2233, %v2232
        %v2256 = vpack.c.b16 %v2235, %v2234
        %v2257 = vpack.c.b16 %v2237, %v2236
        %v2258 = vpack.c.b16 %v2239, %v2238
        %v2259 = vpack.c.b16 %v2241, %v2240
        %v2260 = vpack.c.b16 %v2243, %v2242
        %v2261 = vpack.c.b16 %v2245, %v2244
        %v2262 = vpack.c.b16 %v2247, %v2246
        %v2263 = vpack.c.b16 %v2249, %v2248
        %v2264 = vpack.c.b16 %v2251, %v2250
        %v2265 = vpack.c.b16 %v2253, %v2252
        %v2279 = vsel %vm433, %v2183, 0
        %v2282 = vsel %vm433, %v2185, 0
        %v2285 = vsel %vm433, %v2187, 0
        %v2288 = vsel %vm433, %v2189, 0
        %v2291 = vsel %vm433, %v2191, 0
        %v2294 = vsel %vm433, %v2193, 0
        %v2297 = vsel %vm433, %v2195, 0
        %v2300 = vsel %vm433, %v2197, 0
        %2302 = vmatprep.subr.bf16.mxu0 0
        %2303 = vmatpush1.bf16.msra.mxu0 %v2261
        %2304 = vmatprep.subr.bf16.mxu0 0
        %2305 = vmatpush1.bf16.msra.mxu0 %v2260
        %2306 = vmatprep.subr.bf16.mxu0 0
        %2307 = vmatpush1.bf16.msra.mxu0 %v2259
        %2308 = vmatprep.subr.bf16.mxu0 0
        %2309 = vmatpush1.bf16.msra.mxu0 %v2258
        %2310 = vmatprep.subr.bf16.mxu0 0
        %2311 = vmatpush1.bf16.msra.mxu0 %v2257
        %2312 = vmatprep.subr.bf16.mxu0 0
        %2313 = vmatpush1.bf16.msra.mxu0 %v2256
        %2314 = vmatprep.subr.bf16.mxu0 0
        %2315 = vmatpush1.bf16.msra.mxu0 %v2255
        %2316 = vmatprep.subr.bf16.mxu0 0
        %2317 = vmatpush1.bf16.msra.mxu0 %v2254
        %2318 = vmatprep.subr.bf16.mxu0 0
        %2319 = vmatpush2.bf16.msra.mxu0 0
        %2320 = vmatprep.subr.bf16.mxu0 0
        %2321 = vmatpush2.bf16.msra.mxu0 0
        %2322 = vmatprep.subr.bf16.mxu0 0
        %2323 = vmatpush2.bf16.msra.mxu0 0
        %2324 = vmatprep.subr.bf16.mxu0 0
        %2325 = vmatpush2.bf16.msra.mxu0 0
        %2326 = vmatprep.subr.bf16.mxu0 0
        %2327 = vmatpush2.bf16.msra.mxu0 %v2265
        %2328 = vmatprep.subr.bf16.mxu0 0
        %2329 = vmatpush2.bf16.msra.mxu0 %v2264
        %2330 = vmatprep.subr.bf16.mxu0 0
        %2331 = vmatpush2.bf16.msra.mxu0 %v2263
        %2332 = vmatprep.subr.bf16.mxu0 0
        %2333 = vmatpush2.bf16.msra.mxu0 %v2262
        %2334 = vmatprep.mubr.bf16.mxu0 %v2279
        %2335 = vmatmul.mubr.bf16.gmra.mxu0 %v2182
        %v2336 = vpop.f32.mrf.mxu0
        %v2337 = vadd.f32 0.0, %v2336
        %v2338 = vpop.f32.mrf.mxu0
        %v2339 = vpop.f32.mrf.mxu0
        %v2340 = vadd.f32 0.0, %v2339
        %v2341 = vpop.f32.mrf.mxu0
        %2342 = vmatprep.mubr.bf16.mxu0 %v2282
        %2343 = vmatmul.mubr.bf16.gmra.mxu0 %v2184
        %v2344 = vpop.f32.mrf.mxu0
        %v2345 = vadd.f32 0.0, %v2344
        %v2346 = vpop.f32.mrf.mxu0
        %v2347 = vpop.f32.mrf.mxu0
        %v2348 = vadd.f32 0.0, %v2347
        %v2349 = vpop.f32.mrf.mxu0
        %2350 = vmatprep.mubr.bf16.mxu0 %v2285
        %2351 = vmatmul.mubr.bf16.gmra.mxu0 %v2186
        %v2352 = vpop.f32.mrf.mxu0
        %v2353 = vadd.f32 0.0, %v2352
        %v2354 = vpop.f32.mrf.mxu0
        %v2355 = vpop.f32.mrf.mxu0
        %v2356 = vadd.f32 0.0, %v2355
        %v2357 = vpop.f32.mrf.mxu0
        %2358 = vmatprep.mubr.bf16.mxu0 %v2288
        %2359 = vmatmul.mubr.bf16.gmra.mxu0 %v2188
        %v2360 = vpop.f32.mrf.mxu0
        %v2361 = vadd.f32 0.0, %v2360
        %v2362 = vpop.f32.mrf.mxu0
        %v2363 = vpop.f32.mrf.mxu0
        %v2364 = vadd.f32 0.0, %v2363
        %v2365 = vpop.f32.mrf.mxu0
        %2366 = vmatprep.mubr.bf16.mxu0 %v2291
        %2367 = vmatmul.mubr.bf16.gmra.mxu0 %v2190
        %v2368 = vpop.f32.mrf.mxu0
        %v2369 = vadd.f32 0.0, %v2368
        %v2370 = vpop.f32.mrf.mxu0
        %v2371 = vpop.f32.mrf.mxu0
        %v2372 = vadd.f32 0.0, %v2371
        %v2373 = vpop.f32.mrf.mxu0
        %2374 = vmatprep.mubr.bf16.mxu0 %v2294
        %2375 = vmatmul.mubr.bf16.gmra.mxu0 %v2192
        %v2376 = vpop.f32.mrf.mxu0
        %v2377 = vadd.f32 0.0, %v2376
        %v2378 = vpop.f32.mrf.mxu0
        %v2379 = vpop.f32.mrf.mxu0
        %v2380 = vadd.f32 0.0, %v2379
        %v2381 = vpop.f32.mrf.mxu0
        %2382 = vmatprep.mubr.bf16.mxu0 %v2297
        %2383 = vmatmul.mubr.bf16.gmra.mxu0 %v2194
        %v2384 = vpop.f32.mrf.mxu0
        %v2385 = vadd.f32 0.0, %v2384
        %v2386 = vpop.f32.mrf.mxu0
        %v2387 = vpop.f32.mrf.mxu0
        %v2388 = vadd.f32 0.0, %v2387
        %v2389 = vpop.f32.mrf.mxu0
        %2390 = vmatprep.mubr.bf16.mxu0 %v2300
        %2391 = vmatmul.mubr.bf16.gmra.mxu0 %v2196
        %v2392 = vpop.f32.mrf.mxu0
        %v2393 = vadd.f32 0.0, %v2392
        %v2394 = vpop.f32.mrf.mxu0
        %v2395 = vpop.f32.mrf.mxu0
        %v2396 = vadd.f32 0.0, %v2395
        %v2397 = vpop.f32.mrf.mxu0
        %2398 = vdwg.mxu0
        %v2399 = vadd.f32 %v1710, %v2337
        %v2400 = vadd.f32 %v1713, %v2340
        %v2401 = vadd.f32 %v1718, %v2345
        %v2402 = vadd.f32 %v1721, %v2348
        %v2403 = vadd.f32 %v1726, %v2353
        %v2404 = vadd.f32 %v1729, %v2356
        %v2405 = vadd.f32 %v1734, %v2361
        %v2406 = vadd.f32 %v1737, %v2364
        %v2407 = vadd.f32 %v1742, %v2369
        %v2408 = vadd.f32 %v1745, %v2372
        %v2409 = vadd.f32 %v1750, %v2377
        %v2410 = vadd.f32 %v1753, %v2380
        %v2411 = vadd.f32 %v1758, %v2385
        %v2412 = vadd.f32 %v1761, %v2388
        %v2413 = vadd.f32 %v1766, %v2393
        %v2414 = vadd.f32 %v1769, %v2396
        %v2415 = vld [vmem:[%s4] sm:$0x1]
        %v2417 = vlaneseq
        %v2418 = vshrl.u32 %v2417, 7
        %v2419 = vsub.s32 0, %v2418
        %v2420 = vrot.slane %v2415, %v2419
        %v2422 = vadd.f32 %v2399, %v2420
        %v2423 = vadd.f32 %v2400, %v2420
        %v2424 = vadd.f32 %v2401, %v2420
        %v2425 = vadd.f32 %v2402, %v2420
        %v2426 = vadd.f32 %v2403, %v2420
        %v2427 = vadd.f32 %v2404, %v2420
        %v2428 = vadd.f32 %v2405, %v2420
        %v2429 = vadd.f32 %v2406, %v2420
        %v2430 = vadd.f32 %v2407, %v2420
        %v2431 = vadd.f32 %v2408, %v2420
        %v2432 = vadd.f32 %v2409, %v2420
        %v2433 = vadd.f32 %v2410, %v2420
        %v2434 = vadd.f32 %v2411, %v2420
        %v2435 = vadd.f32 %v2412, %v2420
        %v2436 = vadd.f32 %v2413, %v2420
        %v2437 = vadd.f32 %v2414, %v2420
        %v2438 = vmax.f32 %v2422, 0.0
        %v2439 = vmax.f32 %v2423, 0.0
        %v2440 = vmax.f32 %v2424, 0.0
        %v2441 = vmax.f32 %v2425, 0.0
        %v2442 = vmax.f32 %v2426, 0.0
        %v2443 = vmax.f32 %v2427, 0.0
        %v2444 = vmax.f32 %v2428, 0.0
        %v2445 = vmax.f32 %v2429, 0.0
        %v2446 = vmax.f32 %v2430, 0.0
        %v2447 = vmax.f32 %v2431, 0.0
        %v2448 = vmax.f32 %v2432, 0.0
        %v2449 = vmax.f32 %v2433, 0.0
        %v2450 = vmax.f32 %v2434, 0.0
        %v2451 = vmax.f32 %v2435, 0.0
        %v2452 = vmax.f32 %v2436, 0.0
        %v2453 = vmax.f32 %v2437, 0.0
        %2454 = vst.msk [vmem:[%s364] sm:$0xff] %vm433, %v2438
        %2455 = vst.msk [vmem:[%s364 + $0x8] sm:$0xff] %vm433, %v2439
        %2456 = vst.msk [vmem:[%s364 + $0x10] sm:$0xff] %vm433, %v2440
        %2457 = vst.msk [vmem:[%s364 + $0x18] sm:$0xff] %vm433, %v2441
        %2458 = vst.msk [vmem:[%s364 + $0x20] sm:$0xff] %vm433, %v2442
        %2459 = vst.msk [vmem:[%s364 + $0x28] sm:$0xff] %vm433, %v2443
        %2460 = vst.msk [vmem:[%s364 + $0x30] sm:$0xff] %vm433, %v2444
        %2461 = vst.msk [vmem:[%s364 + $0x38] sm:$0xff] %vm433, %v2445
        %2462 = vst.msk [vmem:[%s364 + $0x40] sm:$0xff] %vm433, %v2446
        %2463 = vst.msk [vmem:[%s364 + $0x48] sm:$0xff] %vm433, %v2447
        %2464 = vst.msk [vmem:[%s364 + $0x50] sm:$0xff] %vm433, %v2448
        %2465 = vst.msk [vmem:[%s364 + $0x58] sm:$0xff] %vm433, %v2449
        %2466 = vst.msk [vmem:[%s364 + $0x60] sm:$0xff] %vm433, %v2450
        %2467 = vst.msk [vmem:[%s364 + $0x68] sm:$0xff] %vm433, %v2451
        %2468 = vst.msk [vmem:[%s364 + $0x70] sm:$0xff] %vm433, %v2452
        %2469 = vst.msk [vmem:[%s364 + $0x78] sm:$0xff] %vm433, %v2453
        %v2470 = vld [vmem:[%s364] sm:$0xff]
        %v2471 = vld [vmem:[%s364 + $0x8] sm:$0xff]
        %v2472 = vld [vmem:[%s364 + $0x20] sm:$0xff]
        %v2473 = vld [vmem:[%s364 + $0x28] sm:$0xff]
        %v2474 = vld [vmem:[%s364 + $0x40] sm:$0xff]
        %v2475 = vld [vmem:[%s364 + $0x48] sm:$0xff]
        %v2476 = vld [vmem:[%s364 + $0x60] sm:$0xff]
        %v2477 = vld [vmem:[%s364 + $0x68] sm:$0xff]
        %s2478 = scalar_lea.vmem %s364, 16 [#allocation5]
        %v2479 = vld [vmem:[%s2478] sm:$0xff]
        %v2480 = vld [vmem:[%s2478 + $0x8] sm:$0xff]
        %v2481 = vld [vmem:[%s2478 + $0x20] sm:$0xff]
        %v2482 = vld [vmem:[%s2478 + $0x28] sm:$0xff]
        %v2483 = vld [vmem:[%s2478 + $0x40] sm:$0xff]
        %v2484 = vld [vmem:[%s2478 + $0x48] sm:$0xff]
        %v2485 = vld [vmem:[%s2478 + $0x60] sm:$0xff]
        %v2486 = vld [vmem:[%s2478 + $0x68] sm:$0xff]
        %v2487 = vmax.f32 %v2470, %v2479
        %v2488 = vmax.f32 %v2471, %v2480
        %v2489 = vmax.f32 %v2472, %v2481
        %v2490 = vmax.f32 %v2473, %v2482
        %v2491 = vmax.f32 %v2474, %v2483
        %v2492 = vmax.f32 %v2475, %v2484
        %v2493 = vmax.f32 %v2476, %v2485
        %v2494 = vmax.f32 %v2477, %v2486
        %2495 = vst.msk [vmem:[#allocation4] sm:$0xff] %vm433, %v2487
        %2496 = vst.msk [vmem:[#allocation4 + $0x8] sm:$0xff] %vm433, %v2488
        %2497 = vst.msk [vmem:[#allocation4 + $0x10] sm:$0xff] %vm433, %v2489
        %2498 = vst.msk [vmem:[#allocation4 + $0x18] sm:$0xff] %vm433, %v2490
        %2499 = vst.msk [vmem:[#allocation4 + $0x20] sm:$0xff] %vm433, %v2491
        %2500 = vst.msk [vmem:[#allocation4 + $0x28] sm:$0xff] %vm433, %v2492
        %2501 = vst.msk [vmem:[#allocation4 + $0x30] sm:$0xff] %vm433, %v2493
        %2502 = vst.msk [vmem:[#allocation4 + $0x38] sm:$0xff] %vm433, %v2494
        %v2503 = vld [vmem:[#allocation4] ss:$2 sm:$0xff]
        %s2504 = scalar_lea.vmem [#allocation4], 16
        %v2505 = vld [vmem:[%s2504] ss:$2 sm:$0xff]
        %s2506 = scalar_lea.vmem [#allocation4], 32
        %v2507 = vld [vmem:[%s2506] ss:$2 sm:$0xff]
        %s2508 = scalar_lea.vmem [#allocation4], 48
        %v2509 = vld [vmem:[%s2508] ss:$2 sm:$0xff]
        %s2510 = scalar_lea.vmem [#allocation4], 1
        %v2511 = vld [vmem:[%s2510] ss:$2 sm:$0xff]
        %s2512 = scalar_lea.vmem [#allocation4], 17
        %v2513 = vld [vmem:[%s2512] ss:$2 sm:$0xff]
        %s2514 = scalar_lea.vmem [#allocation4], 33
        %v2515 = vld [vmem:[%s2514] ss:$2 sm:$0xff]
        %s2516 = scalar_lea.vmem [#allocation4], 49
        %v2517 = vld [vmem:[%s2516] ss:$2 sm:$0xff]
        %v2518 = vmax.f32 %v2503, %v2511
        %v2519 = vmax.f32 %v2505, %v2513
        %v2520 = vmax.f32 %v2507, %v2515
        %v2521 = vmax.f32 %v2509, %v2517
        %v2522 = vpack.c.bf16 %v2518, %v2518
        %v2523 = vpack.c.bf16 %v2519, %v2519
        %v2524 = vpack.c.bf16 %v2520, %v2520
        %v2525 = vpack.c.bf16 %v2521, %v2521
        %2526 = vst.msk [vmem:[%s430] sm:$0xf] %vm599, %v2522
        %2527 = vst.msk [vmem:[%s430 + $0x4] sm:$0xf] %vm599, %v2523
        %2528 = vst.msk [vmem:[%s430 + $0x8] sm:$0xf] %vm599, %v2524
        %2529 = vst.msk [vmem:[%s430 + $0xc] sm:$0xf] %vm599, %v2525
        %s2530 = sand.u32 %s185, 1
        %s2531 = scalar_lea.sflag [#allocation6], %s2530
        %s2532 = sand.u32 %s185, 1
        %s2533 = smul.addr %s2532, 128
        %s2534 = scalar_lea.vmem [#allocation5], %s2533
        %s2535 = smul.u32 4, %s26
        %p2536 = scmp.lt.s32.totalorder %s25, 1
        %s2537 = scalar_select %p2536, %s25, 1
        %p2538 = scmp.lt.s32.totalorder %s2535, 7
        %s2539 = scalar_select %p2538, %s2535, 7
        %s2540 = smul.addr %s2537, 8
        %s2541 = sadd.s32 %s2539, %s2540
        %s2542 = smul.addr %s2541, 4
        %s2543 = scalar_lea.vmem %s6, %s2542
        // Predicated region
        $region41: #{a_call__.4} parent=39 // pred_check
          %p2544 = pneg %p195
        $region42: #{a_call__.4} parent=39 // pred_check_branch
          %2546 = sbr.rel (%p2544) target = $region44
        $region43: #{a_call__.4} parent=39 // pred_region
          %s2547 = smul.u32 8, %s26
          %s2549 = ssub.s32 2048, 2048
          %2550 = vsyncadd %s2531, %s2549
          %s2551 = smul.addr %s2547, 2
          %s2552 = smul.addr %s25, 32
          %s2553 = sadd.s32 %s2551, %s2552
          %s2554 = smul.addr %s2553, 128
          %s2555 = scalar_lea.hbm %s5, %s2554
          %s2556 = sshll.u32 %s2534, 4
          %s2557 = int_to_ptr.vmem [resolvable:$true] %s2556
          %2562 = dma.vmem_to_hbm [thread:$0]  %s2557, 2048, %s2555, %s2531, 128, 128, 8
        $region44: #{a_call__.4} parent=39 // pred_fallthru
          _
        // Predicated region
        $region45: #{a_call__.4} parent=39 // pred_check
          %p2563 = pneg %p223
        $region46: #{a_call__.4} parent=39 // pred_check_branch
          %2565 = sbr.rel (%p2563) target = $region48
        $region47: #{a_call__.4} parent=39 // pred_region
          %s2566 = smul.u32 4, %s26
        $region48: #{a_call__.4} parent=39 // pred_fallthru
          _
      $region40: #{a_call__.4} parent=5 // pred_fallthru
        _
      %p2567 = scmp.le.s32.totalorder 2, %s16
      // Predicated region
      $region49: #{a_call__.4} parent=5 // pred_check
        %p2568 = pneg %p2567
      $region50: #{a_call__.4} parent=5 // pred_check_branch
        %2570 = sbr.rel (%p2568) target = $region52
      $region51: #{a_call__.4} parent=5 // pred_region
        %s2571 = ssub.s32 %s16, 2
        // Predicated region
        $region53: #{a_call__.4} parent=51 // pred_check
          %p2572 = pneg %p201
        $region54: #{a_call__.4} parent=51 // pred_check_branch
          %2574 = sbr.rel (%p2572) target = $region56
        $region55: #{a_call__.4} parent=51 // pred_region
          %s2575 = sand.u32 %s186, 1
          %s2576 = scalar_lea.sflag [#allocation6], %s2575
          %s2577 = sand.u32 %s186, 1
          %s2578 = smul.addr %s2577, 128
          %s2579 = scalar_lea.vmem [#allocation5], %s2578
          %2580 = dma.done %s2576, 2048
        $region56: #{a_call__.4} parent=51 // pred_fallthru
          _
        // Predicated region
        $region57: #{a_call__.4} parent=51 // pred_check
          %p2581 = pneg %p229
        $region58: #{a_call__.4} parent=51 // pred_check_branch
          %2583 = sbr.rel (%p2581) target = $region60
        $region59: #{a_call__.4} parent=51 // pred_region
          %s2584 = smul.u32 4, %s28
          %p2585 = scmp.lt.s32.totalorder %s27, 1
          %s2586 = scalar_select %p2585, %s27, 1
          %p2587 = scmp.lt.s32.totalorder %s2584, 7
          %s2588 = scalar_select %p2587, %s2584, 7
          %s2589 = smul.addr %s2586, 8
          %s2590 = sadd.s32 %s2588, %s2589
          %s2591 = smul.addr %s2590, 4
          %s2592 = scalar_lea.vmem %s6, %s2591
        $region60: #{a_call__.4} parent=51 // pred_fallthru
          _
      $region52: #{a_call__.4} parent=5 // pred_fallthru
        _
    $region6: #{a_call__.4} parent=1 // loop_footer
      %s20 = sadd.s32 1, %s16
    $region7: #{a_call__.4} parent=1 // loop_footer_branch
      %15 = sbr.rel target = $region3
    $region8: #{a_call__.4} parent=1 // loop_exit
      _
    %2593 = vsyncpa [#allocation6], 1
    %s2594 = scalar_lea.sflag [#allocation6], 1
    %2595 = vsyncpa %s2594, 1

</llo_original>
